<compile_context>
chip_gen: v7x
topology: tpu7x:2x2x1
jax: 0.10.0
libtpu: 0.0.40
codegen_flags: <defaults>
</compile_context>

<pallas_src>
import functools
import numpy as np
import jax
import jax.numpy as jnp
from jax import lax
from jax.experimental import pallas as pl
from jax.experimental.pallas import tpu as pltpu

LANE = 128   # per-gate lane padding (Hp) and class padding (Cp)
SUB = 8      # sublane padding for the batch dimension (Bp)


# ----------------------------------------------------------------------------
# Pallas kernel: embedding + bidirectional LSTM recurrence + decoder
# ----------------------------------------------------------------------------
def _snorkel_kernel(ids_ref,      # (T*Bp, 1) int32  time-major padded token ids
                    embed_ref,    # (V, E)    f32    embedding table
                    wihb_ref,     # (E+1, 8Hp) f32   rows 0..E-1: Wih [fwd|bwd], row E: b_ih+b_hh
                    whh_ref,      # (Hp, 8Hp)  f32   [:, :4Hp]=fwd Whh, [:, 4Hp:]=bwd Whh
                    wdecb_ref,    # (2Hp+1, Cp) f32  rows 0..2Hp-1: decoder W^T, row 2Hp: bias
                    pred_ref,     # (Bp, Cp)   f32
                    *, batch):
    TB = ids_ref.shape[0]
    V, E = embed_ref.shape
    Hp = whh_ref.shape[0]
    Bp, _ = pred_ref.shape
    T = TB // Bp
    G4 = 4 * Hp

    # ---- embedding lookup as an exact one-hot MXU matmul -------------------
    onehot = (ids_ref[...] ==
              lax.broadcasted_iota(jnp.int32, (TB, V), 1)).astype(jnp.float32)
    x = jnp.dot(onehot, embed_ref[...],
                preferred_element_type=jnp.float32)                   # (TB, E)

    # ---- hoisted input projection for both directions, biases folded -------
    xproj = (jnp.dot(x, wihb_ref[0:E, :], preferred_element_type=jnp.float32)
             + wihb_ref[E:E + 1, :])                                  # (TB, 8Hp)
    xp_f = xproj[:, :G4]                                              # (TB, 4Hp)
    xp_b = xproj[:, G4:]                                              # (TB, 4Hp)

    whh_f = whh_ref[:, :G4]                                           # (Hp, 4Hp)
    whh_b = whh_ref[:, G4:]                                           # (Hp, 4Hp)

    def cell(xp_t, h, c, whh):
        # One fused-gate matmul per step per direction; PyTorch gate order
        # [i, f, g, o] lives in 128-lane-aligned column blocks.
        g = xp_t + jnp.dot(h, whh, preferred_element_type=jnp.float32)  # (Bp, 4Hp)
        i = jax.nn.sigmoid(g[:, 0:Hp])
        f = jax.nn.sigmoid(g[:, Hp:2 * Hp])
        gg = jnp.tanh(g[:, 2 * Hp:3 * Hp])
        o = jax.nn.sigmoid(g[:, 3 * Hp:4 * Hp])
        c_new = f * c + i * gg
        return o * jnp.tanh(c_new), c_new

    z = jnp.zeros((Bp, Hp), jnp.float32)
    hf, cf, hb, cb = z, z, z, z
    # Full unroll; fwd/bwd chains interleaved so the scheduler overlaps them.
    for t in range(T):
        hf, cf = cell(xp_f[t * Bp:(t + 1) * Bp, :], hf, cf, whh_f)
        hb, cb = cell(xp_b[(T - 1 - t) * Bp:(T - t) * Bp, :], hb, cb, whh_b)

    # ---- torch final_hidden_state (2,B,H).view(B, 2H) ----------------------
    # With A = [hf[:B]; hb[:B]] (2B, Hp):  hidden[b'] = [A[2b'] | A[2b'+1]]
    B = batch

    def a_row(r):
        return hf[r:r + 1, :] if r < B else hb[r - B:r - B + 1, :]

    rows = [jnp.concatenate([a_row(2 * b), a_row(2 * b + 1)], axis=1)
            for b in range(B)]
    if Bp > B:
        rows.append(jnp.zeros((Bp - B, 2 * Hp), jnp.float32))
    hidden = jnp.concatenate(rows, axis=0)                            # (Bp, 2Hp)

    # ---- decoder: dense (Bp, Cp) store --------------------------------------
    pred_ref[...] = (jnp.dot(hidden, wdecb_ref[0:2 * Hp, :],
                             preferred_element_type=jnp.float32)
                     + wdecb_ref[2 * Hp:2 * Hp + 1, :])


# ----------------------------------------------------------------------------
# Weight packing helpers (gate-aligned zero padding; numerically exact)
# ----------------------------------------------------------------------------
def _pad_gate_rows(w, H, Hp):
    """(4H, X) torch gate-major -> (4Hp, X); each gate block zero-padded."""
    X = w.shape[1]
    w4 = w.reshape(4, H, X)
    out = jnp.zeros((4, Hp, X), w.dtype).at[:, :H, :].set(w4)
    return out.reshape(4 * Hp, X)


def _pad_gate_vec(b, H, Hp):
    """(4H,) -> (4Hp,); padded bias lanes are exactly zero (keeps padded h/c at 0)."""
    b4 = b.reshape(4, H)
    out = jnp.zeros((4, Hp), b.dtype).at[:, :H].set(b4)
    return out.reshape(4 * Hp)


def _pack_whh(w, H, Hp):
    """torch (4H, H) -> (Hp, 4Hp): pad gate rows, transpose, pad input dim."""
    wp = _pad_gate_rows(w, H, Hp).T                      # (H, 4Hp)
    return jnp.zeros((Hp, 4 * Hp), w.dtype).at[:H, :].set(wp)


# ----------------------------------------------------------------------------
# Wrapper (layout glue; embedding/LSTM/decoder run inside the kernel)
# ----------------------------------------------------------------------------
def snorkel_forward(inputs, params, hidden_size, target=None):
    B, T = inputs.shape
    H = hidden_size
    Hp = ((H + LANE - 1) // LANE) * LANE
    Bp = ((B + SUB - 1) // SUB) * SUB
    embed = params['embed']                                   # (V, E) f32
    E = embed.shape[1]
    C = params['b_dec'].shape[0]
    Cp = ((C + LANE - 1) // LANE) * LANE

    # Time-major token ids, batch padded to a full sublane tile (dummy id 0).
    ids_tm = jnp.transpose(inputs).astype(jnp.int32)          # (T, B)
    ids = (jnp.zeros((T, Bp), jnp.int32).at[:, :B].set(ids_tm)
           .reshape(T * Bp, 1))

    # Fused-gate, gate-padded layouts.  PyTorch packs (4H, ...) with gate rows
    # [i, f, g, o]; each gate is zero-padded to Hp so the kernel's gate slices
    # land on 128-lane boundaries.
    wih = jnp.concatenate([_pad_gate_rows(params['w_ih_f'], H, Hp).T,
                           _pad_gate_rows(params['w_ih_b'], H, Hp).T],
                          axis=1)                                        # (E, 8Hp)
    bih = jnp.concatenate(
        [_pad_gate_vec(params['b_ih_f'] + params['b_hh_f'], H, Hp),
         _pad_gate_vec(params['b_ih_b'] + params['b_hh_b'], H, Hp)])     # (8Hp,)
    wihb = jnp.concatenate([wih, bih[None, :]], axis=0)                  # (E+1, 8Hp)

    whh = jnp.concatenate([_pack_whh(params['w_hh_f'], H, Hp),
                           _pack_whh(params['w_hh_b'], H, Hp)], axis=1)  # (Hp, 8Hp)

    wdec_t = params['w_dec'].T                                           # (2H, C)
    w0p = jnp.zeros((Hp, Cp), jnp.float32).at[:H, :C].set(wdec_t[:H])
    w1p = jnp.zeros((Hp, Cp), jnp.float32).at[:H, :C].set(wdec_t[H:])
    brow = jnp.zeros((1, Cp), jnp.float32).at[0, :C].set(params['b_dec'])
    wdecb = jnp.concatenate([w0p, w1p, brow], axis=0)                    # (2Hp+1, Cp)

    vmem = pl.BlockSpec(memory_space=pltpu.MemorySpace.VMEM)
    pred_full = pl.pallas_call(
        functools.partial(_snorkel_kernel, batch=B),
        out_shape=jax.ShapeDtypeStruct((Bp, Cp), jnp.float32),
        in_specs=[vmem] * 5,
        out_specs=vmem,
    )(ids, embed, wihb, whh, wdecb)
    # TODO(synk): when evaluating many sequences, add a leading "parallel"
    # grid axis over sequence chunks to use both TensorCores on v7x and
    # amortize launch overhead.
    pred = pred_full[:B, :C]

    obj = {'prediction': pred}
    if target is not None:
        # nn.CrossEntropyLoss (mean reduction) + correct-count, plain JAX glue.
        logp = jax.nn.log_softmax(pred, axis=-1)
        obj['loss'] = -jnp.mean(jnp.take_along_axis(logp, target[:, None], axis=1))
        obj['correct'] = jnp.sum(jnp.argmax(pred, axis=1) == target)
    return obj


# ----------------------------------------------------------------------------
# Pure-JAX reference (mirrors the PyTorch module exactly) for validation
# ----------------------------------------------------------------------------
def reference_forward(inputs, params, hidden_size, target=None):
    B, T = inputs.shape
    H = hidden_size
    x = jnp.take(params['embed'], inputs, axis=0)             # (B, T, E)

    def run(xs, w_ih, w_hh, b_ih, b_hh):
        def step(carry, x_t):
            h, c = carry
            gates = x_t @ w_ih.T + b_ih + h @ w_hh.T + b_hh
            i, f, g, o = jnp.split(gates, 4, axis=-1)
            i, f, o = jax.nn.sigmoid(i), jax.nn.sigmoid(f), jax.nn.sigmoid(o)
            g = jnp.tanh(g)
            c = f * c + i * g
            h = o * jnp.tanh(c)
            return (h, c), h
        init = (jnp.zeros((B, H)), jnp.zeros((B, H)))
        (h, _), _ = lax.scan(step, init, jnp.transpose(xs, (1, 0, 2)))
        return h

    hf = run(x, params['w_ih_f'], params['w_hh_f'], params['b_ih_f'], params['b_hh_f'])
    hb = run(x[:, ::-1], params['w_ih_b'], params['w_hh_b'], params['b_ih_b'], params['b_hh_b'])
    fh = jnp.stack([hf, hb], axis=0)                          # (2, B, H)
    hidden_state = fh.reshape(B, 2 * H)                       # == torch .view(B, -1)
    pred = hidden_state @ params['w_dec'].T + params['b_dec']
    obj = {'prediction': pred}
    if target is not None:
        logp = jax.nn.log_softmax(pred, axis=-1)
        obj['loss'] = -jnp.mean(jnp.take_along_axis(logp, target[:, None], axis=1))
        obj['correct'] = jnp.sum(jnp.argmax(pred, axis=1) == target)
    return obj


# ----------------------------------------------------------------------------
# Deterministic parameter init (synthetic; shapes match the nn.Module)
# ----------------------------------------------------------------------------
def init_params(key, vocab_size, embedding_dim, hidden_size, classes_dim):
    ks = jax.random.split(key, 11)
    s = 1.0 / np.sqrt(hidden_size)
    u = lambda k, shape: jax.random.uniform(k, shape, jnp.float32, -s, s)
    return {
        'embed':  jax.random.normal(ks[0], (vocab_size, embedding_dim), jnp.float32) * 0.1,
        'w_ih_f': u(ks[1], (4 * hidden_size, embedding_dim)),
        'w_hh_f': u(ks[2], (4 * hidden_size, hidden_size)),
        'b_ih_f': u(ks[3], (4 * hidden_size,)),
        'b_hh_f': u(ks[4], (4 * hidden_size,)),
        'w_ih_b': u(ks[5], (4 * hidden_size, embedding_dim)),
        'w_hh_b': u(ks[6], (4 * hidden_size, hidden_size)),
        'b_ih_b': u(ks[7], (4 * hidden_size,)),
        'b_hh_b': u(ks[8], (4 * hidden_size,)),
        'w_dec':  u(ks[9], (classes_dim, 2 * hidden_size)),
        'b_dec':  u(ks[10], (classes_dim,)),
    }


if __name__ == "__main__":
    VOCAB, EMBED_DIM, HIDDEN, CLASSES = 100, 32, 40, 5

    key = jax.random.PRNGKey(0)
    kp, ki1, kt1, ki2, kt2 = jax.random.split(key, 5)
    params = init_params(kp, VOCAB, EMBED_DIM, HIDDEN, CLASSES)

    # Two shapes: the main (B=2, T=8) case plus a B=3 case to keep the
    # final_hidden_state.view(B, -1) row-interleave logic covered.
    cases = [((2, 8), ki1, kt1), ((3, 5), ki2, kt2)]
    for (B, T), ki, kt in cases:
        inputs = jax.random.randint(ki, (B, T), 0, VOCAB, dtype=jnp.int32)
        target = jax.random.randint(kt, (B,), 0, CLASSES, dtype=jnp.int32)

        fwd = jax.jit(lambda inp, tgt: snorkel_forward(inp, params, HIDDEN, target=tgt))
        out = fwd(inputs, target)
        out = jax.tree_util.tree_map(jax.block_until_ready, out)

        ref = reference_forward(inputs, params, HIDDEN, target=target)
        np.testing.assert_allclose(np.asarray(out['prediction']),
                                   np.asarray(ref['prediction']),
                                   rtol=2e-4, atol=2e-4)
        np.testing.assert_allclose(np.asarray(out['loss']), np.asarray(ref['loss']),
                                   rtol=2e-4, atol=2e-4)
        assert int(out['correct']) == int(ref['correct'])

    print("KERNEL_OK")
</pallas_src>

<mosaic_0001>
module attributes {stable_mosaic.version = 11 : i64} {
  func.func @_snorkel_kernel(%arg0: memref<64x1xi32, #tpu.memory_space<vmem>>, %arg1: memref<100x32xf32, #tpu.memory_space<vmem>>, %arg2: memref<33x1024xf32, #tpu.memory_space<vmem>>, %arg3: memref<128x1024xf32, #tpu.memory_space<vmem>>, %arg4: memref<257x128xf32, #tpu.memory_space<vmem>>, %arg5: memref<8x128xf32, #tpu.memory_space<vmem>>) attributes {dimension_semantics = [], scalar_prefetch = 0 : i64, scratch_operands = 0 : i64, tpu.core_type = #tpu.core_type<tc>} {
    %c0 = arith.constant 0 : index
    %c0_0 = arith.constant 0 : index
    %0 = vector.load %arg0[%c0, %c0_0] : memref<64x1xi32, #tpu.memory_space<vmem>>, vector<64x1xi32>
    %1 = tpu.iota {dimensions = array<i32: 1>} : vector<64x100xi32>
    %2 = vector.broadcast %0 : vector<64x1xi32> to vector<64x100xi32>
    %3 = arith.cmpi eq, %2, %1 : vector<64x100xi32>
    %4 = arith.extui %3 : vector<64x100xi1> to vector<64x100xi32>
    %5 = arith.sitofp %4 : vector<64x100xi32> to vector<64x100xf32>
    %c0_1 = arith.constant 0 : index
    %c0_2 = arith.constant 0 : index
    %6 = vector.load %arg1[%c0_1, %c0_2] : memref<100x32xf32, #tpu.memory_space<vmem>>, vector<100x32xf32>
    %cst = arith.constant dense<0.000000e+00> : vector<64x32xf32>
    %7 = tpu.matmul %5, %6, %cst {dimension_numbers = #tpu.dot_dimension_numbers<[1], [0], [0], [1], [0, 0, 1, 1], [], []>} : vector<64x100xf32>, vector<100x32xf32>, vector<64x32xf32> -> vector<64x32xf32>
    %c0_3 = arith.constant 0 : index
    %c0_4 = arith.constant 0 : index
    %8 = vector.load %arg2[%c0_3, %c0_4] : memref<33x1024xf32, #tpu.memory_space<vmem>>, vector<32x1024xf32>
    %cst_5 = arith.constant dense<0.000000e+00> : vector<64x1024xf32>
    %9 = tpu.matmul %7, %8, %cst_5 {dimension_numbers = #tpu.dot_dimension_numbers<[1], [0], [0], [1], [0, 0, 1, 1], [], []>} : vector<64x32xf32>, vector<32x1024xf32>, vector<64x1024xf32> -> vector<64x1024xf32>
    %c32 = arith.constant 32 : index
    %c0_6 = arith.constant 0 : index
    %10 = vector.load %arg2[%c32, %c0_6] : memref<33x1024xf32, #tpu.memory_space<vmem>>, vector<1x1024xf32>
    %11 = vector.broadcast %10 : vector<1x1024xf32> to vector<64x1024xf32>
    %12 = arith.addf %9, %11 : vector<64x1024xf32>
    %13 = vector.extract_strided_slice %12 {offsets = [0, 0], sizes = [64, 512], strides = [1, 1]} : vector<64x1024xf32> to vector<64x512xf32>
    %14 = vector.extract_strided_slice %12 {offsets = [0, 512], sizes = [64, 512], strides = [1, 1]} : vector<64x1024xf32> to vector<64x512xf32>
    %c0_7 = arith.constant 0 : index
    %c0_8 = arith.constant 0 : index
    %15 = vector.load %arg3[%c0_7, %c0_8] : memref<128x1024xf32, #tpu.memory_space<vmem>>, vector<128x512xf32>
    %c0_9 = arith.constant 0 : index
    %c512 = arith.constant 512 : index
    %16 = vector.load %arg3[%c0_9, %c512] : memref<128x1024xf32, #tpu.memory_space<vmem>>, vector<128x512xf32>
    %cst_10 = arith.constant 0.000000e+00 : f32
    %17 = vector.broadcast %cst_10 : f32 to vector<8x128xf32>
    %18 = vector.extract_strided_slice %13 {offsets = [0, 0], sizes = [8, 512], strides = [1, 1]} : vector<64x512xf32> to vector<8x512xf32>
    %cst_11 = arith.constant dense<0.000000e+00> : vector<8x512xf32>
    %19 = tpu.matmul %17, %15, %cst_11 {dimension_numbers = #tpu.dot_dimension_numbers<[1], [0], [0], [1], [0, 0, 1, 1], [], []>} : vector<8x128xf32>, vector<128x512xf32>, vector<8x512xf32> -> vector<8x512xf32>
    %20 = arith.addf %18, %19 : vector<8x512xf32>
    %21 = vector.extract_strided_slice %20 {offsets = [0, 0], sizes = [8, 128], strides = [1, 1]} : vector<8x512xf32> to vector<8x128xf32>
    %22 = arith.negf %21 : vector<8x128xf32>
    %23 = math.exp %22 : vector<8x128xf32>
    %cst_12 = arith.constant 1.000000e+00 : f32
    %24 = vector.broadcast %cst_12 : f32 to vector<8x128xf32>
    %25 = arith.addf %24, %23 : vector<8x128xf32>
    %26 = arith.divf %24, %25 : vector<8x128xf32>
    %27 = vector.extract_strided_slice %20 {offsets = [0, 128], sizes = [8, 128], strides = [1, 1]} : vector<8x512xf32> to vector<8x128xf32>
    %28 = arith.negf %27 : vector<8x128xf32>
    %29 = math.exp %28 : vector<8x128xf32>
    %cst_13 = arith.constant 1.000000e+00 : f32
    %30 = vector.broadcast %cst_13 : f32 to vector<8x128xf32>
    %31 = arith.addf %30, %29 : vector<8x128xf32>
    %32 = arith.divf %30, %31 : vector<8x128xf32>
    %33 = vector.extract_strided_slice %20 {offsets = [0, 256], sizes = [8, 128], strides = [1, 1]} : vector<8x512xf32> to vector<8x128xf32>
    %34 = math.tanh %33 : vector<8x128xf32>
    %35 = vector.extract_strided_slice %20 {offsets = [0, 384], sizes = [8, 128], strides = [1, 1]} : vector<8x512xf32> to vector<8x128xf32>
    %36 = arith.negf %35 : vector<8x128xf32>
    %37 = math.exp %36 : vector<8x128xf32>
    %cst_14 = arith.constant 1.000000e+00 : f32
    %38 = vector.broadcast %cst_14 : f32 to vector<8x128xf32>
    %39 = arith.addf %38, %37 : vector<8x128xf32>
    %40 = arith.divf %38, %39 : vector<8x128xf32>
    %41 = arith.mulf %32, %17 : vector<8x128xf32>
    %42 = arith.mulf %26, %34 : vector<8x128xf32>
    %43 = arith.addf %41, %42 : vector<8x128xf32>
    %44 = math.tanh %43 : vector<8x128xf32>
    %45 = arith.mulf %40, %44 : vector<8x128xf32>
    %46 = vector.extract_strided_slice %14 {offsets = [56, 0], sizes = [8, 512], strides = [1, 1]} : vector<64x512xf32> to vector<8x512xf32>
    %cst_15 = arith.constant dense<0.000000e+00> : vector<8x512xf32>
    %47 = tpu.matmul %17, %16, %cst_15 {dimension_numbers = #tpu.dot_dimension_numbers<[1], [0], [0], [1], [0, 0, 1, 1], [], []>} : vector<8x128xf32>, vector<128x512xf32>, vector<8x512xf32> -> vector<8x512xf32>
    %48 = arith.addf %46, %47 : vector<8x512xf32>
    %49 = vector.extract_strided_slice %48 {offsets = [0, 0], sizes = [8, 128], strides = [1, 1]} : vector<8x512xf32> to vector<8x128xf32>
    %50 = arith.negf %49 : vector<8x128xf32>
    %51 = math.exp %50 : vector<8x128xf32>
    %cst_16 = arith.constant 1.000000e+00 : f32
    %52 = vector.broadcast %cst_16 : f32 to vector<8x128xf32>
    %53 = arith.addf %52, %51 : vector<8x128xf32>
    %54 = arith.divf %52, %53 : vector<8x128xf32>
    %55 = vector.extract_strided_slice %48 {offsets = [0, 128], sizes = [8, 128], strides = [1, 1]} : vector<8x512xf32> to vector<8x128xf32>
    %56 = arith.negf %55 : vector<8x128xf32>
    %57 = math.exp %56 : vector<8x128xf32>
    %cst_17 = arith.constant 1.000000e+00 : f32
    %58 = vector.broadcast %cst_17 : f32 to vector<8x128xf32>
    %59 = arith.addf %58, %57 : vector<8x128xf32>
    %60 = arith.divf %58, %59 : vector<8x128xf32>
    %61 = vector.extract_strided_slice %48 {offsets = [0, 256], sizes = [8, 128], strides = [1, 1]} : vector<8x512xf32> to vector<8x128xf32>
    %62 = math.tanh %61 : vector<8x128xf32>
    %63 = vector.extract_strided_slice %48 {offsets = [0, 384], sizes = [8, 128], strides = [1, 1]} : vector<8x512xf32> to vector<8x128xf32>
    %64 = arith.negf %63 : vector<8x128xf32>
    %65 = math.exp %64 : vector<8x128xf32>
    %cst_18 = arith.constant 1.000000e+00 : f32
    %66 = vector.broadcast %cst_18 : f32 to vector<8x128xf32>
    %67 = arith.addf %66, %65 : vector<8x128xf32>
    %68 = arith.divf %66, %67 : vector<8x128xf32>
    %69 = arith.mulf %60, %17 : vector<8x128xf32>
    %70 = arith.mulf %54, %62 : vector<8x128xf32>
    %71 = arith.addf %69, %70 : vector<8x128xf32>
    %72 = math.tanh %71 : vector<8x128xf32>
    %73 = arith.mulf %68, %72 : vector<8x128xf32>
    %74 = vector.extract_strided_slice %13 {offsets = [8, 0], sizes = [8, 512], strides = [1, 1]} : vector<64x512xf32> to vector<8x512xf32>
    %cst_19 = arith.constant dense<0.000000e+00> : vector<8x512xf32>
    %75 = tpu.matmul %45, %15, %cst_19 {dimension_numbers = #tpu.dot_dimension_numbers<[1], [0], [0], [1], [0, 0, 1, 1], [], []>} : vector<8x128xf32>, vector<128x512xf32>, vector<8x512xf32> -> vector<8x512xf32>
    %76 = arith.addf %74, %75 : vector<8x512xf32>
    %77 = vector.extract_strided_slice %76 {offsets = [0, 0], sizes = [8, 128], strides = [1, 1]} : vector<8x512xf32> to vector<8x128xf32>
    %78 = arith.negf %77 : vector<8x128xf32>
    %79 = math.exp %78 : vector<8x128xf32>
    %cst_20 = arith.constant 1.000000e+00 : f32
    %80 = vector.broadcast %cst_20 : f32 to vector<8x128xf32>
    %81 = arith.addf %80, %79 : vector<8x128xf32>
    %82 = arith.divf %80, %81 : vector<8x128xf32>
    %83 = vector.extract_strided_slice %76 {offsets = [0, 128], sizes = [8, 128], strides = [1, 1]} : vector<8x512xf32> to vector<8x128xf32>
    %84 = arith.negf %83 : vector<8x128xf32>
    %85 = math.exp %84 : vector<8x128xf32>
    %cst_21 = arith.constant 1.000000e+00 : f32
    %86 = vector.broadcast %cst_21 : f32 to vector<8x128xf32>
    %87 = arith.addf %86, %85 : vector<8x128xf32>
    %88 = arith.divf %86, %87 : vector<8x128xf32>
    %89 = vector.extract_strided_slice %76 {offsets = [0, 256], sizes = [8, 128], strides = [1, 1]} : vector<8x512xf32> to vector<8x128xf32>
    %90 = math.tanh %89 : vector<8x128xf32>
    %91 = vector.extract_strided_slice %76 {offsets = [0, 384], sizes = [8, 128], strides = [1, 1]} : vector<8x512xf32> to vector<8x128xf32>
    %92 = arith.negf %91 : vector<8x128xf32>
    %93 = math.exp %92 : vector<8x128xf32>
    %cst_22 = arith.constant 1.000000e+00 : f32
    %94 = vector.broadcast %cst_22 : f32 to vector<8x128xf32>
    %95 = arith.addf %94, %93 : vector<8x128xf32>
    %96 = arith.divf %94, %95 : vector<8x128xf32>
    %97 = arith.mulf %88, %43 : vector<8x128xf32>
    %98 = arith.mulf %82, %90 : vector<8x128xf32>
    %99 = arith.addf %97, %98 : vector<8x128xf32>
    %100 = math.tanh %99 : vector<8x128xf32>
    %101 = arith.mulf %96, %100 : vector<8x128xf32>
    %102 = vector.extract_strided_slice %14 {offsets = [48, 0], sizes = [8, 512], strides = [1, 1]} : vector<64x512xf32> to vector<8x512xf32>
    %cst_23 = arith.constant dense<0.000000e+00> : vector<8x512xf32>
    %103 = tpu.matmul %73, %16, %cst_23 {dimension_numbers = #tpu.dot_dimension_numbers<[1], [0], [0], [1], [0, 0, 1, 1], [], []>} : vector<8x128xf32>, vector<128x512xf32>, vector<8x512xf32> -> vector<8x512xf32>
    %104 = arith.addf %102, %103 : vector<8x512xf32>
    %105 = vector.extract_strided_slice %104 {offsets = [0, 0], sizes = [8, 128], strides = [1, 1]} : vector<8x512xf32> to vector<8x128xf32>
    %106 = arith.negf %105 : vector<8x128xf32>
    %107 = math.exp %106 : vector<8x128xf32>
    %cst_24 = arith.constant 1.000000e+00 : f32
    %108 = vector.broadcast %cst_24 : f32 to vector<8x128xf32>
    %109 = arith.addf %108, %107 : vector<8x128xf32>
    %110 = arith.divf %108, %109 : vector<8x128xf32>
    %111 = vector.extract_strided_slice %104 {offsets = [0, 128], sizes = [8, 128], strides = [1, 1]} : vector<8x512xf32> to vector<8x128xf32>
    %112 = arith.negf %111 : vector<8x128xf32>
    %113 = math.exp %112 : vector<8x128xf32>
    %cst_25 = arith.constant 1.000000e+00 : f32
    %114 = vector.broadcast %cst_25 : f32 to vector<8x128xf32>
    %115 = arith.addf %114, %113 : vector<8x128xf32>
    %116 = arith.divf %114, %115 : vector<8x128xf32>
    %117 = vector.extract_strided_slice %104 {offsets = [0, 256], sizes = [8, 128], strides = [1, 1]} : vector<8x512xf32> to vector<8x128xf32>
    %118 = math.tanh %117 : vector<8x128xf32>
    %119 = vector.extract_strided_slice %104 {offsets = [0, 384], sizes = [8, 128], strides = [1, 1]} : vector<8x512xf32> to vector<8x128xf32>
    %120 = arith.negf %119 : vector<8x128xf32>
    %121 = math.exp %120 : vector<8x128xf32>
    %cst_26 = arith.constant 1.000000e+00 : f32
    %122 = vector.broadcast %cst_26 : f32 to vector<8x128xf32>
    %123 = arith.addf %122, %121 : vector<8x128xf32>
    %124 = arith.divf %122, %123 : vector<8x128xf32>
    %125 = arith.mulf %116, %71 : vector<8x128xf32>
    %126 = arith.mulf %110, %118 : vector<8x128xf32>
    %127 = arith.addf %125, %126 : vector<8x128xf32>
    %128 = math.tanh %127 : vector<8x128xf32>
    %129 = arith.mulf %124, %128 : vector<8x128xf32>
    %130 = vector.extract_strided_slice %13 {offsets = [16, 0], sizes = [8, 512], strides = [1, 1]} : vector<64x512xf32> to vector<8x512xf32>
    %cst_27 = arith.constant dense<0.000000e+00> : vector<8x512xf32>
    %131 = tpu.matmul %101, %15, %cst_27 {dimension_numbers = #tpu.dot_dimension_numbers<[1], [0], [0], [1], [0, 0, 1, 1], [], []>} : vector<8x128xf32>, vector<128x512xf32>, vector<8x512xf32> -> vector<8x512xf32>
    %132 = arith.addf %130, %131 : vector<8x512xf32>
    %133 = vector.extract_strided_slice %132 {offsets = [0, 0], sizes = [8, 128], strides = [1, 1]} : vector<8x512xf32> to vector<8x128xf32>
    %134 = arith.negf %133 : vector<8x128xf32>
    %135 = math.exp %134 : vector<8x128xf32>
    %cst_28 = arith.constant 1.000000e+00 : f32
    %136 = vector.broadcast %cst_28 : f32 to vector<8x128xf32>
    %137 = arith.addf %136, %135 : vector<8x128xf32>
    %138 = arith.divf %136, %137 : vector<8x128xf32>
    %139 = vector.extract_strided_slice %132 {offsets = [0, 128], sizes = [8, 128], strides = [1, 1]} : vector<8x512xf32> to vector<8x128xf32>
    %140 = arith.negf %139 : vector<8x128xf32>
    %141 = math.exp %140 : vector<8x128xf32>
    %cst_29 = arith.constant 1.000000e+00 : f32
    %142 = vector.broadcast %cst_29 : f32 to vector<8x128xf32>
    %143 = arith.addf %142, %141 : vector<8x128xf32>
    %144 = arith.divf %142, %143 : vector<8x128xf32>
    %145 = vector.extract_strided_slice %132 {offsets = [0, 256], sizes = [8, 128], strides = [1, 1]} : vector<8x512xf32> to vector<8x128xf32>
    %146 = math.tanh %145 : vector<8x128xf32>
    %147 = vector.extract_strided_slice %132 {offsets = [0, 384], sizes = [8, 128], strides = [1, 1]} : vector<8x512xf32> to vector<8x128xf32>
    %148 = arith.negf %147 : vector<8x128xf32>
    %149 = math.exp %148 : vector<8x128xf32>
    %cst_30 = arith.constant 1.000000e+00 : f32
    %150 = vector.broadcast %cst_30 : f32 to vector<8x128xf32>
    %151 = arith.addf %150, %149 : vector<8x128xf32>
    %152 = arith.divf %150, %151 : vector<8x128xf32>
    %153 = arith.mulf %144, %99 : vector<8x128xf32>
    %154 = arith.mulf %138, %146 : vector<8x128xf32>
    %155 = arith.addf %153, %154 : vector<8x128xf32>
    %156 = math.tanh %155 : vector<8x128xf32>
    %157 = arith.mulf %152, %156 : vector<8x128xf32>
    %158 = vector.extract_strided_slice %14 {offsets = [40, 0], sizes = [8, 512], strides = [1, 1]} : vector<64x512xf32> to vector<8x512xf32>
    %cst_31 = arith.constant dense<0.000000e+00> : vector<8x512xf32>
    %159 = tpu.matmul %129, %16, %cst_31 {dimension_numbers = #tpu.dot_dimension_numbers<[1], [0], [0], [1], [0, 0, 1, 1], [], []>} : vector<8x128xf32>, vector<128x512xf32>, vector<8x512xf32> -> vector<8x512xf32>
    %160 = arith.addf %158, %159 : vector<8x512xf32>
    %161 = vector.extract_strided_slice %160 {offsets = [0, 0], sizes = [8, 128], strides = [1, 1]} : vector<8x512xf32> to vector<8x128xf32>
    %162 = arith.negf %161 : vector<8x128xf32>
    %163 = math.exp %162 : vector<8x128xf32>
    %cst_32 = arith.constant 1.000000e+00 : f32
    %164 = vector.broadcast %cst_32 : f32 to vector<8x128xf32>
    %165 = arith.addf %164, %163 : vector<8x128xf32>
    %166 = arith.divf %164, %165 : vector<8x128xf32>
    %167 = vector.extract_strided_slice %160 {offsets = [0, 128], sizes = [8, 128], strides = [1, 1]} : vector<8x512xf32> to vector<8x128xf32>
    %168 = arith.negf %167 : vector<8x128xf32>
    %169 = math.exp %168 : vector<8x128xf32>
    %cst_33 = arith.constant 1.000000e+00 : f32
    %170 = vector.broadcast %cst_33 : f32 to vector<8x128xf32>
    %171 = arith.addf %170, %169 : vector<8x128xf32>
    %172 = arith.divf %170, %171 : vector<8x128xf32>
    %173 = vector.extract_strided_slice %160 {offsets = [0, 256], sizes = [8, 128], strides = [1, 1]} : vector<8x512xf32> to vector<8x128xf32>
    %174 = math.tanh %173 : vector<8x128xf32>
    %175 = vector.extract_strided_slice %160 {offsets = [0, 384], sizes = [8, 128], strides = [1, 1]} : vector<8x512xf32> to vector<8x128xf32>
    %176 = arith.negf %175 : vector<8x128xf32>
    %177 = math.exp %176 : vector<8x128xf32>
    %cst_34 = arith.constant 1.000000e+00 : f32
    %178 = vector.broadcast %cst_34 : f32 to vector<8x128xf32>
    %179 = arith.addf %178, %177 : vector<8x128xf32>
    %180 = arith.divf %178, %179 : vector<8x128xf32>
    %181 = arith.mulf %172, %127 : vector<8x128xf32>
    %182 = arith.mulf %166, %174 : vector<8x128xf32>
    %183 = arith.addf %181, %182 : vector<8x128xf32>
    %184 = math.tanh %183 : vector<8x128xf32>
    %185 = arith.mulf %180, %184 : vector<8x128xf32>
    %186 = vector.extract_strided_slice %13 {offsets = [24, 0], sizes = [8, 512], strides = [1, 1]} : vector<64x512xf32> to vector<8x512xf32>
    %cst_35 = arith.constant dense<0.000000e+00> : vector<8x512xf32>
    %187 = tpu.matmul %157, %15, %cst_35 {dimension_numbers = #tpu.dot_dimension_numbers<[1], [0], [0], [1], [0, 0, 1, 1], [], []>} : vector<8x128xf32>, vector<128x512xf32>, vector<8x512xf32> -> vector<8x512xf32>
    %188 = arith.addf %186, %187 : vector<8x512xf32>
    %189 = vector.extract_strided_slice %188 {offsets = [0, 0], sizes = [8, 128], strides = [1, 1]} : vector<8x512xf32> to vector<8x128xf32>
    %190 = arith.negf %189 : vector<8x128xf32>
    %191 = math.exp %190 : vector<8x128xf32>
    %cst_36 = arith.constant 1.000000e+00 : f32
    %192 = vector.broadcast %cst_36 : f32 to vector<8x128xf32>
    %193 = arith.addf %192, %191 : vector<8x128xf32>
    %194 = arith.divf %192, %193 : vector<8x128xf32>
    %195 = vector.extract_strided_slice %188 {offsets = [0, 128], sizes = [8, 128], strides = [1, 1]} : vector<8x512xf32> to vector<8x128xf32>
    %196 = arith.negf %195 : vector<8x128xf32>
    %197 = math.exp %196 : vector<8x128xf32>
    %cst_37 = arith.constant 1.000000e+00 : f32
    %198 = vector.broadcast %cst_37 : f32 to vector<8x128xf32>
    %199 = arith.addf %198, %197 : vector<8x128xf32>
    %200 = arith.divf %198, %199 : vector<8x128xf32>
    %201 = vector.extract_strided_slice %188 {offsets = [0, 256], sizes = [8, 128], strides = [1, 1]} : vector<8x512xf32> to vector<8x128xf32>
    %202 = math.tanh %201 : vector<8x128xf32>
    %203 = vector.extract_strided_slice %188 {offsets = [0, 384], sizes = [8, 128], strides = [1, 1]} : vector<8x512xf32> to vector<8x128xf32>
    %204 = arith.negf %203 : vector<8x128xf32>
    %205 = math.exp %204 : vector<8x128xf32>
    %cst_38 = arith.constant 1.000000e+00 : f32
    %206 = vector.broadcast %cst_38 : f32 to vector<8x128xf32>
    %207 = arith.addf %206, %205 : vector<8x128xf32>
    %208 = arith.divf %206, %207 : vector<8x128xf32>
    %209 = arith.mulf %200, %155 : vector<8x128xf32>
    %210 = arith.mulf %194, %202 : vector<8x128xf32>
    %211 = arith.addf %209, %210 : vector<8x128xf32>
    %212 = math.tanh %211 : vector<8x128xf32>
    %213 = arith.mulf %208, %212 : vector<8x128xf32>
    %214 = vector.extract_strided_slice %14 {offsets = [32, 0], sizes = [8, 512], strides = [1, 1]} : vector<64x512xf32> to vector<8x512xf32>
    %cst_39 = arith.constant dense<0.000000e+00> : vector<8x512xf32>
    %215 = tpu.matmul %185, %16, %cst_39 {dimension_numbers = #tpu.dot_dimension_numbers<[1], [0], [0], [1], [0, 0, 1, 1], [], []>} : vector<8x128xf32>, vector<128x512xf32>, vector<8x512xf32> -> vector<8x512xf32>
    %216 = arith.addf %214, %215 : vector<8x512xf32>
    %217 = vector.extract_strided_slice %216 {offsets = [0, 0], sizes = [8, 128], strides = [1, 1]} : vector<8x512xf32> to vector<8x128xf32>
    %218 = arith.negf %217 : vector<8x128xf32>
    %219 = math.exp %218 : vector<8x128xf32>
    %cst_40 = arith.constant 1.000000e+00 : f32
    %220 = vector.broadcast %cst_40 : f32 to vector<8x128xf32>
    %221 = arith.addf %220, %219 : vector<8x128xf32>
    %222 = arith.divf %220, %221 : vector<8x128xf32>
    %223 = vector.extract_strided_slice %216 {offsets = [0, 128], sizes = [8, 128], strides = [1, 1]} : vector<8x512xf32> to vector<8x128xf32>
    %224 = arith.negf %223 : vector<8x128xf32>
    %225 = math.exp %224 : vector<8x128xf32>
    %cst_41 = arith.constant 1.000000e+00 : f32
    %226 = vector.broadcast %cst_41 : f32 to vector<8x128xf32>
    %227 = arith.addf %226, %225 : vector<8x128xf32>
    %228 = arith.divf %226, %227 : vector<8x128xf32>
    %229 = vector.extract_strided_slice %216 {offsets = [0, 256], sizes = [8, 128], strides = [1, 1]} : vector<8x512xf32> to vector<8x128xf32>
    %230 = math.tanh %229 : vector<8x128xf32>
    %231 = vector.extract_strided_slice %216 {offsets = [0, 384], sizes = [8, 128], strides = [1, 1]} : vector<8x512xf32> to vector<8x128xf32>
    %232 = arith.negf %231 : vector<8x128xf32>
    %233 = math.exp %232 : vector<8x128xf32>
    %cst_42 = arith.constant 1.000000e+00 : f32
    %234 = vector.broadcast %cst_42 : f32 to vector<8x128xf32>
    %235 = arith.addf %234, %233 : vector<8x128xf32>
    %236 = arith.divf %234, %235 : vector<8x128xf32>
    %237 = arith.mulf %228, %183 : vector<8x128xf32>
    %238 = arith.mulf %222, %230 : vector<8x128xf32>
    %239 = arith.addf %237, %238 : vector<8x128xf32>
    %240 = math.tanh %239 : vector<8x128xf32>
    %241 = arith.mulf %236, %240 : vector<8x128xf32>
    %242 = vector.extract_strided_slice %13 {offsets = [32, 0], sizes = [8, 512], strides = [1, 1]} : vector<64x512xf32> to vector<8x512xf32>
    %cst_43 = arith.constant dense<0.000000e+00> : vector<8x512xf32>
    %243 = tpu.matmul %213, %15, %cst_43 {dimension_numbers = #tpu.dot_dimension_numbers<[1], [0], [0], [1], [0, 0, 1, 1], [], []>} : vector<8x128xf32>, vector<128x512xf32>, vector<8x512xf32> -> vector<8x512xf32>
    %244 = arith.addf %242, %243 : vector<8x512xf32>
    %245 = vector.extract_strided_slice %244 {offsets = [0, 0], sizes = [8, 128], strides = [1, 1]} : vector<8x512xf32> to vector<8x128xf32>
    %246 = arith.negf %245 : vector<8x128xf32>
    %247 = math.exp %246 : vector<8x128xf32>
    %cst_44 = arith.constant 1.000000e+00 : f32
    %248 = vector.broadcast %cst_44 : f32 to vector<8x128xf32>
    %249 = arith.addf %248, %247 : vector<8x128xf32>
    %250 = arith.divf %248, %249 : vector<8x128xf32>
    %251 = vector.extract_strided_slice %244 {offsets = [0, 128], sizes = [8, 128], strides = [1, 1]} : vector<8x512xf32> to vector<8x128xf32>
    %252 = arith.negf %251 : vector<8x128xf32>
    %253 = math.exp %252 : vector<8x128xf32>
    %cst_45 = arith.constant 1.000000e+00 : f32
    %254 = vector.broadcast %cst_45 : f32 to vector<8x128xf32>
    %255 = arith.addf %254, %253 : vector<8x128xf32>
    %256 = arith.divf %254, %255 : vector<8x128xf32>
    %257 = vector.extract_strided_slice %244 {offsets = [0, 256], sizes = [8, 128], strides = [1, 1]} : vector<8x512xf32> to vector<8x128xf32>
    %258 = math.tanh %257 : vector<8x128xf32>
    %259 = vector.extract_strided_slice %244 {offsets = [0, 384], sizes = [8, 128], strides = [1, 1]} : vector<8x512xf32> to vector<8x128xf32>
    %260 = arith.negf %259 : vector<8x128xf32>
    %261 = math.exp %260 : vector<8x128xf32>
    %cst_46 = arith.constant 1.000000e+00 : f32
    %262 = vector.broadcast %cst_46 : f32 to vector<8x128xf32>
    %263 = arith.addf %262, %261 : vector<8x128xf32>
    %264 = arith.divf %262, %263 : vector<8x128xf32>
    %265 = arith.mulf %256, %211 : vector<8x128xf32>
    %266 = arith.mulf %250, %258 : vector<8x128xf32>
    %267 = arith.addf %265, %266 : vector<8x128xf32>
    %268 = math.tanh %267 : vector<8x128xf32>
    %269 = arith.mulf %264, %268 : vector<8x128xf32>
    %270 = vector.extract_strided_slice %14 {offsets = [24, 0], sizes = [8, 512], strides = [1, 1]} : vector<64x512xf32> to vector<8x512xf32>
    %cst_47 = arith.constant dense<0.000000e+00> : vector<8x512xf32>
    %271 = tpu.matmul %241, %16, %cst_47 {dimension_numbers = #tpu.dot_dimension_numbers<[1], [0], [0], [1], [0, 0, 1, 1], [], []>} : vector<8x128xf32>, vector<128x512xf32>, vector<8x512xf32> -> vector<8x512xf32>
    %272 = arith.addf %270, %271 : vector<8x512xf32>
    %273 = vector.extract_strided_slice %272 {offsets = [0, 0], sizes = [8, 128], strides = [1, 1]} : vector<8x512xf32> to vector<8x128xf32>
    %274 = arith.negf %273 : vector<8x128xf32>
    %275 = math.exp %274 : vector<8x128xf32>
    %cst_48 = arith.constant 1.000000e+00 : f32
    %276 = vector.broadcast %cst_48 : f32 to vector<8x128xf32>
    %277 = arith.addf %276, %275 : vector<8x128xf32>
    %278 = arith.divf %276, %277 : vector<8x128xf32>
    %279 = vector.extract_strided_slice %272 {offsets = [0, 128], sizes = [8, 128], strides = [1, 1]} : vector<8x512xf32> to vector<8x128xf32>
    %280 = arith.negf %279 : vector<8x128xf32>
    %281 = math.exp %280 : vector<8x128xf32>
    %cst_49 = arith.constant 1.000000e+00 : f32
    %282 = vector.broadcast %cst_49 : f32 to vector<8x128xf32>
    %283 = arith.addf %282, %281 : vector<8x128xf32>
    %284 = arith.divf %282, %283 : vector<8x128xf32>
    %285 = vector.extract_strided_slice %272 {offsets = [0, 256], sizes = [8, 128], strides = [1, 1]} : vector<8x512xf32> to vector<8x128xf32>
    %286 = math.tanh %285 : vector<8x128xf32>
    %287 = vector.extract_strided_slice %272 {offsets = [0, 384], sizes = [8, 128], strides = [1, 1]} : vector<8x512xf32> to vector<8x128xf32>
    %288 = arith.negf %287 : vector<8x128xf32>
    %289 = math.exp %288 : vector<8x128xf32>
    %cst_50 = arith.constant 1.000000e+00 : f32
    %290 = vector.broadcast %cst_50 : f32 to vector<8x128xf32>
    %291 = arith.addf %290, %289 : vector<8x128xf32>
    %292 = arith.divf %290, %291 : vector<8x128xf32>
    %293 = arith.mulf %284, %239 : vector<8x128xf32>
    %294 = arith.mulf %278, %286 : vector<8x128xf32>
    %295 = arith.addf %293, %294 : vector<8x128xf32>
    %296 = math.tanh %295 : vector<8x128xf32>
    %297 = arith.mulf %292, %296 : vector<8x128xf32>
    %298 = vector.extract_strided_slice %13 {offsets = [40, 0], sizes = [8, 512], strides = [1, 1]} : vector<64x512xf32> to vector<8x512xf32>
    %cst_51 = arith.constant dense<0.000000e+00> : vector<8x512xf32>
    %299 = tpu.matmul %269, %15, %cst_51 {dimension_numbers = #tpu.dot_dimension_numbers<[1], [0], [0], [1], [0, 0, 1, 1], [], []>} : vector<8x128xf32>, vector<128x512xf32>, vector<8x512xf32> -> vector<8x512xf32>
    %300 = arith.addf %298, %299 : vector<8x512xf32>
    %301 = vector.extract_strided_slice %300 {offsets = [0, 0], sizes = [8, 128], strides = [1, 1]} : vector<8x512xf32> to vector<8x128xf32>
    %302 = arith.negf %301 : vector<8x128xf32>
    %303 = math.exp %302 : vector<8x128xf32>
    %cst_52 = arith.constant 1.000000e+00 : f32
    %304 = vector.broadcast %cst_52 : f32 to vector<8x128xf32>
    %305 = arith.addf %304, %303 : vector<8x128xf32>
    %306 = arith.divf %304, %305 : vector<8x128xf32>
    %307 = vector.extract_strided_slice %300 {offsets = [0, 128], sizes = [8, 128], strides = [1, 1]} : vector<8x512xf32> to vector<8x128xf32>
    %308 = arith.negf %307 : vector<8x128xf32>
    %309 = math.exp %308 : vector<8x128xf32>
    %cst_53 = arith.constant 1.000000e+00 : f32
    %310 = vector.broadcast %cst_53 : f32 to vector<8x128xf32>
    %311 = arith.addf %310, %309 : vector<8x128xf32>
    %312 = arith.divf %310, %311 : vector<8x128xf32>
    %313 = vector.extract_strided_slice %300 {offsets = [0, 256], sizes = [8, 128], strides = [1, 1]} : vector<8x512xf32> to vector<8x128xf32>
    %314 = math.tanh %313 : vector<8x128xf32>
    %315 = vector.extract_strided_slice %300 {offsets = [0, 384], sizes = [8, 128], strides = [1, 1]} : vector<8x512xf32> to vector<8x128xf32>
    %316 = arith.negf %315 : vector<8x128xf32>
    %317 = math.exp %316 : vector<8x128xf32>
    %cst_54 = arith.constant 1.000000e+00 : f32
    %318 = vector.broadcast %cst_54 : f32 to vector<8x128xf32>
    %319 = arith.addf %318, %317 : vector<8x128xf32>
    %320 = arith.divf %318, %319 : vector<8x128xf32>
    %321 = arith.mulf %312, %267 : vector<8x128xf32>
    %322 = arith.mulf %306, %314 : vector<8x128xf32>
    %323 = arith.addf %321, %322 : vector<8x128xf32>
    %324 = math.tanh %323 : vector<8x128xf32>
    %325 = arith.mulf %320, %324 : vector<8x128xf32>
    %326 = vector.extract_strided_slice %14 {offsets = [16, 0], sizes = [8, 512], strides = [1, 1]} : vector<64x512xf32> to vector<8x512xf32>
    %cst_55 = arith.constant dense<0.000000e+00> : vector<8x512xf32>
    %327 = tpu.matmul %297, %16, %cst_55 {dimension_numbers = #tpu.dot_dimension_numbers<[1], [0], [0], [1], [0, 0, 1, 1], [], []>} : vector<8x128xf32>, vector<128x512xf32>, vector<8x512xf32> -> vector<8x512xf32>
    %328 = arith.addf %326, %327 : vector<8x512xf32>
    %329 = vector.extract_strided_slice %328 {offsets = [0, 0], sizes = [8, 128], strides = [1, 1]} : vector<8x512xf32> to vector<8x128xf32>
    %330 = arith.negf %329 : vector<8x128xf32>
    %331 = math.exp %330 : vector<8x128xf32>
    %cst_56 = arith.constant 1.000000e+00 : f32
    %332 = vector.broadcast %cst_56 : f32 to vector<8x128xf32>
    %333 = arith.addf %332, %331 : vector<8x128xf32>
    %334 = arith.divf %332, %333 : vector<8x128xf32>
    %335 = vector.extract_strided_slice %328 {offsets = [0, 128], sizes = [8, 128], strides = [1, 1]} : vector<8x512xf32> to vector<8x128xf32>
    %336 = arith.negf %335 : vector<8x128xf32>
    %337 = math.exp %336 : vector<8x128xf32>
    %cst_57 = arith.constant 1.000000e+00 : f32
    %338 = vector.broadcast %cst_57 : f32 to vector<8x128xf32>
    %339 = arith.addf %338, %337 : vector<8x128xf32>
    %340 = arith.divf %338, %339 : vector<8x128xf32>
    %341 = vector.extract_strided_slice %328 {offsets = [0, 256], sizes = [8, 128], strides = [1, 1]} : vector<8x512xf32> to vector<8x128xf32>
    %342 = math.tanh %341 : vector<8x128xf32>
    %343 = vector.extract_strided_slice %328 {offsets = [0, 384], sizes = [8, 128], strides = [1, 1]} : vector<8x512xf32> to vector<8x128xf32>
    %344 = arith.negf %343 : vector<8x128xf32>
    %345 = math.exp %344 : vector<8x128xf32>
    %cst_58 = arith.constant 1.000000e+00 : f32
    %346 = vector.broadcast %cst_58 : f32 to vector<8x128xf32>
    %347 = arith.addf %346, %345 : vector<8x128xf32>
    %348 = arith.divf %346, %347 : vector<8x128xf32>
    %349 = arith.mulf %340, %295 : vector<8x128xf32>
    %350 = arith.mulf %334, %342 : vector<8x128xf32>
    %351 = arith.addf %349, %350 : vector<8x128xf32>
    %352 = math.tanh %351 : vector<8x128xf32>
    %353 = arith.mulf %348, %352 : vector<8x128xf32>
    %354 = vector.extract_strided_slice %13 {offsets = [48, 0], sizes = [8, 512], strides = [1, 1]} : vector<64x512xf32> to vector<8x512xf32>
    %cst_59 = arith.constant dense<0.000000e+00> : vector<8x512xf32>
    %355 = tpu.matmul %325, %15, %cst_59 {dimension_numbers = #tpu.dot_dimension_numbers<[1], [0], [0], [1], [0, 0, 1, 1], [], []>} : vector<8x128xf32>, vector<128x512xf32>, vector<8x512xf32> -> vector<8x512xf32>
    %356 = arith.addf %354, %355 : vector<8x512xf32>
    %357 = vector.extract_strided_slice %356 {offsets = [0, 0], sizes = [8, 128], strides = [1, 1]} : vector<8x512xf32> to vector<8x128xf32>
    %358 = arith.negf %357 : vector<8x128xf32>
    %359 = math.exp %358 : vector<8x128xf32>
    %cst_60 = arith.constant 1.000000e+00 : f32
    %360 = vector.broadcast %cst_60 : f32 to vector<8x128xf32>
    %361 = arith.addf %360, %359 : vector<8x128xf32>
    %362 = arith.divf %360, %361 : vector<8x128xf32>
    %363 = vector.extract_strided_slice %356 {offsets = [0, 128], sizes = [8, 128], strides = [1, 1]} : vector<8x512xf32> to vector<8x128xf32>
    %364 = arith.negf %363 : vector<8x128xf32>
    %365 = math.exp %364 : vector<8x128xf32>
    %cst_61 = arith.constant 1.000000e+00 : f32
    %366 = vector.broadcast %cst_61 : f32 to vector<8x128xf32>
    %367 = arith.addf %366, %365 : vector<8x128xf32>
    %368 = arith.divf %366, %367 : vector<8x128xf32>
    %369 = vector.extract_strided_slice %356 {offsets = [0, 256], sizes = [8, 128], strides = [1, 1]} : vector<8x512xf32> to vector<8x128xf32>
    %370 = math.tanh %369 : vector<8x128xf32>
    %371 = vector.extract_strided_slice %356 {offsets = [0, 384], sizes = [8, 128], strides = [1, 1]} : vector<8x512xf32> to vector<8x128xf32>
    %372 = arith.negf %371 : vector<8x128xf32>
    %373 = math.exp %372 : vector<8x128xf32>
    %cst_62 = arith.constant 1.000000e+00 : f32
    %374 = vector.broadcast %cst_62 : f32 to vector<8x128xf32>
    %375 = arith.addf %374, %373 : vector<8x128xf32>
    %376 = arith.divf %374, %375 : vector<8x128xf32>
    %377 = arith.mulf %368, %323 : vector<8x128xf32>
    %378 = arith.mulf %362, %370 : vector<8x128xf32>
    %379 = arith.addf %377, %378 : vector<8x128xf32>
    %380 = math.tanh %379 : vector<8x128xf32>
    %381 = arith.mulf %376, %380 : vector<8x128xf32>
    %382 = vector.extract_strided_slice %14 {offsets = [8, 0], sizes = [8, 512], strides = [1, 1]} : vector<64x512xf32> to vector<8x512xf32>
    %cst_63 = arith.constant dense<0.000000e+00> : vector<8x512xf32>
    %383 = tpu.matmul %353, %16, %cst_63 {dimension_numbers = #tpu.dot_dimension_numbers<[1], [0], [0], [1], [0, 0, 1, 1], [], []>} : vector<8x128xf32>, vector<128x512xf32>, vector<8x512xf32> -> vector<8x512xf32>
    %384 = arith.addf %382, %383 : vector<8x512xf32>
    %385 = vector.extract_strided_slice %384 {offsets = [0, 0], sizes = [8, 128], strides = [1, 1]} : vector<8x512xf32> to vector<8x128xf32>
    %386 = arith.negf %385 : vector<8x128xf32>
    %387 = math.exp %386 : vector<8x128xf32>
    %cst_64 = arith.constant 1.000000e+00 : f32
    %388 = vector.broadcast %cst_64 : f32 to vector<8x128xf32>
    %389 = arith.addf %388, %387 : vector<8x128xf32>
    %390 = arith.divf %388, %389 : vector<8x128xf32>
    %391 = vector.extract_strided_slice %384 {offsets = [0, 128], sizes = [8, 128], strides = [1, 1]} : vector<8x512xf32> to vector<8x128xf32>
    %392 = arith.negf %391 : vector<8x128xf32>
    %393 = math.exp %392 : vector<8x128xf32>
    %cst_65 = arith.constant 1.000000e+00 : f32
    %394 = vector.broadcast %cst_65 : f32 to vector<8x128xf32>
    %395 = arith.addf %394, %393 : vector<8x128xf32>
    %396 = arith.divf %394, %395 : vector<8x128xf32>
    %397 = vector.extract_strided_slice %384 {offsets = [0, 256], sizes = [8, 128], strides = [1, 1]} : vector<8x512xf32> to vector<8x128xf32>
    %398 = math.tanh %397 : vector<8x128xf32>
    %399 = vector.extract_strided_slice %384 {offsets = [0, 384], sizes = [8, 128], strides = [1, 1]} : vector<8x512xf32> to vector<8x128xf32>
    %400 = arith.negf %399 : vector<8x128xf32>
    %401 = math.exp %400 : vector<8x128xf32>
    %cst_66 = arith.constant 1.000000e+00 : f32
    %402 = vector.broadcast %cst_66 : f32 to vector<8x128xf32>
    %403 = arith.addf %402, %401 : vector<8x128xf32>
    %404 = arith.divf %402, %403 : vector<8x128xf32>
    %405 = arith.mulf %396, %351 : vector<8x128xf32>
    %406 = arith.mulf %390, %398 : vector<8x128xf32>
    %407 = arith.addf %405, %406 : vector<8x128xf32>
    %408 = math.tanh %407 : vector<8x128xf32>
    %409 = arith.mulf %404, %408 : vector<8x128xf32>
    %410 = vector.extract_strided_slice %13 {offsets = [56, 0], sizes = [8, 512], strides = [1, 1]} : vector<64x512xf32> to vector<8x512xf32>
    %cst_67 = arith.constant dense<0.000000e+00> : vector<8x512xf32>
    %411 = tpu.matmul %381, %15, %cst_67 {dimension_numbers = #tpu.dot_dimension_numbers<[1], [0], [0], [1], [0, 0, 1, 1], [], []>} : vector<8x128xf32>, vector<128x512xf32>, vector<8x512xf32> -> vector<8x512xf32>
    %412 = arith.addf %410, %411 : vector<8x512xf32>
    %413 = vector.extract_strided_slice %412 {offsets = [0, 0], sizes = [8, 128], strides = [1, 1]} : vector<8x512xf32> to vector<8x128xf32>
    %414 = arith.negf %413 : vector<8x128xf32>
    %415 = math.exp %414 : vector<8x128xf32>
    %cst_68 = arith.constant 1.000000e+00 : f32
    %416 = vector.broadcast %cst_68 : f32 to vector<8x128xf32>
    %417 = arith.addf %416, %415 : vector<8x128xf32>
    %418 = arith.divf %416, %417 : vector<8x128xf32>
    %419 = vector.extract_strided_slice %412 {offsets = [0, 128], sizes = [8, 128], strides = [1, 1]} : vector<8x512xf32> to vector<8x128xf32>
    %420 = arith.negf %419 : vector<8x128xf32>
    %421 = math.exp %420 : vector<8x128xf32>
    %cst_69 = arith.constant 1.000000e+00 : f32
    %422 = vector.broadcast %cst_69 : f32 to vector<8x128xf32>
    %423 = arith.addf %422, %421 : vector<8x128xf32>
    %424 = arith.divf %422, %423 : vector<8x128xf32>
    %425 = vector.extract_strided_slice %412 {offsets = [0, 256], sizes = [8, 128], strides = [1, 1]} : vector<8x512xf32> to vector<8x128xf32>
    %426 = math.tanh %425 : vector<8x128xf32>
    %427 = vector.extract_strided_slice %412 {offsets = [0, 384], sizes = [8, 128], strides = [1, 1]} : vector<8x512xf32> to vector<8x128xf32>
    %428 = arith.negf %427 : vector<8x128xf32>
    %429 = math.exp %428 : vector<8x128xf32>
    %cst_70 = arith.constant 1.000000e+00 : f32
    %430 = vector.broadcast %cst_70 : f32 to vector<8x128xf32>
    %431 = arith.addf %430, %429 : vector<8x128xf32>
    %432 = arith.divf %430, %431 : vector<8x128xf32>
    %433 = arith.mulf %424, %379 : vector<8x128xf32>
    %434 = arith.mulf %418, %426 : vector<8x128xf32>
    %435 = arith.addf %433, %434 : vector<8x128xf32>
    %436 = math.tanh %435 : vector<8x128xf32>
    %437 = arith.mulf %432, %436 : vector<8x128xf32>
    %438 = vector.extract_strided_slice %14 {offsets = [0, 0], sizes = [8, 512], strides = [1, 1]} : vector<64x512xf32> to vector<8x512xf32>
    %cst_71 = arith.constant dense<0.000000e+00> : vector<8x512xf32>
    %439 = tpu.matmul %409, %16, %cst_71 {dimension_numbers = #tpu.dot_dimension_numbers<[1], [0], [0], [1], [0, 0, 1, 1], [], []>} : vector<8x128xf32>, vector<128x512xf32>, vector<8x512xf32> -> vector<8x512xf32>
    %440 = arith.addf %438, %439 : vector<8x512xf32>
    %441 = vector.extract_strided_slice %440 {offsets = [0, 0], sizes = [8, 128], strides = [1, 1]} : vector<8x512xf32> to vector<8x128xf32>
    %442 = arith.negf %441 : vector<8x128xf32>
    %443 = math.exp %442 : vector<8x128xf32>
    %cst_72 = arith.constant 1.000000e+00 : f32
    %444 = vector.broadcast %cst_72 : f32 to vector<8x128xf32>
    %445 = arith.addf %444, %443 : vector<8x128xf32>
    %446 = arith.divf %444, %445 : vector<8x128xf32>
    %447 = vector.extract_strided_slice %440 {offsets = [0, 128], sizes = [8, 128], strides = [1, 1]} : vector<8x512xf32> to vector<8x128xf32>
    %448 = arith.negf %447 : vector<8x128xf32>
    %449 = math.exp %448 : vector<8x128xf32>
    %cst_73 = arith.constant 1.000000e+00 : f32
    %450 = vector.broadcast %cst_73 : f32 to vector<8x128xf32>
    %451 = arith.addf %450, %449 : vector<8x128xf32>
    %452 = arith.divf %450, %451 : vector<8x128xf32>
    %453 = vector.extract_strided_slice %440 {offsets = [0, 256], sizes = [8, 128], strides = [1, 1]} : vector<8x512xf32> to vector<8x128xf32>
    %454 = math.tanh %453 : vector<8x128xf32>
    %455 = vector.extract_strided_slice %440 {offsets = [0, 384], sizes = [8, 128], strides = [1, 1]} : vector<8x512xf32> to vector<8x128xf32>
    %456 = arith.negf %455 : vector<8x128xf32>
    %457 = math.exp %456 : vector<8x128xf32>
    %cst_74 = arith.constant 1.000000e+00 : f32
    %458 = vector.broadcast %cst_74 : f32 to vector<8x128xf32>
    %459 = arith.addf %458, %457 : vector<8x128xf32>
    %460 = arith.divf %458, %459 : vector<8x128xf32>
    %461 = arith.mulf %452, %407 : vector<8x128xf32>
    %462 = arith.mulf %446, %454 : vector<8x128xf32>
    %463 = arith.addf %461, %462 : vector<8x128xf32>
    %464 = math.tanh %463 : vector<8x128xf32>
    %465 = arith.mulf %460, %464 : vector<8x128xf32>
    %466 = vector.extract_strided_slice %437 {offsets = [0, 0], sizes = [1, 128], strides = [1, 1]} : vector<8x128xf32> to vector<1x128xf32>
    %467 = vector.extract_strided_slice %437 {offsets = [1, 0], sizes = [1, 128], strides = [1, 1]} : vector<8x128xf32> to vector<1x128xf32>
    %468 = tpu.concatenate %466, %467 in 1 : vector<1x128xf32>, vector<1x128xf32> -> vector<1x256xf32>
    %469 = vector.extract_strided_slice %465 {offsets = [0, 0], sizes = [1, 128], strides = [1, 1]} : vector<8x128xf32> to vector<1x128xf32>
    %470 = vector.extract_strided_slice %465 {offsets = [1, 0], sizes = [1, 128], strides = [1, 1]} : vector<8x128xf32> to vector<1x128xf32>
    %471 = tpu.concatenate %469, %470 in 1 : vector<1x128xf32>, vector<1x128xf32> -> vector<1x256xf32>
    %cst_75 = arith.constant 0.000000e+00 : f32
    %472 = vector.broadcast %cst_75 : f32 to vector<6x256xf32>
    %473 = tpu.concatenate %468, %471, %472 in 0 : vector<1x256xf32>, vector<1x256xf32>, vector<6x256xf32> -> vector<8x256xf32>
    %c0_76 = arith.constant 0 : index
    %c0_77 = arith.constant 0 : index
    %474 = vector.load %arg4[%c0_76, %c0_77] : memref<257x128xf32, #tpu.memory_space<vmem>>, vector<256x128xf32>
    %cst_78 = arith.constant dense<0.000000e+00> : vector<8x128xf32>
    %475 = tpu.matmul %473, %474, %cst_78 {dimension_numbers = #tpu.dot_dimension_numbers<[1], [0], [0], [1], [0, 0, 1, 1], [], []>} : vector<8x256xf32>, vector<256x128xf32>, vector<8x128xf32> -> vector<8x128xf32>
    %c256 = arith.constant 256 : index
    %c0_79 = arith.constant 0 : index
    %476 = vector.load %arg4[%c256, %c0_79] : memref<257x128xf32, #tpu.memory_space<vmem>>, vector<1x128xf32>
    %477 = vector.broadcast %476 : vector<1x128xf32> to vector<8x128xf32>
    %478 = arith.addf %475, %477 : vector<8x128xf32>
    %c0_80 = arith.constant 0 : index
    %c0_81 = arith.constant 0 : index
    %479 = vector.load %arg5[%c0_80, %c0_81] : memref<8x128xf32, #tpu.memory_space<vmem>>, vector<8x128xf32>
    tpu.vector_store %arg5[%c0_80, %c0_81], %478 {strides = array<i32>} : memref<8x128xf32, #tpu.memory_space<vmem>>, vector<8x128xf32>,
    return
  }
}

</mosaic_0001>

<llo_original>
// kernel: _lambda_.1
$region0: #{_lambda_.1}
  #allocation0 [shape = 'u32[]', space=smem, size = 0x4, offset = 0x4, fixed_abs, tag = 'smem constant byte address 0x4 - core index']
  #allocation1 [shape = 'u32[144,128]{1,0:T(1,128)}', space=vmem, size = 0x12000, scoped, tag = 'internal scratch']
  %s0 = inlined_call_operand.vmem [shape: s32[64,1], index: 0, kind: input, shape index: {}]
  %s1 = inlined_call_operand.hbm [shape: f32[100,32], index: 1, kind: input, shape index: {}]
  %s2 = inlined_call_operand.vmem [shape: f32[33,1024], index: 2, kind: input, shape index: {}]
  %s3 = inlined_call_operand.vmem [shape: f32[128,1024], index: 3, kind: input, shape index: {}]
  %s4 = inlined_call_operand.vmem [shape: f32[257,128], index: 4, kind: input, shape index: {}]
  %s5 = inlined_call_operand.vmem [shape: f32[8,128], index: 5, kind: output, shape index: {}]
  %s6 = sld [smem:[#allocation0]]
  $region34: #{_lambda_.1} parent=0
    _
  %s8 = ssub.s32 1, %s6
  %s9 = scalar_select 0, %s8, %s6
  $region1: #{_lambda_.1} parent=0
    #allocation2 [shape = 'u8[53248]{0}', space=vmem, size = 0xd000, scoped, tag = 'input window, operand 1, single buffered']
    #allocation3 [shape = 's32[1]{0}', space=sflag, size = 0x4, scoped, tag = 'scoped memory for _lambda_.1']
    %10 = vsyncpa [#allocation3], 0
    // Predicated region
    $region2: #{_lambda_.1} parent=1 // pred_check
      _
    $region3: #{_lambda_.1} parent=1 // pred_check_branch
      %12 = sbr.rel (0) target = $region5
    $region4: #{_lambda_.1} parent=1 // pred_region
      _
    $region5: #{_lambda_.1} parent=1 // pred_fallthru
      _
    // Predicated region
    $region6: #{_lambda_.1} parent=1 // pred_check
      _
    $region7: #{_lambda_.1} parent=1 // pred_check_branch
      %14 = sbr.rel (0) target = $region9
    $region8: #{_lambda_.1} parent=1 // pred_region
      %s16 = ssub.s32 1664, 1664
      %17 = vsyncadd [#allocation3], %s16
      %s18 = sshll.u32 [#allocation2], 4
      %s19 = int_to_ptr.vmem [resolvable:$true] %s18
      %24 = dma.hbm_to_vmem [thread:$0]  %s1, 1664, %s19, [#allocation3], 128, 128, 8
    $region9: #{_lambda_.1} parent=1 // pred_fallthru
      _
    // Predicated region
    $region10: #{_lambda_.1} parent=1 // pred_check
      _
    $region11: #{_lambda_.1} parent=1 // pred_check_branch
      %26 = sbr.rel (0) target = $region13
    $region12: #{_lambda_.1} parent=1 // pred_region
      _
    $region13: #{_lambda_.1} parent=1 // pred_fallthru
      _
    // Predicated region
    $region14: #{_lambda_.1} parent=1 // pred_check
      _
    $region15: #{_lambda_.1} parent=1 // pred_check_branch
      %28 = sbr.rel (0) target = $region17
    $region16: #{_lambda_.1} parent=1 // pred_region
      _
    $region17: #{_lambda_.1} parent=1 // pred_fallthru
      _
    // Predicated region
    $region18: #{_lambda_.1} parent=1 // pred_check
      _
    $region19: #{_lambda_.1} parent=1 // pred_check_branch
      %30 = sbr.rel (0) target = $region21
    $region20: #{_lambda_.1} parent=1 // pred_region
      _
    $region21: #{_lambda_.1} parent=1 // pred_fallthru
      _
    // Predicated region
    $region22: #{_lambda_.1} parent=1 // pred_check
      _
    $region23: #{_lambda_.1} parent=1 // pred_check_branch
      %32 = sbr.rel (0) target = $region25
    $region24: #{_lambda_.1} parent=1 // pred_region
      %33 = dma.done [#allocation3], 1664
    $region25: #{_lambda_.1} parent=1 // pred_fallthru
      _
    %v34 = vld [vmem:[%s0] sm:$0xff]
    %v35 = vld [vmem:[%s0 + $0x8] sm:$0xff]
    %v36 = vld [vmem:[%s0 + $0x10] sm:$0xff]
    %v37 = vld [vmem:[%s0 + $0x18] sm:$0xff]
    %v38 = vld [vmem:[%s0 + $0x20] sm:$0xff]
    %v39 = vld [vmem:[%s0 + $0x28] sm:$0xff]
    %v40 = vld [vmem:[%s0 + $0x30] sm:$0xff]
    %v41 = vld [vmem:[%s0 + $0x38] sm:$0xff]
    %v42 = vlaneseq
    %v43 = vand.u32 %v42, 127
    %44 = vset.pattern.permute.xlu0 0
    %45 = vperm.xlu0 %44, %v34
    %v46 = vpop.permute.xlu0 %45
    %47 = vset.pattern.permute.xlu0 0
    %48 = vperm.xlu0 %47, %v35
    %v49 = vpop.permute.xlu0 %48
    %50 = vset.pattern.permute.xlu0 0
    %51 = vperm.xlu0 %50, %v36
    %v52 = vpop.permute.xlu0 %51
    %53 = vset.pattern.permute.xlu0 0
    %54 = vperm.xlu0 %53, %v37
    %v55 = vpop.permute.xlu0 %54
    %56 = vset.pattern.permute.xlu0 0
    %57 = vperm.xlu0 %56, %v38
    %v58 = vpop.permute.xlu0 %57
    %59 = vset.pattern.permute.xlu0 0
    %60 = vperm.xlu0 %59, %v39
    %v61 = vpop.permute.xlu0 %60
    %62 = vset.pattern.permute.xlu0 0
    %63 = vperm.xlu0 %62, %v40
    %v64 = vpop.permute.xlu0 %63
    %65 = vset.pattern.permute.xlu0 0
    %66 = vperm.xlu0 %65, %v41
    %v67 = vpop.permute.xlu0 %66
    %vm68 = vcmp.eq.s32.totalorder %v46, %v43
    %vm69 = vcmp.eq.s32.totalorder %v49, %v43
    %vm70 = vcmp.eq.s32.totalorder %v52, %v43
    %vm71 = vcmp.eq.s32.totalorder %v55, %v43
    %vm72 = vcmp.eq.s32.totalorder %v58, %v43
    %vm73 = vcmp.eq.s32.totalorder %v61, %v43
    %vm74 = vcmp.eq.s32.totalorder %v64, %v43
    %vm75 = vcmp.eq.s32.totalorder %v67, %v43
    %v76 = vsel %vm68, 1, 0
    %v77 = vsel %vm69, 1, 0
    %v78 = vsel %vm70, 1, 0
    %v79 = vsel %vm71, 1, 0
    %v80 = vsel %vm72, 1, 0
    %v81 = vsel %vm73, 1, 0
    %v82 = vsel %vm74, 1, 0
    %v83 = vsel %vm75, 1, 0
    %v84 = vcvt.s32.f32 %v76
    %v85 = vcvt.s32.f32 %v77
    %v86 = vcvt.s32.f32 %v78
    %v87 = vcvt.s32.f32 %v79
    %v88 = vcvt.s32.f32 %v80
    %v89 = vcvt.s32.f32 %v81
    %v90 = vcvt.s32.f32 %v82
    %v91 = vcvt.s32.f32 %v83
    %v92 = vld [vmem:[#allocation2] sm:$0xff]
    %v93 = vld [vmem:[#allocation2 + $0x8] sm:$0xff]
    %v94 = vld [vmem:[#allocation2 + $0x10] sm:$0xff]
    %v95 = vld [vmem:[#allocation2 + $0x18] sm:$0xff]
    %v96 = vld [vmem:[#allocation2 + $0x20] sm:$0xff]
    %v97 = vld [vmem:[#allocation2 + $0x28] sm:$0xff]
    %v98 = vld [vmem:[#allocation2 + $0x30] sm:$0xff]
    %v99 = vld [vmem:[#allocation2 + $0x38] sm:$0xff]
    %v100 = vld [vmem:[#allocation2 + $0x40] sm:$0xff]
    %v101 = vld [vmem:[#allocation2 + $0x48] sm:$0xff]
    %v102 = vld [vmem:[#allocation2 + $0x50] sm:$0xff]
    %v103 = vld [vmem:[#allocation2 + $0x58] sm:$0xff]
    %v104 = vld [vmem:[#allocation2 + $0x60] sm:$0xf]
    %vm105 = vcmask 818176
    %v107 = vsel %vm105, %v84, 0
    %v110 = vsel %vm105, %v85, 0
    %v113 = vsel %vm105, %v86, 0
    %v116 = vsel %vm105, %v87, 0
    %v119 = vsel %vm105, %v88, 0
    %v122 = vsel %vm105, %v89, 0
    %v125 = vsel %vm105, %v90, 0
    %v128 = vsel %vm105, %v91, 0
    %vm130 = vcmask 1043456
    %v132 = vsel %vm130, %v104, 0
    %134 = vmatprep.subr.mxu0 0.0
    %135 = vmatpush1.msra.mxu0 %v92
    %136 = vmatprep.subr.mxu0 0.0
    %137 = vmatpush1.msra.mxu0 %v93
    %138 = vmatprep.subr.mxu0 0.0
    %139 = vmatpush1.msra.mxu0 %v94
    %140 = vmatprep.subr.mxu0 0.0
    %141 = vmatpush1.msra.mxu0 %v95
    %142 = vmatprep.subr.mxu0 0.0
    %143 = vmatpush1.msra.mxu0 %v96
    %144 = vmatprep.subr.mxu0 0.0
    %145 = vmatpush1.msra.mxu0 %v97
    %146 = vmatprep.subr.mxu0 0.0
    %147 = vmatpush1.msra.mxu0 %v98
    %148 = vmatprep.subr.mxu0 0.0
    %149 = vmatpush1.msra.mxu0 %v99
    %150 = vmatprep.subr.mxu0 0.0
    %151 = vmatpush1.msra.mxu0 %v100
    %152 = vmatprep.subr.mxu0 0.0
    %153 = vmatpush1.msra.mxu0 %v101
    %154 = vmatprep.subr.mxu0 0.0
    %155 = vmatpush1.msra.mxu0 %v102
    %156 = vmatprep.subr.mxu0 0.0
    %157 = vmatpush1.msra.mxu0 %v103
    %158 = vmatprep.subr.mxu0 0.0
    %159 = vmatpush1.msra.mxu0 %v132
    %160 = vmatprep.subr.mxu0 0.0
    %161 = vmatpush1.msra.mxu0 0.0
    %162 = vmatprep.subr.mxu0 0.0
    %163 = vmatpush1.msra.mxu0 0.0
    %164 = vmatprep.subr.mxu0 0.0
    %165 = vmatpush1.msra.mxu0 0.0
    %166 = vmatprep.subr.mxu0 0.0
    %167 = vmatpush1.msra.mxu0 0.0
    %168 = vmatprep.subr.mxu0 0.0
    %169 = vmatpush1.msra.mxu0 0.0
    %170 = vmatprep.subr.mxu0 0.0
    %171 = vmatpush1.msra.mxu0 0.0
    %172 = vmatprep.subr.mxu0 0.0
    %173 = vmatpush1.msra.mxu0 0.0
    %174 = vmatprep.subr.mxu0 0.0
    %175 = vmatpush1.msra.mxu0 0.0
    %176 = vmatprep.subr.mxu0 0.0
    %177 = vmatpush1.msra.mxu0 0.0
    %178 = vmatprep.subr.mxu0 0.0
    %179 = vmatpush1.msra.mxu0 0.0
    %180 = vmatprep.subr.mxu0 0.0
    %181 = vmatpush1.msra.mxu0 0.0
    %182 = vmatprep.subr.mxu0 0.0
    %183 = vmatpush1.msra.mxu0 0.0
    %184 = vmatprep.subr.mxu0 0.0
    %185 = vmatpush1.msra.mxu0 0.0
    %186 = vmatprep.subr.mxu0 0.0
    %187 = vmatpush1.msra.mxu0 0.0
    %188 = vmatprep.subr.mxu0 0.0
    %189 = vmatpush1.msra.mxu0 0.0
    %190 = vmatprep.subr.mxu0 0.0
    %191 = vmatpush1.msra.mxu0 0.0
    %192 = vmatprep.subr.mxu0 0.0
    %193 = vmatpush1.msra.mxu0 0.0
    %194 = vmatprep.subr.mxu0 0.0
    %195 = vmatpush1.msra.mxu0 0.0
    %196 = vmatprep.subr.mxu0 0.0
    %197 = vmatpush1.msra.mxu0 0.0
    %198 = vmatprep.mubr.f32.mxu0 0.0
    %199 = vmatmul.mubr.f32.gmra.mrb[0].mxu0 %v107
    %v200 = vpop.f32.mrb[0].mxu0
    %v201 = vadd.f32 0.0, %v200
    %v202 = vpop.f32.mrb[0].mxu0
    %203 = vmatprep.mubr.f32.mxu0 0.0
    %204 = vmatmul.mubr.f32.gmra.mrb[0].mxu0 %v110
    %v205 = vpop.f32.mrb[0].mxu0
    %v206 = vadd.f32 0.0, %v205
    %v207 = vpop.f32.mrb[0].mxu0
    %208 = vmatprep.mubr.f32.mxu0 0.0
    %209 = vmatmul.mubr.f32.gmra.mrb[0].mxu0 %v113
    %v210 = vpop.f32.mrb[0].mxu0
    %v211 = vadd.f32 0.0, %v210
    %v212 = vpop.f32.mrb[0].mxu0
    %213 = vmatprep.mubr.f32.mxu0 0.0
    %214 = vmatmul.mubr.f32.gmra.mrb[0].mxu0 %v116
    %v215 = vpop.f32.mrb[0].mxu0
    %v216 = vadd.f32 0.0, %v215
    %v217 = vpop.f32.mrb[0].mxu0
    %218 = vmatprep.mubr.f32.mxu0 0.0
    %219 = vmatmul.mubr.f32.gmra.mrb[0].mxu0 %v119
    %v220 = vpop.f32.mrb[0].mxu0
    %v221 = vadd.f32 0.0, %v220
    %v222 = vpop.f32.mrb[0].mxu0
    %223 = vmatprep.mubr.f32.mxu0 0.0
    %224 = vmatmul.mubr.f32.gmra.mrb[0].mxu0 %v122
    %v225 = vpop.f32.mrb[0].mxu0
    %v226 = vadd.f32 0.0, %v225
    %v227 = vpop.f32.mrb[0].mxu0
    %228 = vmatprep.mubr.f32.mxu0 0.0
    %229 = vmatmul.mubr.f32.gmra.mrb[0].mxu0 %v125
    %v230 = vpop.f32.mrb[0].mxu0
    %v231 = vadd.f32 0.0, %v230
    %v232 = vpop.f32.mrb[0].mxu0
    %233 = vmatprep.mubr.f32.mxu0 0.0
    %234 = vmatmul.mubr.f32.gmra.mrb[0].mxu0 %v128
    %v235 = vpop.f32.mrb[0].mxu0
    %v236 = vadd.f32 0.0, %v235
    %v237 = vpop.f32.mrb[0].mxu0
    %238 = vdwg.mxu0
    %v239 = vld [vmem:[%s2] sm:$0xff]
    %v240 = vld [vmem:[%s2 + $0x8] sm:$0xff]
    %v241 = vld [vmem:[%s2 + $0x10] sm:$0xff]
    %v242 = vld [vmem:[%s2 + $0x18] sm:$0xff]
    %v243 = vld [vmem:[%s2 + $0x20] sm:$0xff]
    %v244 = vld [vmem:[%s2 + $0x28] sm:$0xff]
    %v245 = vld [vmem:[%s2 + $0x30] sm:$0xff]
    %v246 = vld [vmem:[%s2 + $0x38] sm:$0xff]
    %v247 = vld [vmem:[%s2 + $0x40] sm:$0xff]
    %v248 = vld [vmem:[%s2 + $0x48] sm:$0xff]
    %v249 = vld [vmem:[%s2 + $0x50] sm:$0xff]
    %v250 = vld [vmem:[%s2 + $0x58] sm:$0xff]
    %v251 = vld [vmem:[%s2 + $0x60] sm:$0xff]
    %v252 = vld [vmem:[%s2 + $0x68] sm:$0xff]
    %v253 = vld [vmem:[%s2 + $0x70] sm:$0xff]
    %v254 = vld [vmem:[%s2 + $0x78] sm:$0xff]
    %v255 = vld [vmem:[%s2 + $0x80] sm:$0xff]
    %v256 = vld [vmem:[%s2 + $0x88] sm:$0xff]
    %v257 = vld [vmem:[%s2 + $0x90] sm:$0xff]
    %v258 = vld [vmem:[%s2 + $0x98] sm:$0xff]
    %v259 = vld [vmem:[%s2 + $0xa0] sm:$0xff]
    %v260 = vld [vmem:[%s2 + $0xa8] sm:$0xff]
    %v261 = vld [vmem:[%s2 + $0xb0] sm:$0xff]
    %v262 = vld [vmem:[%s2 + $0xb8] sm:$0xff]
    %v263 = vld [vmem:[%s2 + $0xc0] sm:$0xff]
    %v264 = vld [vmem:[%s2 + $0xc8] sm:$0xff]
    %v265 = vld [vmem:[%s2 + $0xd0] sm:$0xff]
    %v266 = vld [vmem:[%s2 + $0xd8] sm:$0xff]
    %v267 = vld [vmem:[%s2 + $0xe0] sm:$0xff]
    %v268 = vld [vmem:[%s2 + $0xe8] sm:$0xff]
    %v269 = vld [vmem:[%s2 + $0xf0] sm:$0xff]
    %v270 = vld [vmem:[%s2 + $0xf8] sm:$0xff]
    %s271 = scalar_lea.vmem %s2, 256
    %v272 = vld [vmem:[%s271] ss:$8 sm:$0xf]
    %v273 = vld [vmem:[%s271] ss:$8 sm:$0xf0]
    %v274 = vor.u32 %v272, %v273
    %v276 = vlaneseq
    %v277 = vshrl.u32 %v276, 7
    %v278 = vsub.s32 0, %v277
    %v279 = vrot.slane %v274, %v278
    %v280 = vlaneseq
    %v281 = vshrl.u32 %v280, 7
    %v282 = vsub.s32 1, %v281
    %v283 = vrot.slane %v274, %v282
    %v284 = vlaneseq
    %v285 = vshrl.u32 %v284, 7
    %v286 = vsub.s32 2, %v285
    %v287 = vrot.slane %v274, %v286
    %v288 = vlaneseq
    %v289 = vshrl.u32 %v288, 7
    %v290 = vsub.s32 3, %v289
    %v291 = vrot.slane %v274, %v290
    %v292 = vlaneseq
    %v293 = vshrl.u32 %v292, 7
    %v294 = vsub.s32 4, %v293
    %v295 = vrot.slane %v274, %v294
    %v296 = vlaneseq
    %v297 = vshrl.u32 %v296, 7
    %v298 = vsub.s32 5, %v297
    %v299 = vrot.slane %v274, %v298
    %v300 = vlaneseq
    %v301 = vshrl.u32 %v300, 7
    %v302 = vsub.s32 6, %v301
    %v303 = vrot.slane %v274, %v302
    %v304 = vlaneseq
    %v305 = vshrl.u32 %v304, 7
    %v306 = vsub.s32 7, %v305
    %v307 = vrot.slane %v274, %v306
    %vm316 = vcmask 261120
    %v318 = vsel %vm316, %v201, 0
    %v321 = vsel %vm316, %v206, 0
    %v324 = vsel %vm316, %v211, 0
    %v327 = vsel %vm316, %v216, 0
    %v330 = vsel %vm316, %v221, 0
    %v333 = vsel %vm316, %v226, 0
    %v336 = vsel %vm316, %v231, 0
    %v339 = vsel %vm316, %v236, 0
    %341 = vmatprep.subr.mxu0 %v240
    %342 = vmatpush1.msra.mxu0 %v239
    %343 = vmatprep.subr.mxu0 %v248
    %344 = vmatpush1.msra.mxu0 %v247
    %345 = vmatprep.subr.mxu0 %v256
    %346 = vmatpush1.msra.mxu0 %v255
    %347 = vmatprep.subr.mxu0 %v264
    %348 = vmatpush1.msra.mxu0 %v263
    %349 = vmatprep.subr.mxu0 0.0
    %350 = vmatpush1.msra.mxu0 0.0
    %351 = vmatprep.subr.mxu0 0.0
    %352 = vmatpush1.msra.mxu0 0.0
    %353 = vmatprep.subr.mxu0 0.0
    %354 = vmatpush1.msra.mxu0 0.0
    %355 = vmatprep.subr.mxu0 0.0
    %356 = vmatpush1.msra.mxu0 0.0
    %357 = vmatprep.subr.mxu0 0.0
    %358 = vmatpush1.msra.mxu0 0.0
    %359 = vmatprep.subr.mxu0 0.0
    %360 = vmatpush1.msra.mxu0 0.0
    %361 = vmatprep.subr.mxu0 0.0
    %362 = vmatpush1.msra.mxu0 0.0
    %363 = vmatprep.subr.mxu0 0.0
    %364 = vmatpush1.msra.mxu0 0.0
    %365 = vmatprep.subr.mxu0 0.0
    %366 = vmatpush1.msra.mxu0 0.0
    %367 = vmatprep.subr.mxu0 0.0
    %368 = vmatpush1.msra.mxu0 0.0
    %369 = vmatprep.subr.mxu0 0.0
    %370 = vmatpush1.msra.mxu0 0.0
    %371 = vmatprep.subr.mxu0 0.0
    %372 = vmatpush1.msra.mxu0 0.0
    %373 = vmatprep.subr.mxu0 0.0
    %374 = vmatpush1.msra.mxu0 0.0
    %375 = vmatprep.subr.mxu0 0.0
    %376 = vmatpush1.msra.mxu0 0.0
    %377 = vmatprep.subr.mxu0 0.0
    %378 = vmatpush1.msra.mxu0 0.0
    %379 = vmatprep.subr.mxu0 0.0
    %380 = vmatpush1.msra.mxu0 0.0
    %381 = vmatprep.subr.mxu0 0.0
    %382 = vmatpush1.msra.mxu0 0.0
    %383 = vmatprep.subr.mxu0 0.0
    %384 = vmatpush1.msra.mxu0 0.0
    %385 = vmatprep.subr.mxu0 0.0
    %386 = vmatpush1.msra.mxu0 0.0
    %387 = vmatprep.subr.mxu0 0.0
    %388 = vmatpush1.msra.mxu0 0.0
    %389 = vmatprep.subr.mxu0 0.0
    %390 = vmatpush1.msra.mxu0 0.0
    %391 = vmatprep.subr.mxu0 0.0
    %392 = vmatpush1.msra.mxu0 0.0
    %393 = vmatprep.subr.mxu0 0.0
    %394 = vmatpush1.msra.mxu0 0.0
    %395 = vmatprep.subr.mxu0 0.0
    %396 = vmatpush1.msra.mxu0 0.0
    %397 = vmatprep.subr.mxu0 0.0
    %398 = vmatpush1.msra.mxu0 0.0
    %399 = vmatprep.subr.mxu0 0.0
    %400 = vmatpush1.msra.mxu0 0.0
    %401 = vmatprep.subr.mxu0 0.0
    %402 = vmatpush1.msra.mxu0 0.0
    %403 = vmatprep.subr.mxu0 0.0
    %404 = vmatpush1.msra.mxu0 0.0
    %405 = vmatprep.mubr.f32.mxu0 0.0
    %406 = vmatmul.mubr.f32.gmra.mrb[0].mxu0 %v318
    %v407 = vpop.f32.mrb[0].mxu0
    %v408 = vadd.f32 %v279, %v407
    %v409 = vpop.f32.mrb[0].mxu0
    %v410 = vadd.f32 %v283, %v409
    %411 = vmatprep.mubr.f32.mxu0 0.0
    %412 = vmatmul.mubr.f32.gmra.mrb[0].mxu0 %v321
    %v413 = vpop.f32.mrb[0].mxu0
    %v414 = vadd.f32 %v279, %v413
    %v415 = vpop.f32.mrb[0].mxu0
    %v416 = vadd.f32 %v283, %v415
    %417 = vmatprep.mubr.f32.mxu0 0.0
    %418 = vmatmul.mubr.f32.gmra.mrb[0].mxu0 %v324
    %v419 = vpop.f32.mrb[0].mxu0
    %v420 = vadd.f32 %v279, %v419
    %v421 = vpop.f32.mrb[0].mxu0
    %v422 = vadd.f32 %v283, %v421
    %423 = vmatprep.mubr.f32.mxu0 0.0
    %424 = vmatmul.mubr.f32.gmra.mrb[0].mxu0 %v327
    %v425 = vpop.f32.mrb[0].mxu0
    %v426 = vadd.f32 %v279, %v425
    %v427 = vpop.f32.mrb[0].mxu0
    %v428 = vadd.f32 %v283, %v427
    %429 = vmatprep.mubr.f32.mxu0 0.0
    %430 = vmatmul.mubr.f32.gmra.mrb[0].mxu0 %v330
    %v431 = vpop.f32.mrb[0].mxu0
    %v432 = vadd.f32 %v279, %v431
    %v433 = vpop.f32.mrb[0].mxu0
    %v434 = vadd.f32 %v283, %v433
    %435 = vmatprep.mubr.f32.mxu0 0.0
    %436 = vmatmul.mubr.f32.gmra.mrb[0].mxu0 %v333
    %v437 = vpop.f32.mrb[0].mxu0
    %v438 = vadd.f32 %v279, %v437
    %v439 = vpop.f32.mrb[0].mxu0
    %v440 = vadd.f32 %v283, %v439
    %441 = vmatprep.mubr.f32.mxu0 0.0
    %442 = vmatmul.mubr.f32.gmra.mrb[0].mxu0 %v336
    %v443 = vpop.f32.mrb[0].mxu0
    %v444 = vadd.f32 %v279, %v443
    %v445 = vpop.f32.mrb[0].mxu0
    %v446 = vadd.f32 %v283, %v445
    %447 = vmatprep.mubr.f32.mxu0 0.0
    %448 = vmatmul.mubr.f32.gmra.mrb[0].mxu0 %v339
    %v449 = vpop.f32.mrb[0].mxu0
    %v450 = vadd.f32 %v279, %v449
    %v451 = vpop.f32.mrb[0].mxu0
    %v452 = vadd.f32 %v283, %v451
    %453 = vdwg.mxu0
    %454 = vmatprep.subr.mxu0 %v242
    %455 = vmatpush1.msra.mxu0 %v241
    %456 = vmatprep.subr.mxu0 %v250
    %457 = vmatpush1.msra.mxu0 %v249
    %458 = vmatprep.subr.mxu0 %v258
    %459 = vmatpush1.msra.mxu0 %v257
    %460 = vmatprep.subr.mxu0 %v266
    %461 = vmatpush1.msra.mxu0 %v265
    %462 = vmatprep.subr.mxu0 0.0
    %463 = vmatpush1.msra.mxu0 0.0
    %464 = vmatprep.subr.mxu0 0.0
    %465 = vmatpush1.msra.mxu0 0.0
    %466 = vmatprep.subr.mxu0 0.0
    %467 = vmatpush1.msra.mxu0 0.0
    %468 = vmatprep.subr.mxu0 0.0
    %469 = vmatpush1.msra.mxu0 0.0
    %470 = vmatprep.subr.mxu0 0.0
    %471 = vmatpush1.msra.mxu0 0.0
    %472 = vmatprep.subr.mxu0 0.0
    %473 = vmatpush1.msra.mxu0 0.0
    %474 = vmatprep.subr.mxu0 0.0
    %475 = vmatpush1.msra.mxu0 0.0
    %476 = vmatprep.subr.mxu0 0.0
    %477 = vmatpush1.msra.mxu0 0.0
    %478 = vmatprep.subr.mxu0 0.0
    %479 = vmatpush1.msra.mxu0 0.0
    %480 = vmatprep.subr.mxu0 0.0
    %481 = vmatpush1.msra.mxu0 0.0
    %482 = vmatprep.subr.mxu0 0.0
    %483 = vmatpush1.msra.mxu0 0.0
    %484 = vmatprep.subr.mxu0 0.0
    %485 = vmatpush1.msra.mxu0 0.0
    %486 = vmatprep.subr.mxu0 0.0
    %487 = vmatpush1.msra.mxu0 0.0
    %488 = vmatprep.subr.mxu0 0.0
    %489 = vmatpush1.msra.mxu0 0.0
    %490 = vmatprep.subr.mxu0 0.0
    %491 = vmatpush1.msra.mxu0 0.0
    %492 = vmatprep.subr.mxu0 0.0
    %493 = vmatpush1.msra.mxu0 0.0
    %494 = vmatprep.subr.mxu0 0.0
    %495 = vmatpush1.msra.mxu0 0.0
    %496 = vmatprep.subr.mxu0 0.0
    %497 = vmatpush1.msra.mxu0 0.0
    %498 = vmatprep.subr.mxu0 0.0
    %499 = vmatpush1.msra.mxu0 0.0
    %500 = vmatprep.subr.mxu0 0.0
    %501 = vmatpush1.msra.mxu0 0.0
    %502 = vmatprep.subr.mxu0 0.0
    %503 = vmatpush1.msra.mxu0 0.0
    %504 = vmatprep.subr.mxu0 0.0
    %505 = vmatpush1.msra.mxu0 0.0
    %506 = vmatprep.subr.mxu0 0.0
    %507 = vmatpush1.msra.mxu0 0.0
    %508 = vmatprep.subr.mxu0 0.0
    %509 = vmatpush1.msra.mxu0 0.0
    %510 = vmatprep.subr.mxu0 0.0
    %511 = vmatpush1.msra.mxu0 0.0
    %512 = vmatprep.subr.mxu0 0.0
    %513 = vmatpush1.msra.mxu0 0.0
    %514 = vmatprep.subr.mxu0 0.0
    %515 = vmatpush1.msra.mxu0 0.0
    %516 = vmatprep.subr.mxu0 0.0
    %517 = vmatpush1.msra.mxu0 0.0
    %518 = vmatprep.mubr.f32.mxu0 0.0
    %519 = vmatmul.mubr.f32.gmra.mrb[0].mxu0 %v318
    %v520 = vpop.f32.mrb[0].mxu0
    %v521 = vadd.f32 %v287, %v520
    %v522 = vpop.f32.mrb[0].mxu0
    %v523 = vadd.f32 %v291, %v522
    %524 = vmatprep.mubr.f32.mxu0 0.0
    %525 = vmatmul.mubr.f32.gmra.mrb[0].mxu0 %v321
    %v526 = vpop.f32.mrb[0].mxu0
    %v527 = vadd.f32 %v287, %v526
    %v528 = vpop.f32.mrb[0].mxu0
    %v529 = vadd.f32 %v291, %v528
    %530 = vmatprep.mubr.f32.mxu0 0.0
    %531 = vmatmul.mubr.f32.gmra.mrb[0].mxu0 %v324
    %v532 = vpop.f32.mrb[0].mxu0
    %v533 = vadd.f32 %v287, %v532
    %v534 = vpop.f32.mrb[0].mxu0
    %v535 = vadd.f32 %v291, %v534
    %536 = vmatprep.mubr.f32.mxu0 0.0
    %537 = vmatmul.mubr.f32.gmra.mrb[0].mxu0 %v327
    %v538 = vpop.f32.mrb[0].mxu0
    %v539 = vadd.f32 %v287, %v538
    %v540 = vpop.f32.mrb[0].mxu0
    %v541 = vadd.f32 %v291, %v540
    %542 = vmatprep.mubr.f32.mxu0 0.0
    %543 = vmatmul.mubr.f32.gmra.mrb[0].mxu0 %v330
    %v544 = vpop.f32.mrb[0].mxu0
    %v545 = vadd.f32 %v287, %v544
    %v546 = vpop.f32.mrb[0].mxu0
    %v547 = vadd.f32 %v291, %v546
    %548 = vmatprep.mubr.f32.mxu0 0.0
    %549 = vmatmul.mubr.f32.gmra.mrb[0].mxu0 %v333
    %v550 = vpop.f32.mrb[0].mxu0
    %v551 = vadd.f32 %v287, %v550
    %v552 = vpop.f32.mrb[0].mxu0
    %v553 = vadd.f32 %v291, %v552
    %554 = vmatprep.mubr.f32.mxu0 0.0
    %555 = vmatmul.mubr.f32.gmra.mrb[0].mxu0 %v336
    %v556 = vpop.f32.mrb[0].mxu0
    %v557 = vadd.f32 %v287, %v556
    %v558 = vpop.f32.mrb[0].mxu0
    %v559 = vadd.f32 %v291, %v558
    %560 = vmatprep.mubr.f32.mxu0 0.0
    %561 = vmatmul.mubr.f32.gmra.mrb[0].mxu0 %v339
    %v562 = vpop.f32.mrb[0].mxu0
    %v563 = vadd.f32 %v287, %v562
    %v564 = vpop.f32.mrb[0].mxu0
    %v565 = vadd.f32 %v291, %v564
    %566 = vdwg.mxu0
    %567 = vmatprep.subr.mxu0 %v244
    %568 = vmatpush1.msra.mxu0 %v243
    %569 = vmatprep.subr.mxu0 %v252
    %570 = vmatpush1.msra.mxu0 %v251
    %571 = vmatprep.subr.mxu0 %v260
    %572 = vmatpush1.msra.mxu0 %v259
    %573 = vmatprep.subr.mxu0 %v268
    %574 = vmatpush1.msra.mxu0 %v267
    %575 = vmatprep.subr.mxu0 0.0
    %576 = vmatpush1.msra.mxu0 0.0
    %577 = vmatprep.subr.mxu0 0.0
    %578 = vmatpush1.msra.mxu0 0.0
    %579 = vmatprep.subr.mxu0 0.0
    %580 = vmatpush1.msra.mxu0 0.0
    %581 = vmatprep.subr.mxu0 0.0
    %582 = vmatpush1.msra.mxu0 0.0
    %583 = vmatprep.subr.mxu0 0.0
    %584 = vmatpush1.msra.mxu0 0.0
    %585 = vmatprep.subr.mxu0 0.0
    %586 = vmatpush1.msra.mxu0 0.0
    %587 = vmatprep.subr.mxu0 0.0
    %588 = vmatpush1.msra.mxu0 0.0
    %589 = vmatprep.subr.mxu0 0.0
    %590 = vmatpush1.msra.mxu0 0.0
    %591 = vmatprep.subr.mxu0 0.0
    %592 = vmatpush1.msra.mxu0 0.0
    %593 = vmatprep.subr.mxu0 0.0
    %594 = vmatpush1.msra.mxu0 0.0
    %595 = vmatprep.subr.mxu0 0.0
    %596 = vmatpush1.msra.mxu0 0.0
    %597 = vmatprep.subr.mxu0 0.0
    %598 = vmatpush1.msra.mxu0 0.0
    %599 = vmatprep.subr.mxu0 0.0
    %600 = vmatpush1.msra.mxu0 0.0
    %601 = vmatprep.subr.mxu0 0.0
    %602 = vmatpush1.msra.mxu0 0.0
    %603 = vmatprep.subr.mxu0 0.0
    %604 = vmatpush1.msra.mxu0 0.0
    %605 = vmatprep.subr.mxu0 0.0
    %606 = vmatpush1.msra.mxu0 0.0
    %607 = vmatprep.subr.mxu0 0.0
    %608 = vmatpush1.msra.mxu0 0.0
    %609 = vmatprep.subr.mxu0 0.0
    %610 = vmatpush1.msra.mxu0 0.0
    %611 = vmatprep.subr.mxu0 0.0
    %612 = vmatpush1.msra.mxu0 0.0
    %613 = vmatprep.subr.mxu0 0.0
    %614 = vmatpush1.msra.mxu0 0.0
    %615 = vmatprep.subr.mxu0 0.0
    %616 = vmatpush1.msra.mxu0 0.0
    %617 = vmatprep.subr.mxu0 0.0
    %618 = vmatpush1.msra.mxu0 0.0
    %619 = vmatprep.subr.mxu0 0.0
    %620 = vmatpush1.msra.mxu0 0.0
    %621 = vmatprep.subr.mxu0 0.0
    %622 = vmatpush1.msra.mxu0 0.0
    %623 = vmatprep.subr.mxu0 0.0
    %624 = vmatpush1.msra.mxu0 0.0
    %625 = vmatprep.subr.mxu0 0.0
    %626 = vmatpush1.msra.mxu0 0.0
    %627 = vmatprep.subr.mxu0 0.0
    %628 = vmatpush1.msra.mxu0 0.0
    %629 = vmatprep.subr.mxu0 0.0
    %630 = vmatpush1.msra.mxu0 0.0
    %631 = vmatprep.mubr.f32.mxu0 0.0
    %632 = vmatmul.mubr.f32.gmra.mrb[0].mxu0 %v318
    %v633 = vpop.f32.mrb[0].mxu0
    %v634 = vadd.f32 %v295, %v633
    %v635 = vpop.f32.mrb[0].mxu0
    %v636 = vadd.f32 %v299, %v635
    %637 = vmatprep.mubr.f32.mxu0 0.0
    %638 = vmatmul.mubr.f32.gmra.mrb[0].mxu0 %v321
    %v639 = vpop.f32.mrb[0].mxu0
    %v640 = vadd.f32 %v295, %v639
    %v641 = vpop.f32.mrb[0].mxu0
    %v642 = vadd.f32 %v299, %v641
    %643 = vmatprep.mubr.f32.mxu0 0.0
    %644 = vmatmul.mubr.f32.gmra.mrb[0].mxu0 %v324
    %v645 = vpop.f32.mrb[0].mxu0
    %v646 = vadd.f32 %v295, %v645
    %v647 = vpop.f32.mrb[0].mxu0
    %v648 = vadd.f32 %v299, %v647
    %649 = vmatprep.mubr.f32.mxu0 0.0
    %650 = vmatmul.mubr.f32.gmra.mrb[0].mxu0 %v327
    %v651 = vpop.f32.mrb[0].mxu0
    %v652 = vadd.f32 %v295, %v651
    %v653 = vpop.f32.mrb[0].mxu0
    %v654 = vadd.f32 %v299, %v653
    %655 = vmatprep.mubr.f32.mxu0 0.0
    %656 = vmatmul.mubr.f32.gmra.mrb[0].mxu0 %v330
    %v657 = vpop.f32.mrb[0].mxu0
    %v658 = vadd.f32 %v295, %v657
    %v659 = vpop.f32.mrb[0].mxu0
    %v660 = vadd.f32 %v299, %v659
    %661 = vmatprep.mubr.f32.mxu0 0.0
    %662 = vmatmul.mubr.f32.gmra.mrb[0].mxu0 %v333
    %v663 = vpop.f32.mrb[0].mxu0
    %v664 = vadd.f32 %v295, %v663
    %v665 = vpop.f32.mrb[0].mxu0
    %v666 = vadd.f32 %v299, %v665
    %667 = vmatprep.mubr.f32.mxu0 0.0
    %668 = vmatmul.mubr.f32.gmra.mrb[0].mxu0 %v336
    %v669 = vpop.f32.mrb[0].mxu0
    %v670 = vadd.f32 %v295, %v669
    %v671 = vpop.f32.mrb[0].mxu0
    %v672 = vadd.f32 %v299, %v671
    %673 = vmatprep.mubr.f32.mxu0 0.0
    %674 = vmatmul.mubr.f32.gmra.mrb[0].mxu0 %v339
    %v675 = vpop.f32.mrb[0].mxu0
    %v676 = vadd.f32 %v295, %v675
    %v677 = vpop.f32.mrb[0].mxu0
    %v678 = vadd.f32 %v299, %v677
    %679 = vdwg.mxu0
    %680 = vmatprep.subr.mxu0 %v246
    %681 = vmatpush1.msra.mxu0 %v245
    %682 = vmatprep.subr.mxu0 %v254
    %683 = vmatpush1.msra.mxu0 %v253
    %684 = vmatprep.subr.mxu0 %v262
    %685 = vmatpush1.msra.mxu0 %v261
    %686 = vmatprep.subr.mxu0 %v270
    %687 = vmatpush1.msra.mxu0 %v269
    %688 = vmatprep.subr.mxu0 0.0
    %689 = vmatpush1.msra.mxu0 0.0
    %690 = vmatprep.subr.mxu0 0.0
    %691 = vmatpush1.msra.mxu0 0.0
    %692 = vmatprep.subr.mxu0 0.0
    %693 = vmatpush1.msra.mxu0 0.0
    %694 = vmatprep.subr.mxu0 0.0
    %695 = vmatpush1.msra.mxu0 0.0
    %696 = vmatprep.subr.mxu0 0.0
    %697 = vmatpush1.msra.mxu0 0.0
    %698 = vmatprep.subr.mxu0 0.0
    %699 = vmatpush1.msra.mxu0 0.0
    %700 = vmatprep.subr.mxu0 0.0
    %701 = vmatpush1.msra.mxu0 0.0
    %702 = vmatprep.subr.mxu0 0.0
    %703 = vmatpush1.msra.mxu0 0.0
    %704 = vmatprep.subr.mxu0 0.0
    %705 = vmatpush1.msra.mxu0 0.0
    %706 = vmatprep.subr.mxu0 0.0
    %707 = vmatpush1.msra.mxu0 0.0
    %708 = vmatprep.subr.mxu0 0.0
    %709 = vmatpush1.msra.mxu0 0.0
    %710 = vmatprep.subr.mxu0 0.0
    %711 = vmatpush1.msra.mxu0 0.0
    %712 = vmatprep.subr.mxu0 0.0
    %713 = vmatpush1.msra.mxu0 0.0
    %714 = vmatprep.subr.mxu0 0.0
    %715 = vmatpush1.msra.mxu0 0.0
    %716 = vmatprep.subr.mxu0 0.0
    %717 = vmatpush1.msra.mxu0 0.0
    %718 = vmatprep.subr.mxu0 0.0
    %719 = vmatpush1.msra.mxu0 0.0
    %720 = vmatprep.subr.mxu0 0.0
    %721 = vmatpush1.msra.mxu0 0.0
    %722 = vmatprep.subr.mxu0 0.0
    %723 = vmatpush1.msra.mxu0 0.0
    %724 = vmatprep.subr.mxu0 0.0
    %725 = vmatpush1.msra.mxu0 0.0
    %726 = vmatprep.subr.mxu0 0.0
    %727 = vmatpush1.msra.mxu0 0.0
    %728 = vmatprep.subr.mxu0 0.0
    %729 = vmatpush1.msra.mxu0 0.0
    %730 = vmatprep.subr.mxu0 0.0
    %731 = vmatpush1.msra.mxu0 0.0
    %732 = vmatprep.subr.mxu0 0.0
    %733 = vmatpush1.msra.mxu0 0.0
    %734 = vmatprep.subr.mxu0 0.0
    %735 = vmatpush1.msra.mxu0 0.0
    %736 = vmatprep.subr.mxu0 0.0
    %737 = vmatpush1.msra.mxu0 0.0
    %738 = vmatprep.subr.mxu0 0.0
    %739 = vmatpush1.msra.mxu0 0.0
    %740 = vmatprep.subr.mxu0 0.0
    %741 = vmatpush1.msra.mxu0 0.0
    %742 = vmatprep.subr.mxu0 0.0
    %743 = vmatpush1.msra.mxu0 0.0
    %744 = vmatprep.mubr.f32.mxu0 0.0
    %745 = vmatmul.mubr.f32.gmra.mrb[0].mxu0 %v318
    %v746 = vpop.f32.mrb[0].mxu0
    %v747 = vadd.f32 %v303, %v746
    %v748 = vpop.f32.mrb[0].mxu0
    %v749 = vadd.f32 %v307, %v748
    %750 = vmatprep.mubr.f32.mxu0 0.0
    %751 = vmatmul.mubr.f32.gmra.mrb[0].mxu0 %v321
    %v752 = vpop.f32.mrb[0].mxu0
    %v753 = vadd.f32 %v303, %v752
    %v754 = vpop.f32.mrb[0].mxu0
    %v755 = vadd.f32 %v307, %v754
    %756 = vmatprep.mubr.f32.mxu0 0.0
    %757 = vmatmul.mubr.f32.gmra.mrb[0].mxu0 %v324
    %v758 = vpop.f32.mrb[0].mxu0
    %v759 = vadd.f32 %v303, %v758
    %v760 = vpop.f32.mrb[0].mxu0
    %v761 = vadd.f32 %v307, %v760
    %762 = vmatprep.mubr.f32.mxu0 0.0
    %763 = vmatmul.mubr.f32.gmra.mrb[0].mxu0 %v327
    %v764 = vpop.f32.mrb[0].mxu0
    %v765 = vadd.f32 %v303, %v764
    %v766 = vpop.f32.mrb[0].mxu0
    %v767 = vadd.f32 %v307, %v766
    %768 = vmatprep.mubr.f32.mxu0 0.0
    %769 = vmatmul.mubr.f32.gmra.mrb[0].mxu0 %v330
    %v770 = vpop.f32.mrb[0].mxu0
    %v771 = vadd.f32 %v303, %v770
    %v772 = vpop.f32.mrb[0].mxu0
    %v773 = vadd.f32 %v307, %v772
    %774 = vmatprep.mubr.f32.mxu0 0.0
    %775 = vmatmul.mubr.f32.gmra.mrb[0].mxu0 %v333
    %v776 = vpop.f32.mrb[0].mxu0
    %v777 = vadd.f32 %v303, %v776
    %v778 = vpop.f32.mrb[0].mxu0
    %v779 = vadd.f32 %v307, %v778
    %780 = vmatprep.mubr.f32.mxu0 0.0
    %781 = vmatmul.mubr.f32.gmra.mrb[0].mxu0 %v336
    %v782 = vpop.f32.mrb[0].mxu0
    %v783 = vadd.f32 %v303, %v782
    %v784 = vpop.f32.mrb[0].mxu0
    %v785 = vadd.f32 %v307, %v784
    %786 = vmatprep.mubr.f32.mxu0 0.0
    %787 = vmatmul.mubr.f32.gmra.mrb[0].mxu0 %v339
    %v788 = vpop.f32.mrb[0].mxu0
    %v789 = vadd.f32 %v303, %v788
    %v790 = vpop.f32.mrb[0].mxu0
    %v791 = vadd.f32 %v307, %v790
    %792 = vdwg.mxu0
    %v793 = vld [vmem:[%s3] sm:$0xff]
    %v794 = vld [vmem:[%s3 + $0x8] sm:$0xff]
    %v795 = vld [vmem:[%s3 + $0x10] sm:$0xff]
    %v796 = vld [vmem:[%s3 + $0x18] sm:$0xff]
    %v797 = vld [vmem:[%s3 + $0x40] sm:$0xff]
    %v798 = vld [vmem:[%s3 + $0x48] sm:$0xff]
    %v799 = vld [vmem:[%s3 + $0x50] sm:$0xff]
    %v800 = vld [vmem:[%s3 + $0x58] sm:$0xff]
    %v801 = vld [vmem:[%s3 + $0x80] sm:$0xff]
    %v802 = vld [vmem:[%s3 + $0x88] sm:$0xff]
    %v803 = vld [vmem:[%s3 + $0x90] sm:$0xff]
    %v804 = vld [vmem:[%s3 + $0x98] sm:$0xff]
    %v805 = vld [vmem:[%s3 + $0xc0] sm:$0xff]
    %v806 = vld [vmem:[%s3 + $0xc8] sm:$0xff]
    %v807 = vld [vmem:[%s3 + $0xd0] sm:$0xff]
    %v808 = vld [vmem:[%s3 + $0xd8] sm:$0xff]
    %v809 = vld [vmem:[%s3 + $0x100] sm:$0xff]
    %v810 = vld [vmem:[%s3 + $0x108] sm:$0xff]
    %v811 = vld [vmem:[%s3 + $0x110] sm:$0xff]
    %v812 = vld [vmem:[%s3 + $0x118] sm:$0xff]
    %v813 = vld [vmem:[%s3 + $0x140] sm:$0xff]
    %v814 = vld [vmem:[%s3 + $0x148] sm:$0xff]
    %v815 = vld [vmem:[%s3 + $0x150] sm:$0xff]
    %v816 = vld [vmem:[%s3 + $0x158] sm:$0xff]
    %v817 = vld [vmem:[%s3 + $0x180] sm:$0xff]
    %v818 = vld [vmem:[%s3 + $0x188] sm:$0xff]
    %v819 = vld [vmem:[%s3 + $0x190] sm:$0xff]
    %v820 = vld [vmem:[%s3 + $0x198] sm:$0xff]
    %v821 = vld [vmem:[%s3 + $0x1c0] sm:$0xff]
    %v822 = vld [vmem:[%s3 + $0x1c8] sm:$0xff]
    %v823 = vld [vmem:[%s3 + $0x1d0] sm:$0xff]
    %v824 = vld [vmem:[%s3 + $0x1d8] sm:$0xff]
    %v825 = vld [vmem:[%s3 + $0x200] sm:$0xff]
    %v826 = vld [vmem:[%s3 + $0x208] sm:$0xff]
    %v827 = vld [vmem:[%s3 + $0x210] sm:$0xff]
    %v828 = vld [vmem:[%s3 + $0x218] sm:$0xff]
    %v829 = vld [vmem:[%s3 + $0x240] sm:$0xff]
    %v830 = vld [vmem:[%s3 + $0x248] sm:$0xff]
    %v831 = vld [vmem:[%s3 + $0x250] sm:$0xff]
    %v832 = vld [vmem:[%s3 + $0x258] sm:$0xff]
    %v833 = vld [vmem:[%s3 + $0x280] sm:$0xff]
    %v834 = vld [vmem:[%s3 + $0x288] sm:$0xff]
    %v835 = vld [vmem:[%s3 + $0x290] sm:$0xff]
    %v836 = vld [vmem:[%s3 + $0x298] sm:$0xff]
    %v837 = vld [vmem:[%s3 + $0x2c0] sm:$0xff]
    %v838 = vld [vmem:[%s3 + $0x2c8] sm:$0xff]
    %v839 = vld [vmem:[%s3 + $0x2d0] sm:$0xff]
    %v840 = vld [vmem:[%s3 + $0x2d8] sm:$0xff]
    %v841 = vld [vmem:[%s3 + $0x300] sm:$0xff]
    %v842 = vld [vmem:[%s3 + $0x308] sm:$0xff]
    %v843 = vld [vmem:[%s3 + $0x310] sm:$0xff]
    %v844 = vld [vmem:[%s3 + $0x318] sm:$0xff]
    %v845 = vld [vmem:[%s3 + $0x340] sm:$0xff]
    %v846 = vld [vmem:[%s3 + $0x348] sm:$0xff]
    %v847 = vld [vmem:[%s3 + $0x350] sm:$0xff]
    %v848 = vld [vmem:[%s3 + $0x358] sm:$0xff]
    %v849 = vld [vmem:[%s3 + $0x380] sm:$0xff]
    %v850 = vld [vmem:[%s3 + $0x388] sm:$0xff]
    %v851 = vld [vmem:[%s3 + $0x390] sm:$0xff]
    %v852 = vld [vmem:[%s3 + $0x398] sm:$0xff]
    %v853 = vld [vmem:[%s3 + $0x3c0] sm:$0xff]
    %v854 = vld [vmem:[%s3 + $0x3c8] sm:$0xff]
    %v855 = vld [vmem:[%s3 + $0x3d0] sm:$0xff]
    %v856 = vld [vmem:[%s3 + $0x3d8] sm:$0xff]
    %v857 = vld [vmem:[%s3 + $0x20] sm:$0xff]
    %v858 = vld [vmem:[%s3 + $0x28] sm:$0xff]
    %v859 = vld [vmem:[%s3 + $0x30] sm:$0xff]
    %v860 = vld [vmem:[%s3 + $0x38] sm:$0xff]
    %v861 = vld [vmem:[%s3 + $0x60] sm:$0xff]
    %v862 = vld [vmem:[%s3 + $0x68] sm:$0xff]
    %v863 = vld [vmem:[%s3 + $0x70] sm:$0xff]
    %v864 = vld [vmem:[%s3 + $0x78] sm:$0xff]
    %v865 = vld [vmem:[%s3 + $0xa0] sm:$0xff]
    %v866 = vld [vmem:[%s3 + $0xa8] sm:$0xff]
    %v867 = vld [vmem:[%s3 + $0xb0] sm:$0xff]
    %v868 = vld [vmem:[%s3 + $0xb8] sm:$0xff]
    %v869 = vld [vmem:[%s3 + $0xe0] sm:$0xff]
    %v870 = vld [vmem:[%s3 + $0xe8] sm:$0xff]
    %v871 = vld [vmem:[%s3 + $0xf0] sm:$0xff]
    %v872 = vld [vmem:[%s3 + $0xf8] sm:$0xff]
    %v873 = vld [vmem:[%s3 + $0x120] sm:$0xff]
    %v874 = vld [vmem:[%s3 + $0x128] sm:$0xff]
    %v875 = vld [vmem:[%s3 + $0x130] sm:$0xff]
    %v876 = vld [vmem:[%s3 + $0x138] sm:$0xff]
    %v877 = vld [vmem:[%s3 + $0x160] sm:$0xff]
    %v878 = vld [vmem:[%s3 + $0x168] sm:$0xff]
    %v879 = vld [vmem:[%s3 + $0x170] sm:$0xff]
    %v880 = vld [vmem:[%s3 + $0x178] sm:$0xff]
    %v881 = vld [vmem:[%s3 + $0x1a0] sm:$0xff]
    %v882 = vld [vmem:[%s3 + $0x1a8] sm:$0xff]
    %v883 = vld [vmem:[%s3 + $0x1b0] sm:$0xff]
    %v884 = vld [vmem:[%s3 + $0x1b8] sm:$0xff]
    %v885 = vld [vmem:[%s3 + $0x1e0] sm:$0xff]
    %v886 = vld [vmem:[%s3 + $0x1e8] sm:$0xff]
    %v887 = vld [vmem:[%s3 + $0x1f0] sm:$0xff]
    %v888 = vld [vmem:[%s3 + $0x1f8] sm:$0xff]
    %v889 = vld [vmem:[%s3 + $0x220] sm:$0xff]
    %v890 = vld [vmem:[%s3 + $0x228] sm:$0xff]
    %v891 = vld [vmem:[%s3 + $0x230] sm:$0xff]
    %v892 = vld [vmem:[%s3 + $0x238] sm:$0xff]
    %v893 = vld [vmem:[%s3 + $0x260] sm:$0xff]
    %v894 = vld [vmem:[%s3 + $0x268] sm:$0xff]
    %v895 = vld [vmem:[%s3 + $0x270] sm:$0xff]
    %v896 = vld [vmem:[%s3 + $0x278] sm:$0xff]
    %v897 = vld [vmem:[%s3 + $0x2a0] sm:$0xff]
    %v898 = vld [vmem:[%s3 + $0x2a8] sm:$0xff]
    %v899 = vld [vmem:[%s3 + $0x2b0] sm:$0xff]
    %v900 = vld [vmem:[%s3 + $0x2b8] sm:$0xff]
    %v901 = vld [vmem:[%s3 + $0x2e0] sm:$0xff]
    %v902 = vld [vmem:[%s3 + $0x2e8] sm:$0xff]
    %v903 = vld [vmem:[%s3 + $0x2f0] sm:$0xff]
    %v904 = vld [vmem:[%s3 + $0x2f8] sm:$0xff]
    %v905 = vld [vmem:[%s3 + $0x320] sm:$0xff]
    %v906 = vld [vmem:[%s3 + $0x328] sm:$0xff]
    %v907 = vld [vmem:[%s3 + $0x330] sm:$0xff]
    %v908 = vld [vmem:[%s3 + $0x338] sm:$0xff]
    %v909 = vld [vmem:[%s3 + $0x360] sm:$0xff]
    %v910 = vld [vmem:[%s3 + $0x368] sm:$0xff]
    %v911 = vld [vmem:[%s3 + $0x370] sm:$0xff]
    %v912 = vld [vmem:[%s3 + $0x378] sm:$0xff]
    %v913 = vld [vmem:[%s3 + $0x3a0] sm:$0xff]
    %v914 = vld [vmem:[%s3 + $0x3a8] sm:$0xff]
    %v915 = vld [vmem:[%s3 + $0x3b0] sm:$0xff]
    %v916 = vld [vmem:[%s3 + $0x3b8] sm:$0xff]
    %v917 = vld [vmem:[%s3 + $0x3e0] sm:$0xff]
    %v918 = vld [vmem:[%s3 + $0x3e8] sm:$0xff]
    %v919 = vld [vmem:[%s3 + $0x3f0] sm:$0xff]
    %v920 = vld [vmem:[%s3 + $0x3f8] sm:$0xff]
    %921 = vmatprep.subr.mxu0 %v794
    %922 = vmatpush1.msra.mxu0 %v793
    %923 = vmatprep.subr.mxu0 %v798
    %924 = vmatpush1.msra.mxu0 %v797
    %925 = vmatprep.subr.mxu0 %v802
    %926 = vmatpush1.msra.mxu0 %v801
    %927 = vmatprep.subr.mxu0 %v806
    %928 = vmatpush1.msra.mxu0 %v805
    %929 = vmatprep.subr.mxu0 %v810
    %930 = vmatpush1.msra.mxu0 %v809
    %931 = vmatprep.subr.mxu0 %v814
    %932 = vmatpush1.msra.mxu0 %v813
    %933 = vmatprep.subr.mxu0 %v818
    %934 = vmatpush1.msra.mxu0 %v817
    %935 = vmatprep.subr.mxu0 %v822
    %936 = vmatpush1.msra.mxu0 %v821
    %937 = vmatprep.subr.mxu0 %v826
    %938 = vmatpush1.msra.mxu0 %v825
    %939 = vmatprep.subr.mxu0 %v830
    %940 = vmatpush1.msra.mxu0 %v829
    %941 = vmatprep.subr.mxu0 %v834
    %942 = vmatpush1.msra.mxu0 %v833
    %943 = vmatprep.subr.mxu0 %v838
    %944 = vmatpush1.msra.mxu0 %v837
    %945 = vmatprep.subr.mxu0 %v842
    %946 = vmatpush1.msra.mxu0 %v841
    %947 = vmatprep.subr.mxu0 %v846
    %948 = vmatpush1.msra.mxu0 %v845
    %949 = vmatprep.subr.mxu0 %v850
    %950 = vmatpush1.msra.mxu0 %v849
    %951 = vmatprep.subr.mxu0 %v854
    %952 = vmatpush1.msra.mxu0 %v853
    %953 = vmatprep.subr.mxu0 0.0
    %954 = vmatpush1.msra.mxu0 0.0
    %955 = vmatprep.subr.mxu0 0.0
    %956 = vmatpush1.msra.mxu0 0.0
    %957 = vmatprep.subr.mxu0 0.0
    %958 = vmatpush1.msra.mxu0 0.0
    %959 = vmatprep.subr.mxu0 0.0
    %960 = vmatpush1.msra.mxu0 0.0
    %961 = vmatprep.subr.mxu0 0.0
    %962 = vmatpush1.msra.mxu0 0.0
    %963 = vmatprep.subr.mxu0 0.0
    %964 = vmatpush1.msra.mxu0 0.0
    %965 = vmatprep.subr.mxu0 0.0
    %966 = vmatpush1.msra.mxu0 0.0
    %967 = vmatprep.subr.mxu0 0.0
    %968 = vmatpush1.msra.mxu0 0.0
    %969 = vmatprep.subr.mxu0 0.0
    %970 = vmatpush1.msra.mxu0 0.0
    %971 = vmatprep.subr.mxu0 0.0
    %972 = vmatpush1.msra.mxu0 0.0
    %973 = vmatprep.subr.mxu0 0.0
    %974 = vmatpush1.msra.mxu0 0.0
    %975 = vmatprep.subr.mxu0 0.0
    %976 = vmatpush1.msra.mxu0 0.0
    %977 = vmatprep.subr.mxu0 0.0
    %978 = vmatpush1.msra.mxu0 0.0
    %979 = vmatprep.subr.mxu0 0.0
    %980 = vmatpush1.msra.mxu0 0.0
    %981 = vmatprep.subr.mxu0 0.0
    %982 = vmatpush1.msra.mxu0 0.0
    %983 = vmatprep.subr.mxu0 0.0
    %984 = vmatpush1.msra.mxu0 0.0
    %985 = vmatprep.mubr.f32.mxu0 0.0
    %986 = vmatmul.mubr.f32.gmra.mrb[0].mxu0 0.0
    %v987 = vpop.f32.mrb[0].mxu0
    %v988 = vadd.f32 0.0, %v987
    %v989 = vpop.f32.mrb[0].mxu0
    %v990 = vadd.f32 0.0, %v989
    %991 = vdwg.mxu0
    %992 = vmatprep.subr.mxu0 %v796
    %993 = vmatpush1.msra.mxu0 %v795
    %994 = vmatprep.subr.mxu0 %v800
    %995 = vmatpush1.msra.mxu0 %v799
    %996 = vmatprep.subr.mxu0 %v804
    %997 = vmatpush1.msra.mxu0 %v803
    %998 = vmatprep.subr.mxu0 %v808
    %999 = vmatpush1.msra.mxu0 %v807
    %1000 = vmatprep.subr.mxu0 %v812
    %1001 = vmatpush1.msra.mxu0 %v811
    %1002 = vmatprep.subr.mxu0 %v816
    %1003 = vmatpush1.msra.mxu0 %v815
    %1004 = vmatprep.subr.mxu0 %v820
    %1005 = vmatpush1.msra.mxu0 %v819
    %1006 = vmatprep.subr.mxu0 %v824
    %1007 = vmatpush1.msra.mxu0 %v823
    %1008 = vmatprep.subr.mxu0 %v828
    %1009 = vmatpush1.msra.mxu0 %v827
    %1010 = vmatprep.subr.mxu0 %v832
    %1011 = vmatpush1.msra.mxu0 %v831
    %1012 = vmatprep.subr.mxu0 %v836
    %1013 = vmatpush1.msra.mxu0 %v835
    %1014 = vmatprep.subr.mxu0 %v840
    %1015 = vmatpush1.msra.mxu0 %v839
    %1016 = vmatprep.subr.mxu0 %v844
    %1017 = vmatpush1.msra.mxu0 %v843
    %1018 = vmatprep.subr.mxu0 %v848
    %1019 = vmatpush1.msra.mxu0 %v847
    %1020 = vmatprep.subr.mxu0 %v852
    %1021 = vmatpush1.msra.mxu0 %v851
    %1022 = vmatprep.subr.mxu0 %v856
    %1023 = vmatpush1.msra.mxu0 %v855
    %1024 = vmatprep.subr.mxu0 0.0
    %1025 = vmatpush1.msra.mxu0 0.0
    %1026 = vmatprep.subr.mxu0 0.0
    %1027 = vmatpush1.msra.mxu0 0.0
    %1028 = vmatprep.subr.mxu0 0.0
    %1029 = vmatpush1.msra.mxu0 0.0
    %1030 = vmatprep.subr.mxu0 0.0
    %1031 = vmatpush1.msra.mxu0 0.0
    %1032 = vmatprep.subr.mxu0 0.0
    %1033 = vmatpush1.msra.mxu0 0.0
    %1034 = vmatprep.subr.mxu0 0.0
    %1035 = vmatpush1.msra.mxu0 0.0
    %1036 = vmatprep.subr.mxu0 0.0
    %1037 = vmatpush1.msra.mxu0 0.0
    %1038 = vmatprep.subr.mxu0 0.0
    %1039 = vmatpush1.msra.mxu0 0.0
    %1040 = vmatprep.subr.mxu0 0.0
    %1041 = vmatpush1.msra.mxu0 0.0
    %1042 = vmatprep.subr.mxu0 0.0
    %1043 = vmatpush1.msra.mxu0 0.0
    %1044 = vmatprep.subr.mxu0 0.0
    %1045 = vmatpush1.msra.mxu0 0.0
    %1046 = vmatprep.subr.mxu0 0.0
    %1047 = vmatpush1.msra.mxu0 0.0
    %1048 = vmatprep.subr.mxu0 0.0
    %1049 = vmatpush1.msra.mxu0 0.0
    %1050 = vmatprep.subr.mxu0 0.0
    %1051 = vmatpush1.msra.mxu0 0.0
    %1052 = vmatprep.subr.mxu0 0.0
    %1053 = vmatpush1.msra.mxu0 0.0
    %1054 = vmatprep.subr.mxu0 0.0
    %1055 = vmatpush1.msra.mxu0 0.0
    %1056 = vmatprep.mubr.f32.mxu0 0.0
    %1057 = vmatmul.mubr.f32.gmra.mrb[0].mxu0 0.0
    %v1058 = vpop.f32.mrb[0].mxu0
    %v1059 = vadd.f32 0.0, %v1058
    %v1060 = vpop.f32.mrb[0].mxu0
    %v1061 = vadd.f32 0.0, %v1060
    %1062 = vdwg.mxu0
    %v1063 = vadd.f32 %v408, %v988
    %v1064 = vadd.f32 %v410, %v990
    %v1065 = vadd.f32 %v521, %v1059
    %v1066 = vadd.f32 %v523, %v1061
    %v1067 = vxor.u32 %v1063, 2147483648
    %v1068 = vmul.f32 %v1067, 1.442695
    %v1069 = vpow.pop %v1068
    %v1070 = vadd.f32 %v1069, 1.0
    %v1071 = vrcp.pop %v1070
    %v1072 = vmul.f32 1.0, %v1071
    %v1073 = vxor.u32 %v1064, 2147483648
    %v1074 = vmul.f32 %v1073, 1.442695
    %v1075 = vpow.pop %v1074
    %v1076 = vadd.f32 %v1075, 1.0
    %v1077 = vrcp.pop %v1076
    %v1078 = vmul.f32 1.0, %v1077
    %v1079 = vtanh.pop %v1065
    %v1080 = vxor.u32 %v1066, 2147483648
    %v1081 = vmul.f32 %v1080, 1.442695
    %v1082 = vpow.pop %v1081
    %v1083 = vadd.f32 %v1082, 1.0
    %v1084 = vrcp.pop %v1083
    %v1085 = vmul.f32 1.0, %v1084
    %v1086 = vmul.f32 %v1078, 0.0
    %v1087 = vmul.f32 %v1072, %v1079
    %v1088 = vadd.f32 %v1086, %v1087
    %v1089 = vtanh.pop %v1088
    %v1090 = vmul.f32 %v1085, %v1089
    %1091 = vmatprep.subr.mxu0 %v858
    %1092 = vmatpush1.msra.mxu0 %v857
    %1093 = vmatprep.subr.mxu0 %v862
    %1094 = vmatpush1.msra.mxu0 %v861
    %1095 = vmatprep.subr.mxu0 %v866
    %1096 = vmatpush1.msra.mxu0 %v865
    %1097 = vmatprep.subr.mxu0 %v870
    %1098 = vmatpush1.msra.mxu0 %v869
    %1099 = vmatprep.subr.mxu0 %v874
    %1100 = vmatpush1.msra.mxu0 %v873
    %1101 = vmatprep.subr.mxu0 %v878
    %1102 = vmatpush1.msra.mxu0 %v877
    %1103 = vmatprep.subr.mxu0 %v882
    %1104 = vmatpush1.msra.mxu0 %v881
    %1105 = vmatprep.subr.mxu0 %v886
    %1106 = vmatpush1.msra.mxu0 %v885
    %1107 = vmatprep.subr.mxu0 %v890
    %1108 = vmatpush1.msra.mxu0 %v889
    %1109 = vmatprep.subr.mxu0 %v894
    %1110 = vmatpush1.msra.mxu0 %v893
    %1111 = vmatprep.subr.mxu0 %v898
    %1112 = vmatpush1.msra.mxu0 %v897
    %1113 = vmatprep.subr.mxu0 %v902
    %1114 = vmatpush1.msra.mxu0 %v901
    %1115 = vmatprep.subr.mxu0 %v906
    %1116 = vmatpush1.msra.mxu0 %v905
    %1117 = vmatprep.subr.mxu0 %v910
    %1118 = vmatpush1.msra.mxu0 %v909
    %1119 = vmatprep.subr.mxu0 %v914
    %1120 = vmatpush1.msra.mxu0 %v913
    %1121 = vmatprep.subr.mxu0 %v918
    %1122 = vmatpush1.msra.mxu0 %v917
    %1123 = vmatprep.subr.mxu0 0.0
    %1124 = vmatpush1.msra.mxu0 0.0
    %1125 = vmatprep.subr.mxu0 0.0
    %1126 = vmatpush1.msra.mxu0 0.0
    %1127 = vmatprep.subr.mxu0 0.0
    %1128 = vmatpush1.msra.mxu0 0.0
    %1129 = vmatprep.subr.mxu0 0.0
    %1130 = vmatpush1.msra.mxu0 0.0
    %1131 = vmatprep.subr.mxu0 0.0
    %1132 = vmatpush1.msra.mxu0 0.0
    %1133 = vmatprep.subr.mxu0 0.0
    %1134 = vmatpush1.msra.mxu0 0.0
    %1135 = vmatprep.subr.mxu0 0.0
    %1136 = vmatpush1.msra.mxu0 0.0
    %1137 = vmatprep.subr.mxu0 0.0
    %1138 = vmatpush1.msra.mxu0 0.0
    %1139 = vmatprep.subr.mxu0 0.0
    %1140 = vmatpush1.msra.mxu0 0.0
    %1141 = vmatprep.subr.mxu0 0.0
    %1142 = vmatpush1.msra.mxu0 0.0
    %1143 = vmatprep.subr.mxu0 0.0
    %1144 = vmatpush1.msra.mxu0 0.0
    %1145 = vmatprep.subr.mxu0 0.0
    %1146 = vmatpush1.msra.mxu0 0.0
    %1147 = vmatprep.subr.mxu0 0.0
    %1148 = vmatpush1.msra.mxu0 0.0
    %1149 = vmatprep.subr.mxu0 0.0
    %1150 = vmatpush1.msra.mxu0 0.0
    %1151 = vmatprep.subr.mxu0 0.0
    %1152 = vmatpush1.msra.mxu0 0.0
    %1153 = vmatprep.subr.mxu0 0.0
    %1154 = vmatpush1.msra.mxu0 0.0
    %1155 = vmatprep.mubr.f32.mxu0 0.0
    %1156 = vmatmul.mubr.f32.gmra.mrb[0].mxu0 0.0
    %v1157 = vpop.f32.mrb[0].mxu0
    %v1158 = vadd.f32 0.0, %v1157
    %v1159 = vpop.f32.mrb[0].mxu0
    %v1160 = vadd.f32 0.0, %v1159
    %1161 = vdwg.mxu0
    %1162 = vmatprep.subr.mxu0 %v860
    %1163 = vmatpush1.msra.mxu0 %v859
    %1164 = vmatprep.subr.mxu0 %v864
    %1165 = vmatpush1.msra.mxu0 %v863
    %1166 = vmatprep.subr.mxu0 %v868
    %1167 = vmatpush1.msra.mxu0 %v867
    %1168 = vmatprep.subr.mxu0 %v872
    %1169 = vmatpush1.msra.mxu0 %v871
    %1170 = vmatprep.subr.mxu0 %v876
    %1171 = vmatpush1.msra.mxu0 %v875
    %1172 = vmatprep.subr.mxu0 %v880
    %1173 = vmatpush1.msra.mxu0 %v879
    %1174 = vmatprep.subr.mxu0 %v884
    %1175 = vmatpush1.msra.mxu0 %v883
    %1176 = vmatprep.subr.mxu0 %v888
    %1177 = vmatpush1.msra.mxu0 %v887
    %1178 = vmatprep.subr.mxu0 %v892
    %1179 = vmatpush1.msra.mxu0 %v891
    %1180 = vmatprep.subr.mxu0 %v896
    %1181 = vmatpush1.msra.mxu0 %v895
    %1182 = vmatprep.subr.mxu0 %v900
    %1183 = vmatpush1.msra.mxu0 %v899
    %1184 = vmatprep.subr.mxu0 %v904
    %1185 = vmatpush1.msra.mxu0 %v903
    %1186 = vmatprep.subr.mxu0 %v908
    %1187 = vmatpush1.msra.mxu0 %v907
    %1188 = vmatprep.subr.mxu0 %v912
    %1189 = vmatpush1.msra.mxu0 %v911
    %1190 = vmatprep.subr.mxu0 %v916
    %1191 = vmatpush1.msra.mxu0 %v915
    %1192 = vmatprep.subr.mxu0 %v920
    %1193 = vmatpush1.msra.mxu0 %v919
    %1194 = vmatprep.subr.mxu0 0.0
    %1195 = vmatpush1.msra.mxu0 0.0
    %1196 = vmatprep.subr.mxu0 0.0
    %1197 = vmatpush1.msra.mxu0 0.0
    %1198 = vmatprep.subr.mxu0 0.0
    %1199 = vmatpush1.msra.mxu0 0.0
    %1200 = vmatprep.subr.mxu0 0.0
    %1201 = vmatpush1.msra.mxu0 0.0
    %1202 = vmatprep.subr.mxu0 0.0
    %1203 = vmatpush1.msra.mxu0 0.0
    %1204 = vmatprep.subr.mxu0 0.0
    %1205 = vmatpush1.msra.mxu0 0.0
    %1206 = vmatprep.subr.mxu0 0.0
    %1207 = vmatpush1.msra.mxu0 0.0
    %1208 = vmatprep.subr.mxu0 0.0
    %1209 = vmatpush1.msra.mxu0 0.0
    %1210 = vmatprep.subr.mxu0 0.0
    %1211 = vmatpush1.msra.mxu0 0.0
    %1212 = vmatprep.subr.mxu0 0.0
    %1213 = vmatpush1.msra.mxu0 0.0
    %1214 = vmatprep.subr.mxu0 0.0
    %1215 = vmatpush1.msra.mxu0 0.0
    %1216 = vmatprep.subr.mxu0 0.0
    %1217 = vmatpush1.msra.mxu0 0.0
    %1218 = vmatprep.subr.mxu0 0.0
    %1219 = vmatpush1.msra.mxu0 0.0
    %1220 = vmatprep.subr.mxu0 0.0
    %1221 = vmatpush1.msra.mxu0 0.0
    %1222 = vmatprep.subr.mxu0 0.0
    %1223 = vmatpush1.msra.mxu0 0.0
    %1224 = vmatprep.subr.mxu0 0.0
    %1225 = vmatpush1.msra.mxu0 0.0
    %1226 = vmatprep.mubr.f32.mxu0 0.0
    %1227 = vmatmul.mubr.f32.gmra.mrb[0].mxu0 0.0
    %v1228 = vpop.f32.mrb[0].mxu0
    %v1229 = vadd.f32 0.0, %v1228
    %v1230 = vpop.f32.mrb[0].mxu0
    %v1231 = vadd.f32 0.0, %v1230
    %1232 = vdwg.mxu0
    %v1233 = vadd.f32 %v676, %v1158
    %v1234 = vadd.f32 %v678, %v1160
    %v1235 = vadd.f32 %v789, %v1229
    %v1236 = vadd.f32 %v791, %v1231
    %v1237 = vxor.u32 %v1233, 2147483648
    %v1238 = vmul.f32 %v1237, 1.442695
    %v1239 = vpow.pop %v1238
    %v1240 = vadd.f32 %v1239, 1.0
    %v1241 = vrcp.pop %v1240
    %v1242 = vmul.f32 1.0, %v1241
    %v1243 = vxor.u32 %v1234, 2147483648
    %v1244 = vmul.f32 %v1243, 1.442695
    %v1245 = vpow.pop %v1244
    %v1246 = vadd.f32 %v1245, 1.0
    %v1247 = vrcp.pop %v1246
    %v1248 = vmul.f32 1.0, %v1247
    %v1249 = vtanh.pop %v1235
    %v1250 = vxor.u32 %v1236, 2147483648
    %v1251 = vmul.f32 %v1250, 1.442695
    %v1252 = vpow.pop %v1251
    %v1253 = vadd.f32 %v1252, 1.0
    %v1254 = vrcp.pop %v1253
    %v1255 = vmul.f32 1.0, %v1254
    %v1256 = vmul.f32 %v1248, 0.0
    %v1257 = vmul.f32 %v1242, %v1249
    %v1258 = vadd.f32 %v1256, %v1257
    %v1259 = vtanh.pop %v1258
    %v1260 = vmul.f32 %v1255, %v1259
    %1261 = vmatprep.subr.mxu0 %v794
    %1262 = vmatpush1.msra.mxu0 %v793
    %1263 = vmatprep.subr.mxu0 %v798
    %1264 = vmatpush1.msra.mxu0 %v797
    %1265 = vmatprep.subr.mxu0 %v802
    %1266 = vmatpush1.msra.mxu0 %v801
    %1267 = vmatprep.subr.mxu0 %v806
    %1268 = vmatpush1.msra.mxu0 %v805
    %1269 = vmatprep.subr.mxu0 %v810
    %1270 = vmatpush1.msra.mxu0 %v809
    %1271 = vmatprep.subr.mxu0 %v814
    %1272 = vmatpush1.msra.mxu0 %v813
    %1273 = vmatprep.subr.mxu0 %v818
    %1274 = vmatpush1.msra.mxu0 %v817
    %1275 = vmatprep.subr.mxu0 %v822
    %1276 = vmatpush1.msra.mxu0 %v821
    %1277 = vmatprep.subr.mxu0 %v826
    %1278 = vmatpush1.msra.mxu0 %v825
    %1279 = vmatprep.subr.mxu0 %v830
    %1280 = vmatpush1.msra.mxu0 %v829
    %1281 = vmatprep.subr.mxu0 %v834
    %1282 = vmatpush1.msra.mxu0 %v833
    %1283 = vmatprep.subr.mxu0 %v838
    %1284 = vmatpush1.msra.mxu0 %v837
    %1285 = vmatprep.subr.mxu0 %v842
    %1286 = vmatpush1.msra.mxu0 %v841
    %1287 = vmatprep.subr.mxu0 %v846
    %1288 = vmatpush1.msra.mxu0 %v845
    %1289 = vmatprep.subr.mxu0 %v850
    %1290 = vmatpush1.msra.mxu0 %v849
    %1291 = vmatprep.subr.mxu0 %v854
    %1292 = vmatpush1.msra.mxu0 %v853
    %1293 = vmatprep.subr.mxu0 0.0
    %1294 = vmatpush1.msra.mxu0 0.0
    %1295 = vmatprep.subr.mxu0 0.0
    %1296 = vmatpush1.msra.mxu0 0.0
    %1297 = vmatprep.subr.mxu0 0.0
    %1298 = vmatpush1.msra.mxu0 0.0
    %1299 = vmatprep.subr.mxu0 0.0
    %1300 = vmatpush1.msra.mxu0 0.0
    %1301 = vmatprep.subr.mxu0 0.0
    %1302 = vmatpush1.msra.mxu0 0.0
    %1303 = vmatprep.subr.mxu0 0.0
    %1304 = vmatpush1.msra.mxu0 0.0
    %1305 = vmatprep.subr.mxu0 0.0
    %1306 = vmatpush1.msra.mxu0 0.0
    %1307 = vmatprep.subr.mxu0 0.0
    %1308 = vmatpush1.msra.mxu0 0.0
    %1309 = vmatprep.subr.mxu0 0.0
    %1310 = vmatpush1.msra.mxu0 0.0
    %1311 = vmatprep.subr.mxu0 0.0
    %1312 = vmatpush1.msra.mxu0 0.0
    %1313 = vmatprep.subr.mxu0 0.0
    %1314 = vmatpush1.msra.mxu0 0.0
    %1315 = vmatprep.subr.mxu0 0.0
    %1316 = vmatpush1.msra.mxu0 0.0
    %1317 = vmatprep.subr.mxu0 0.0
    %1318 = vmatpush1.msra.mxu0 0.0
    %1319 = vmatprep.subr.mxu0 0.0
    %1320 = vmatpush1.msra.mxu0 0.0
    %1321 = vmatprep.subr.mxu0 0.0
    %1322 = vmatpush1.msra.mxu0 0.0
    %1323 = vmatprep.subr.mxu0 0.0
    %1324 = vmatpush1.msra.mxu0 0.0
    %1325 = vmatprep.mubr.f32.mxu0 0.0
    %1326 = vmatmul.mubr.f32.gmra.mrb[0].mxu0 %v1090
    %v1327 = vpop.f32.mrb[0].mxu0
    %v1328 = vadd.f32 0.0, %v1327
    %v1329 = vpop.f32.mrb[0].mxu0
    %v1330 = vadd.f32 0.0, %v1329
    %1331 = vdwg.mxu0
    %1332 = vmatprep.subr.mxu0 %v796
    %1333 = vmatpush1.msra.mxu0 %v795
    %1334 = vmatprep.subr.mxu0 %v800
    %1335 = vmatpush1.msra.mxu0 %v799
    %1336 = vmatprep.subr.mxu0 %v804
    %1337 = vmatpush1.msra.mxu0 %v803
    %1338 = vmatprep.subr.mxu0 %v808
    %1339 = vmatpush1.msra.mxu0 %v807
    %1340 = vmatprep.subr.mxu0 %v812
    %1341 = vmatpush1.msra.mxu0 %v811
    %1342 = vmatprep.subr.mxu0 %v816
    %1343 = vmatpush1.msra.mxu0 %v815
    %1344 = vmatprep.subr.mxu0 %v820
    %1345 = vmatpush1.msra.mxu0 %v819
    %1346 = vmatprep.subr.mxu0 %v824
    %1347 = vmatpush1.msra.mxu0 %v823
    %1348 = vmatprep.subr.mxu0 %v828
    %1349 = vmatpush1.msra.mxu0 %v827
    %1350 = vmatprep.subr.mxu0 %v832
    %1351 = vmatpush1.msra.mxu0 %v831
    %1352 = vmatprep.subr.mxu0 %v836
    %1353 = vmatpush1.msra.mxu0 %v835
    %1354 = vmatprep.subr.mxu0 %v840
    %1355 = vmatpush1.msra.mxu0 %v839
    %1356 = vmatprep.subr.mxu0 %v844
    %1357 = vmatpush1.msra.mxu0 %v843
    %1358 = vmatprep.subr.mxu0 %v848
    %1359 = vmatpush1.msra.mxu0 %v847
    %1360 = vmatprep.subr.mxu0 %v852
    %1361 = vmatpush1.msra.mxu0 %v851
    %1362 = vmatprep.subr.mxu0 %v856
    %1363 = vmatpush1.msra.mxu0 %v855
    %1364 = vmatprep.subr.mxu0 0.0
    %1365 = vmatpush1.msra.mxu0 0.0
    %1366 = vmatprep.subr.mxu0 0.0
    %1367 = vmatpush1.msra.mxu0 0.0
    %1368 = vmatprep.subr.mxu0 0.0
    %1369 = vmatpush1.msra.mxu0 0.0
    %1370 = vmatprep.subr.mxu0 0.0
    %1371 = vmatpush1.msra.mxu0 0.0
    %1372 = vmatprep.subr.mxu0 0.0
    %1373 = vmatpush1.msra.mxu0 0.0
    %1374 = vmatprep.subr.mxu0 0.0
    %1375 = vmatpush1.msra.mxu0 0.0
    %1376 = vmatprep.subr.mxu0 0.0
    %1377 = vmatpush1.msra.mxu0 0.0
    %1378 = vmatprep.subr.mxu0 0.0
    %1379 = vmatpush1.msra.mxu0 0.0
    %1380 = vmatprep.subr.mxu0 0.0
    %1381 = vmatpush1.msra.mxu0 0.0
    %1382 = vmatprep.subr.mxu0 0.0
    %1383 = vmatpush1.msra.mxu0 0.0
    %1384 = vmatprep.subr.mxu0 0.0
    %1385 = vmatpush1.msra.mxu0 0.0
    %1386 = vmatprep.subr.mxu0 0.0
    %1387 = vmatpush1.msra.mxu0 0.0
    %1388 = vmatprep.subr.mxu0 0.0
    %1389 = vmatpush1.msra.mxu0 0.0
    %1390 = vmatprep.subr.mxu0 0.0
    %1391 = vmatpush1.msra.mxu0 0.0
    %1392 = vmatprep.subr.mxu0 0.0
    %1393 = vmatpush1.msra.mxu0 0.0
    %1394 = vmatprep.subr.mxu0 0.0
    %1395 = vmatpush1.msra.mxu0 0.0
    %1396 = vmatprep.mubr.f32.mxu0 0.0
    %1397 = vmatmul.mubr.f32.gmra.mrb[0].mxu0 %v1090
    %v1398 = vpop.f32.mrb[0].mxu0
    %v1399 = vadd.f32 0.0, %v1398
    %v1400 = vpop.f32.mrb[0].mxu0
    %v1401 = vadd.f32 0.0, %v1400
    %1402 = vdwg.mxu0
    %v1403 = vadd.f32 %v414, %v1328
    %v1404 = vadd.f32 %v416, %v1330
    %v1405 = vadd.f32 %v527, %v1399
    %v1406 = vadd.f32 %v529, %v1401
    %v1407 = vxor.u32 %v1403, 2147483648
    %v1408 = vmul.f32 %v1407, 1.442695
    %v1409 = vpow.pop %v1408
    %v1410 = vadd.f32 %v1409, 1.0
    %v1411 = vrcp.pop %v1410
    %v1412 = vmul.f32 1.0, %v1411
    %v1413 = vxor.u32 %v1404, 2147483648
    %v1414 = vmul.f32 %v1413, 1.442695
    %v1415 = vpow.pop %v1414
    %v1416 = vadd.f32 %v1415, 1.0
    %v1417 = vrcp.pop %v1416
    %v1418 = vmul.f32 1.0, %v1417
    %v1419 = vtanh.pop %v1405
    %v1420 = vxor.u32 %v1406, 2147483648
    %v1421 = vmul.f32 %v1420, 1.442695
    %v1422 = vpow.pop %v1421
    %v1423 = vadd.f32 %v1422, 1.0
    %v1424 = vrcp.pop %v1423
    %v1425 = vmul.f32 1.0, %v1424
    %v1426 = vmul.f32 %v1418, %v1088
    %v1427 = vmul.f32 %v1412, %v1419
    %v1428 = vadd.f32 %v1426, %v1427
    %v1429 = vtanh.pop %v1428
    %v1430 = vmul.f32 %v1425, %v1429
    %1431 = vmatprep.subr.mxu0 %v858
    %1432 = vmatpush1.msra.mxu0 %v857
    %1433 = vmatprep.subr.mxu0 %v862
    %1434 = vmatpush1.msra.mxu0 %v861
    %1435 = vmatprep.subr.mxu0 %v866
    %1436 = vmatpush1.msra.mxu0 %v865
    %1437 = vmatprep.subr.mxu0 %v870
    %1438 = vmatpush1.msra.mxu0 %v869
    %1439 = vmatprep.subr.mxu0 %v874
    %1440 = vmatpush1.msra.mxu0 %v873
    %1441 = vmatprep.subr.mxu0 %v878
    %1442 = vmatpush1.msra.mxu0 %v877
    %1443 = vmatprep.subr.mxu0 %v882
    %1444 = vmatpush1.msra.mxu0 %v881
    %1445 = vmatprep.subr.mxu0 %v886
    %1446 = vmatpush1.msra.mxu0 %v885
    %1447 = vmatprep.subr.mxu0 %v890
    %1448 = vmatpush1.msra.mxu0 %v889
    %1449 = vmatprep.subr.mxu0 %v894
    %1450 = vmatpush1.msra.mxu0 %v893
    %1451 = vmatprep.subr.mxu0 %v898
    %1452 = vmatpush1.msra.mxu0 %v897
    %1453 = vmatprep.subr.mxu0 %v902
    %1454 = vmatpush1.msra.mxu0 %v901
    %1455 = vmatprep.subr.mxu0 %v906
    %1456 = vmatpush1.msra.mxu0 %v905
    %1457 = vmatprep.subr.mxu0 %v910
    %1458 = vmatpush1.msra.mxu0 %v909
    %1459 = vmatprep.subr.mxu0 %v914
    %1460 = vmatpush1.msra.mxu0 %v913
    %1461 = vmatprep.subr.mxu0 %v918
    %1462 = vmatpush1.msra.mxu0 %v917
    %1463 = vmatprep.subr.mxu0 0.0
    %1464 = vmatpush1.msra.mxu0 0.0
    %1465 = vmatprep.subr.mxu0 0.0
    %1466 = vmatpush1.msra.mxu0 0.0
    %1467 = vmatprep.subr.mxu0 0.0
    %1468 = vmatpush1.msra.mxu0 0.0
    %1469 = vmatprep.subr.mxu0 0.0
    %1470 = vmatpush1.msra.mxu0 0.0
    %1471 = vmatprep.subr.mxu0 0.0
    %1472 = vmatpush1.msra.mxu0 0.0
    %1473 = vmatprep.subr.mxu0 0.0
    %1474 = vmatpush1.msra.mxu0 0.0
    %1475 = vmatprep.subr.mxu0 0.0
    %1476 = vmatpush1.msra.mxu0 0.0
    %1477 = vmatprep.subr.mxu0 0.0
    %1478 = vmatpush1.msra.mxu0 0.0
    %1479 = vmatprep.subr.mxu0 0.0
    %1480 = vmatpush1.msra.mxu0 0.0
    %1481 = vmatprep.subr.mxu0 0.0
    %1482 = vmatpush1.msra.mxu0 0.0
    %1483 = vmatprep.subr.mxu0 0.0
    %1484 = vmatpush1.msra.mxu0 0.0
    %1485 = vmatprep.subr.mxu0 0.0
    %1486 = vmatpush1.msra.mxu0 0.0
    %1487 = vmatprep.subr.mxu0 0.0
    %1488 = vmatpush1.msra.mxu0 0.0
    %1489 = vmatprep.subr.mxu0 0.0
    %1490 = vmatpush1.msra.mxu0 0.0
    %1491 = vmatprep.subr.mxu0 0.0
    %1492 = vmatpush1.msra.mxu0 0.0
    %1493 = vmatprep.subr.mxu0 0.0
    %1494 = vmatpush1.msra.mxu0 0.0
    %1495 = vmatprep.mubr.f32.mxu0 0.0
    %1496 = vmatmul.mubr.f32.gmra.mrb[0].mxu0 %v1260
    %v1497 = vpop.f32.mrb[0].mxu0
    %v1498 = vadd.f32 0.0, %v1497
    %v1499 = vpop.f32.mrb[0].mxu0
    %v1500 = vadd.f32 0.0, %v1499
    %1501 = vdwg.mxu0
    %1502 = vmatprep.subr.mxu0 %v860
    %1503 = vmatpush1.msra.mxu0 %v859
    %1504 = vmatprep.subr.mxu0 %v864
    %1505 = vmatpush1.msra.mxu0 %v863
    %1506 = vmatprep.subr.mxu0 %v868
    %1507 = vmatpush1.msra.mxu0 %v867
    %1508 = vmatprep.subr.mxu0 %v872
    %1509 = vmatpush1.msra.mxu0 %v871
    %1510 = vmatprep.subr.mxu0 %v876
    %1511 = vmatpush1.msra.mxu0 %v875
    %1512 = vmatprep.subr.mxu0 %v880
    %1513 = vmatpush1.msra.mxu0 %v879
    %1514 = vmatprep.subr.mxu0 %v884
    %1515 = vmatpush1.msra.mxu0 %v883
    %1516 = vmatprep.subr.mxu0 %v888
    %1517 = vmatpush1.msra.mxu0 %v887
    %1518 = vmatprep.subr.mxu0 %v892
    %1519 = vmatpush1.msra.mxu0 %v891
    %1520 = vmatprep.subr.mxu0 %v896
    %1521 = vmatpush1.msra.mxu0 %v895
    %1522 = vmatprep.subr.mxu0 %v900
    %1523 = vmatpush1.msra.mxu0 %v899
    %1524 = vmatprep.subr.mxu0 %v904
    %1525 = vmatpush1.msra.mxu0 %v903
    %1526 = vmatprep.subr.mxu0 %v908
    %1527 = vmatpush1.msra.mxu0 %v907
    %1528 = vmatprep.subr.mxu0 %v912
    %1529 = vmatpush1.msra.mxu0 %v911
    %1530 = vmatprep.subr.mxu0 %v916
    %1531 = vmatpush1.msra.mxu0 %v915
    %1532 = vmatprep.subr.mxu0 %v920
    %1533 = vmatpush1.msra.mxu0 %v919
    %1534 = vmatprep.subr.mxu0 0.0
    %1535 = vmatpush1.msra.mxu0 0.0
    %1536 = vmatprep.subr.mxu0 0.0
    %1537 = vmatpush1.msra.mxu0 0.0
    %1538 = vmatprep.subr.mxu0 0.0
    %1539 = vmatpush1.msra.mxu0 0.0
    %1540 = vmatprep.subr.mxu0 0.0
    %1541 = vmatpush1.msra.mxu0 0.0
    %1542 = vmatprep.subr.mxu0 0.0
    %1543 = vmatpush1.msra.mxu0 0.0
    %1544 = vmatprep.subr.mxu0 0.0
    %1545 = vmatpush1.msra.mxu0 0.0
    %1546 = vmatprep.subr.mxu0 0.0
    %1547 = vmatpush1.msra.mxu0 0.0
    %1548 = vmatprep.subr.mxu0 0.0
    %1549 = vmatpush1.msra.mxu0 0.0
    %1550 = vmatprep.subr.mxu0 0.0
    %1551 = vmatpush1.msra.mxu0 0.0
    %1552 = vmatprep.subr.mxu0 0.0
    %1553 = vmatpush1.msra.mxu0 0.0
    %1554 = vmatprep.subr.mxu0 0.0
    %1555 = vmatpush1.msra.mxu0 0.0
    %1556 = vmatprep.subr.mxu0 0.0
    %1557 = vmatpush1.msra.mxu0 0.0
    %1558 = vmatprep.subr.mxu0 0.0
    %1559 = vmatpush1.msra.mxu0 0.0
    %1560 = vmatprep.subr.mxu0 0.0
    %1561 = vmatpush1.msra.mxu0 0.0
    %1562 = vmatprep.subr.mxu0 0.0
    %1563 = vmatpush1.msra.mxu0 0.0
    %1564 = vmatprep.subr.mxu0 0.0
    %1565 = vmatpush1.msra.mxu0 0.0
    %1566 = vmatprep.mubr.f32.mxu0 0.0
    %1567 = vmatmul.mubr.f32.gmra.mrb[0].mxu0 %v1260
    %v1568 = vpop.f32.mrb[0].mxu0
    %v1569 = vadd.f32 0.0, %v1568
    %v1570 = vpop.f32.mrb[0].mxu0
    %v1571 = vadd.f32 0.0, %v1570
    %1572 = vdwg.mxu0
    %v1573 = vadd.f32 %v670, %v1498
    %v1574 = vadd.f32 %v672, %v1500
    %v1575 = vadd.f32 %v783, %v1569
    %v1576 = vadd.f32 %v785, %v1571
    %v1577 = vxor.u32 %v1573, 2147483648
    %v1578 = vmul.f32 %v1577, 1.442695
    %v1579 = vpow.pop %v1578
    %v1580 = vadd.f32 %v1579, 1.0
    %v1581 = vrcp.pop %v1580
    %v1582 = vmul.f32 1.0, %v1581
    %v1583 = vxor.u32 %v1574, 2147483648
    %v1584 = vmul.f32 %v1583, 1.442695
    %v1585 = vpow.pop %v1584
    %v1586 = vadd.f32 %v1585, 1.0
    %v1587 = vrcp.pop %v1586
    %v1588 = vmul.f32 1.0, %v1587
    %v1589 = vtanh.pop %v1575
    %v1590 = vxor.u32 %v1576, 2147483648
    %v1591 = vmul.f32 %v1590, 1.442695
    %v1592 = vpow.pop %v1591
    %v1593 = vadd.f32 %v1592, 1.0
    %v1594 = vrcp.pop %v1593
    %v1595 = vmul.f32 1.0, %v1594
    %v1596 = vmul.f32 %v1588, %v1258
    %v1597 = vmul.f32 %v1582, %v1589
    %v1598 = vadd.f32 %v1596, %v1597
    %v1599 = vtanh.pop %v1598
    %v1600 = vmul.f32 %v1595, %v1599
    %1601 = vmatprep.subr.mxu0 %v794
    %1602 = vmatpush1.msra.mxu0 %v793
    %1603 = vmatprep.subr.mxu0 %v798
    %1604 = vmatpush1.msra.mxu0 %v797
    %1605 = vmatprep.subr.mxu0 %v802
    %1606 = vmatpush1.msra.mxu0 %v801
    %1607 = vmatprep.subr.mxu0 %v806
    %1608 = vmatpush1.msra.mxu0 %v805
    %1609 = vmatprep.subr.mxu0 %v810
    %1610 = vmatpush1.msra.mxu0 %v809
    %1611 = vmatprep.subr.mxu0 %v814
    %1612 = vmatpush1.msra.mxu0 %v813
    %1613 = vmatprep.subr.mxu0 %v818
    %1614 = vmatpush1.msra.mxu0 %v817
    %1615 = vmatprep.subr.mxu0 %v822
    %1616 = vmatpush1.msra.mxu0 %v821
    %1617 = vmatprep.subr.mxu0 %v826
    %1618 = vmatpush1.msra.mxu0 %v825
    %1619 = vmatprep.subr.mxu0 %v830
    %1620 = vmatpush1.msra.mxu0 %v829
    %1621 = vmatprep.subr.mxu0 %v834
    %1622 = vmatpush1.msra.mxu0 %v833
    %1623 = vmatprep.subr.mxu0 %v838
    %1624 = vmatpush1.msra.mxu0 %v837
    %1625 = vmatprep.subr.mxu0 %v842
    %1626 = vmatpush1.msra.mxu0 %v841
    %1627 = vmatprep.subr.mxu0 %v846
    %1628 = vmatpush1.msra.mxu0 %v845
    %1629 = vmatprep.subr.mxu0 %v850
    %1630 = vmatpush1.msra.mxu0 %v849
    %1631 = vmatprep.subr.mxu0 %v854
    %1632 = vmatpush1.msra.mxu0 %v853
    %1633 = vmatprep.subr.mxu0 0.0
    %1634 = vmatpush1.msra.mxu0 0.0
    %1635 = vmatprep.subr.mxu0 0.0
    %1636 = vmatpush1.msra.mxu0 0.0
    %1637 = vmatprep.subr.mxu0 0.0
    %1638 = vmatpush1.msra.mxu0 0.0
    %1639 = vmatprep.subr.mxu0 0.0
    %1640 = vmatpush1.msra.mxu0 0.0
    %1641 = vmatprep.subr.mxu0 0.0
    %1642 = vmatpush1.msra.mxu0 0.0
    %1643 = vmatprep.subr.mxu0 0.0
    %1644 = vmatpush1.msra.mxu0 0.0
    %1645 = vmatprep.subr.mxu0 0.0
    %1646 = vmatpush1.msra.mxu0 0.0
    %1647 = vmatprep.subr.mxu0 0.0
    %1648 = vmatpush1.msra.mxu0 0.0
    %1649 = vmatprep.subr.mxu0 0.0
    %1650 = vmatpush1.msra.mxu0 0.0
    %1651 = vmatprep.subr.mxu0 0.0
    %1652 = vmatpush1.msra.mxu0 0.0
    %1653 = vmatprep.subr.mxu0 0.0
    %1654 = vmatpush1.msra.mxu0 0.0
    %1655 = vmatprep.subr.mxu0 0.0
    %1656 = vmatpush1.msra.mxu0 0.0
    %1657 = vmatprep.subr.mxu0 0.0
    %1658 = vmatpush1.msra.mxu0 0.0
    %1659 = vmatprep.subr.mxu0 0.0
    %1660 = vmatpush1.msra.mxu0 0.0
    %1661 = vmatprep.subr.mxu0 0.0
    %1662 = vmatpush1.msra.mxu0 0.0
    %1663 = vmatprep.subr.mxu0 0.0
    %1664 = vmatpush1.msra.mxu0 0.0
    %1665 = vmatprep.mubr.f32.mxu0 0.0
    %1666 = vmatmul.mubr.f32.gmra.mrb[0].mxu0 %v1430
    %v1667 = vpop.f32.mrb[0].mxu0
    %v1668 = vadd.f32 0.0, %v1667
    %v1669 = vpop.f32.mrb[0].mxu0
    %v1670 = vadd.f32 0.0, %v1669
    %1671 = vdwg.mxu0
    %1672 = vmatprep.subr.mxu0 %v796
    %1673 = vmatpush1.msra.mxu0 %v795
    %1674 = vmatprep.subr.mxu0 %v800
    %1675 = vmatpush1.msra.mxu0 %v799
    %1676 = vmatprep.subr.mxu0 %v804
    %1677 = vmatpush1.msra.mxu0 %v803
    %1678 = vmatprep.subr.mxu0 %v808
    %1679 = vmatpush1.msra.mxu0 %v807
    %1680 = vmatprep.subr.mxu0 %v812
    %1681 = vmatpush1.msra.mxu0 %v811
    %1682 = vmatprep.subr.mxu0 %v816
    %1683 = vmatpush1.msra.mxu0 %v815
    %1684 = vmatprep.subr.mxu0 %v820
    %1685 = vmatpush1.msra.mxu0 %v819
    %1686 = vmatprep.subr.mxu0 %v824
    %1687 = vmatpush1.msra.mxu0 %v823
    %1688 = vmatprep.subr.mxu0 %v828
    %1689 = vmatpush1.msra.mxu0 %v827
    %1690 = vmatprep.subr.mxu0 %v832
    %1691 = vmatpush1.msra.mxu0 %v831
    %1692 = vmatprep.subr.mxu0 %v836
    %1693 = vmatpush1.msra.mxu0 %v835
    %1694 = vmatprep.subr.mxu0 %v840
    %1695 = vmatpush1.msra.mxu0 %v839
    %1696 = vmatprep.subr.mxu0 %v844
    %1697 = vmatpush1.msra.mxu0 %v843
    %1698 = vmatprep.subr.mxu0 %v848
    %1699 = vmatpush1.msra.mxu0 %v847
    %1700 = vmatprep.subr.mxu0 %v852
    %1701 = vmatpush1.msra.mxu0 %v851
    %1702 = vmatprep.subr.mxu0 %v856
    %1703 = vmatpush1.msra.mxu0 %v855
    %1704 = vmatprep.subr.mxu0 0.0
    %1705 = vmatpush1.msra.mxu0 0.0
    %1706 = vmatprep.subr.mxu0 0.0
    %1707 = vmatpush1.msra.mxu0 0.0
    %1708 = vmatprep.subr.mxu0 0.0
    %1709 = vmatpush1.msra.mxu0 0.0
    %1710 = vmatprep.subr.mxu0 0.0
    %1711 = vmatpush1.msra.mxu0 0.0
    %1712 = vmatprep.subr.mxu0 0.0
    %1713 = vmatpush1.msra.mxu0 0.0
    %1714 = vmatprep.subr.mxu0 0.0
    %1715 = vmatpush1.msra.mxu0 0.0
    %1716 = vmatprep.subr.mxu0 0.0
    %1717 = vmatpush1.msra.mxu0 0.0
    %1718 = vmatprep.subr.mxu0 0.0
    %1719 = vmatpush1.msra.mxu0 0.0
    %1720 = vmatprep.subr.mxu0 0.0
    %1721 = vmatpush1.msra.mxu0 0.0
    %1722 = vmatprep.subr.mxu0 0.0
    %1723 = vmatpush1.msra.mxu0 0.0
    %1724 = vmatprep.subr.mxu0 0.0
    %1725 = vmatpush1.msra.mxu0 0.0
    %1726 = vmatprep.subr.mxu0 0.0
    %1727 = vmatpush1.msra.mxu0 0.0
    %1728 = vmatprep.subr.mxu0 0.0
    %1729 = vmatpush1.msra.mxu0 0.0
    %1730 = vmatprep.subr.mxu0 0.0
    %1731 = vmatpush1.msra.mxu0 0.0
    %1732 = vmatprep.subr.mxu0 0.0
    %1733 = vmatpush1.msra.mxu0 0.0
    %1734 = vmatprep.subr.mxu0 0.0
    %1735 = vmatpush1.msra.mxu0 0.0
    %1736 = vmatprep.mubr.f32.mxu0 0.0
    %1737 = vmatmul.mubr.f32.gmra.mrb[0].mxu0 %v1430
    %v1738 = vpop.f32.mrb[0].mxu0
    %v1739 = vadd.f32 0.0, %v1738
    %v1740 = vpop.f32.mrb[0].mxu0
    %v1741 = vadd.f32 0.0, %v1740
    %1742 = vdwg.mxu0
    %v1743 = vadd.f32 %v420, %v1668
    %v1744 = vadd.f32 %v422, %v1670
    %v1745 = vadd.f32 %v533, %v1739
    %v1746 = vadd.f32 %v535, %v1741
    %v1747 = vxor.u32 %v1743, 2147483648
    %v1748 = vmul.f32 %v1747, 1.442695
    %v1749 = vpow.pop %v1748
    %v1750 = vadd.f32 %v1749, 1.0
    %v1751 = vrcp.pop %v1750
    %v1752 = vmul.f32 1.0, %v1751
    %v1753 = vxor.u32 %v1744, 2147483648
    %v1754 = vmul.f32 %v1753, 1.442695
    %v1755 = vpow.pop %v1754
    %v1756 = vadd.f32 %v1755, 1.0
    %v1757 = vrcp.pop %v1756
    %v1758 = vmul.f32 1.0, %v1757
    %v1759 = vtanh.pop %v1745
    %v1760 = vxor.u32 %v1746, 2147483648
    %v1761 = vmul.f32 %v1760, 1.442695
    %v1762 = vpow.pop %v1761
    %v1763 = vadd.f32 %v1762, 1.0
    %v1764 = vrcp.pop %v1763
    %v1765 = vmul.f32 1.0, %v1764
    %v1766 = vmul.f32 %v1758, %v1428
    %v1767 = vmul.f32 %v1752, %v1759
    %v1768 = vadd.f32 %v1766, %v1767
    %v1769 = vtanh.pop %v1768
    %v1770 = vmul.f32 %v1765, %v1769
    %1771 = vmatprep.subr.mxu0 %v858
    %1772 = vmatpush1.msra.mxu0 %v857
    %1773 = vmatprep.subr.mxu0 %v862
    %1774 = vmatpush1.msra.mxu0 %v861
    %1775 = vmatprep.subr.mxu0 %v866
    %1776 = vmatpush1.msra.mxu0 %v865
    %1777 = vmatprep.subr.mxu0 %v870
    %1778 = vmatpush1.msra.mxu0 %v869
    %1779 = vmatprep.subr.mxu0 %v874
    %1780 = vmatpush1.msra.mxu0 %v873
    %1781 = vmatprep.subr.mxu0 %v878
    %1782 = vmatpush1.msra.mxu0 %v877
    %1783 = vmatprep.subr.mxu0 %v882
    %1784 = vmatpush1.msra.mxu0 %v881
    %1785 = vmatprep.subr.mxu0 %v886
    %1786 = vmatpush1.msra.mxu0 %v885
    %1787 = vmatprep.subr.mxu0 %v890
    %1788 = vmatpush1.msra.mxu0 %v889
    %1789 = vmatprep.subr.mxu0 %v894
    %1790 = vmatpush1.msra.mxu0 %v893
    %1791 = vmatprep.subr.mxu0 %v898
    %1792 = vmatpush1.msra.mxu0 %v897
    %1793 = vmatprep.subr.mxu0 %v902
    %1794 = vmatpush1.msra.mxu0 %v901
    %1795 = vmatprep.subr.mxu0 %v906
    %1796 = vmatpush1.msra.mxu0 %v905
    %1797 = vmatprep.subr.mxu0 %v910
    %1798 = vmatpush1.msra.mxu0 %v909
    %1799 = vmatprep.subr.mxu0 %v914
    %1800 = vmatpush1.msra.mxu0 %v913
    %1801 = vmatprep.subr.mxu0 %v918
    %1802 = vmatpush1.msra.mxu0 %v917
    %1803 = vmatprep.subr.mxu0 0.0
    %1804 = vmatpush1.msra.mxu0 0.0
    %1805 = vmatprep.subr.mxu0 0.0
    %1806 = vmatpush1.msra.mxu0 0.0
    %1807 = vmatprep.subr.mxu0 0.0
    %1808 = vmatpush1.msra.mxu0 0.0
    %1809 = vmatprep.subr.mxu0 0.0
    %1810 = vmatpush1.msra.mxu0 0.0
    %1811 = vmatprep.subr.mxu0 0.0
    %1812 = vmatpush1.msra.mxu0 0.0
    %1813 = vmatprep.subr.mxu0 0.0
    %1814 = vmatpush1.msra.mxu0 0.0
    %1815 = vmatprep.subr.mxu0 0.0
    %1816 = vmatpush1.msra.mxu0 0.0
    %1817 = vmatprep.subr.mxu0 0.0
    %1818 = vmatpush1.msra.mxu0 0.0
    %1819 = vmatprep.subr.mxu0 0.0
    %1820 = vmatpush1.msra.mxu0 0.0
    %1821 = vmatprep.subr.mxu0 0.0
    %1822 = vmatpush1.msra.mxu0 0.0
    %1823 = vmatprep.subr.mxu0 0.0
    %1824 = vmatpush1.msra.mxu0 0.0
    %1825 = vmatprep.subr.mxu0 0.0
    %1826 = vmatpush1.msra.mxu0 0.0
    %1827 = vmatprep.subr.mxu0 0.0
    %1828 = vmatpush1.msra.mxu0 0.0
    %1829 = vmatprep.subr.mxu0 0.0
    %1830 = vmatpush1.msra.mxu0 0.0
    %1831 = vmatprep.subr.mxu0 0.0
    %1832 = vmatpush1.msra.mxu0 0.0
    %1833 = vmatprep.subr.mxu0 0.0
    %1834 = vmatpush1.msra.mxu0 0.0
    %1835 = vmatprep.mubr.f32.mxu0 0.0
    %1836 = vmatmul.mubr.f32.gmra.mrb[0].mxu0 %v1600
    %v1837 = vpop.f32.mrb[0].mxu0
    %v1838 = vadd.f32 0.0, %v1837
    %v1839 = vpop.f32.mrb[0].mxu0
    %v1840 = vadd.f32 0.0, %v1839
    %1841 = vdwg.mxu0
    %1842 = vmatprep.subr.mxu0 %v860
    %1843 = vmatpush1.msra.mxu0 %v859
    %1844 = vmatprep.subr.mxu0 %v864
    %1845 = vmatpush1.msra.mxu0 %v863
    %1846 = vmatprep.subr.mxu0 %v868
    %1847 = vmatpush1.msra.mxu0 %v867
    %1848 = vmatprep.subr.mxu0 %v872
    %1849 = vmatpush1.msra.mxu0 %v871
    %1850 = vmatprep.subr.mxu0 %v876
    %1851 = vmatpush1.msra.mxu0 %v875
    %1852 = vmatprep.subr.mxu0 %v880
    %1853 = vmatpush1.msra.mxu0 %v879
    %1854 = vmatprep.subr.mxu0 %v884
    %1855 = vmatpush1.msra.mxu0 %v883
    %1856 = vmatprep.subr.mxu0 %v888
    %1857 = vmatpush1.msra.mxu0 %v887
    %1858 = vmatprep.subr.mxu0 %v892
    %1859 = vmatpush1.msra.mxu0 %v891
    %1860 = vmatprep.subr.mxu0 %v896
    %1861 = vmatpush1.msra.mxu0 %v895
    %1862 = vmatprep.subr.mxu0 %v900
    %1863 = vmatpush1.msra.mxu0 %v899
    %1864 = vmatprep.subr.mxu0 %v904
    %1865 = vmatpush1.msra.mxu0 %v903
    %1866 = vmatprep.subr.mxu0 %v908
    %1867 = vmatpush1.msra.mxu0 %v907
    %1868 = vmatprep.subr.mxu0 %v912
    %1869 = vmatpush1.msra.mxu0 %v911
    %1870 = vmatprep.subr.mxu0 %v916
    %1871 = vmatpush1.msra.mxu0 %v915
    %1872 = vmatprep.subr.mxu0 %v920
    %1873 = vmatpush1.msra.mxu0 %v919
    %1874 = vmatprep.subr.mxu0 0.0
    %1875 = vmatpush1.msra.mxu0 0.0
    %1876 = vmatprep.subr.mxu0 0.0
    %1877 = vmatpush1.msra.mxu0 0.0
    %1878 = vmatprep.subr.mxu0 0.0
    %1879 = vmatpush1.msra.mxu0 0.0
    %1880 = vmatprep.subr.mxu0 0.0
    %1881 = vmatpush1.msra.mxu0 0.0
    %1882 = vmatprep.subr.mxu0 0.0
    %1883 = vmatpush1.msra.mxu0 0.0
    %1884 = vmatprep.subr.mxu0 0.0
    %1885 = vmatpush1.msra.mxu0 0.0
    %1886 = vmatprep.subr.mxu0 0.0
    %1887 = vmatpush1.msra.mxu0 0.0
    %1888 = vmatprep.subr.mxu0 0.0
    %1889 = vmatpush1.msra.mxu0 0.0
    %1890 = vmatprep.subr.mxu0 0.0
    %1891 = vmatpush1.msra.mxu0 0.0
    %1892 = vmatprep.subr.mxu0 0.0
    %1893 = vmatpush1.msra.mxu0 0.0
    %1894 = vmatprep.subr.mxu0 0.0
    %1895 = vmatpush1.msra.mxu0 0.0
    %1896 = vmatprep.subr.mxu0 0.0
    %1897 = vmatpush1.msra.mxu0 0.0
    %1898 = vmatprep.subr.mxu0 0.0
    %1899 = vmatpush1.msra.mxu0 0.0
    %1900 = vmatprep.subr.mxu0 0.0
    %1901 = vmatpush1.msra.mxu0 0.0
    %1902 = vmatprep.subr.mxu0 0.0
    %1903 = vmatpush1.msra.mxu0 0.0
    %1904 = vmatprep.subr.mxu0 0.0
    %1905 = vmatpush1.msra.mxu0 0.0
    %1906 = vmatprep.mubr.f32.mxu0 0.0
    %1907 = vmatmul.mubr.f32.gmra.mrb[0].mxu0 %v1600
    %v1908 = vpop.f32.mrb[0].mxu0
    %v1909 = vadd.f32 0.0, %v1908
    %v1910 = vpop.f32.mrb[0].mxu0
    %v1911 = vadd.f32 0.0, %v1910
    %1912 = vdwg.mxu0
    %v1913 = vadd.f32 %v664, %v1838
    %v1914 = vadd.f32 %v666, %v1840
    %v1915 = vadd.f32 %v777, %v1909
    %v1916 = vadd.f32 %v779, %v1911
    %v1917 = vxor.u32 %v1913, 2147483648
    %v1918 = vmul.f32 %v1917, 1.442695
    %v1919 = vpow.pop %v1918
    %v1920 = vadd.f32 %v1919, 1.0
    %v1921 = vrcp.pop %v1920
    %v1922 = vmul.f32 1.0, %v1921
    %v1923 = vxor.u32 %v1914, 2147483648
    %v1924 = vmul.f32 %v1923, 1.442695
    %v1925 = vpow.pop %v1924
    %v1926 = vadd.f32 %v1925, 1.0
    %v1927 = vrcp.pop %v1926
    %v1928 = vmul.f32 1.0, %v1927
    %v1929 = vtanh.pop %v1915
    %v1930 = vxor.u32 %v1916, 2147483648
    %v1931 = vmul.f32 %v1930, 1.442695
    %v1932 = vpow.pop %v1931
    %v1933 = vadd.f32 %v1932, 1.0
    %v1934 = vrcp.pop %v1933
    %v1935 = vmul.f32 1.0, %v1934
    %v1936 = vmul.f32 %v1928, %v1598
    %v1937 = vmul.f32 %v1922, %v1929
    %v1938 = vadd.f32 %v1936, %v1937
    %v1939 = vtanh.pop %v1938
    %v1940 = vmul.f32 %v1935, %v1939
    %1941 = vmatprep.subr.mxu0 %v794
    %1942 = vmatpush1.msra.mxu0 %v793
    %1943 = vmatprep.subr.mxu0 %v798
    %1944 = vmatpush1.msra.mxu0 %v797
    %1945 = vmatprep.subr.mxu0 %v802
    %1946 = vmatpush1.msra.mxu0 %v801
    %1947 = vmatprep.subr.mxu0 %v806
    %1948 = vmatpush1.msra.mxu0 %v805
    %1949 = vmatprep.subr.mxu0 %v810
    %1950 = vmatpush1.msra.mxu0 %v809
    %1951 = vmatprep.subr.mxu0 %v814
    %1952 = vmatpush1.msra.mxu0 %v813
    %1953 = vmatprep.subr.mxu0 %v818
    %1954 = vmatpush1.msra.mxu0 %v817
    %1955 = vmatprep.subr.mxu0 %v822
    %1956 = vmatpush1.msra.mxu0 %v821
    %1957 = vmatprep.subr.mxu0 %v826
    %1958 = vmatpush1.msra.mxu0 %v825
    %1959 = vmatprep.subr.mxu0 %v830
    %1960 = vmatpush1.msra.mxu0 %v829
    %1961 = vmatprep.subr.mxu0 %v834
    %1962 = vmatpush1.msra.mxu0 %v833
    %1963 = vmatprep.subr.mxu0 %v838
    %1964 = vmatpush1.msra.mxu0 %v837
    %1965 = vmatprep.subr.mxu0 %v842
    %1966 = vmatpush1.msra.mxu0 %v841
    %1967 = vmatprep.subr.mxu0 %v846
    %1968 = vmatpush1.msra.mxu0 %v845
    %1969 = vmatprep.subr.mxu0 %v850
    %1970 = vmatpush1.msra.mxu0 %v849
    %1971 = vmatprep.subr.mxu0 %v854
    %1972 = vmatpush1.msra.mxu0 %v853
    %1973 = vmatprep.subr.mxu0 0.0
    %1974 = vmatpush1.msra.mxu0 0.0
    %1975 = vmatprep.subr.mxu0 0.0
    %1976 = vmatpush1.msra.mxu0 0.0
    %1977 = vmatprep.subr.mxu0 0.0
    %1978 = vmatpush1.msra.mxu0 0.0
    %1979 = vmatprep.subr.mxu0 0.0
    %1980 = vmatpush1.msra.mxu0 0.0
    %1981 = vmatprep.subr.mxu0 0.0
    %1982 = vmatpush1.msra.mxu0 0.0
    %1983 = vmatprep.subr.mxu0 0.0
    %1984 = vmatpush1.msra.mxu0 0.0
    %1985 = vmatprep.subr.mxu0 0.0
    %1986 = vmatpush1.msra.mxu0 0.0
    %1987 = vmatprep.subr.mxu0 0.0
    %1988 = vmatpush1.msra.mxu0 0.0
    %1989 = vmatprep.subr.mxu0 0.0
    %1990 = vmatpush1.msra.mxu0 0.0
    %1991 = vmatprep.subr.mxu0 0.0
    %1992 = vmatpush1.msra.mxu0 0.0
    %1993 = vmatprep.subr.mxu0 0.0
    %1994 = vmatpush1.msra.mxu0 0.0
    %1995 = vmatprep.subr.mxu0 0.0
    %1996 = vmatpush1.msra.mxu0 0.0
    %1997 = vmatprep.subr.mxu0 0.0
    %1998 = vmatpush1.msra.mxu0 0.0
    %1999 = vmatprep.subr.mxu0 0.0
    %2000 = vmatpush1.msra.mxu0 0.0
    %2001 = vmatprep.subr.mxu0 0.0
    %2002 = vmatpush1.msra.mxu0 0.0
    %2003 = vmatprep.subr.mxu0 0.0
    %2004 = vmatpush1.msra.mxu0 0.0
    %2005 = vmatprep.mubr.f32.mxu0 0.0
    %2006 = vmatmul.mubr.f32.gmra.mrb[0].mxu0 %v1770
    %v2007 = vpop.f32.mrb[0].mxu0
    %v2008 = vadd.f32 0.0, %v2007
    %v2009 = vpop.f32.mrb[0].mxu0
    %v2010 = vadd.f32 0.0, %v2009
    %2011 = vdwg.mxu0
    %2012 = vmatprep.subr.mxu0 %v796
    %2013 = vmatpush1.msra.mxu0 %v795
    %2014 = vmatprep.subr.mxu0 %v800
    %2015 = vmatpush1.msra.mxu0 %v799
    %2016 = vmatprep.subr.mxu0 %v804
    %2017 = vmatpush1.msra.mxu0 %v803
    %2018 = vmatprep.subr.mxu0 %v808
    %2019 = vmatpush1.msra.mxu0 %v807
    %2020 = vmatprep.subr.mxu0 %v812
    %2021 = vmatpush1.msra.mxu0 %v811
    %2022 = vmatprep.subr.mxu0 %v816
    %2023 = vmatpush1.msra.mxu0 %v815
    %2024 = vmatprep.subr.mxu0 %v820
    %2025 = vmatpush1.msra.mxu0 %v819
    %2026 = vmatprep.subr.mxu0 %v824
    %2027 = vmatpush1.msra.mxu0 %v823
    %2028 = vmatprep.subr.mxu0 %v828
    %2029 = vmatpush1.msra.mxu0 %v827
    %2030 = vmatprep.subr.mxu0 %v832
    %2031 = vmatpush1.msra.mxu0 %v831
    %2032 = vmatprep.subr.mxu0 %v836
    %2033 = vmatpush1.msra.mxu0 %v835
    %2034 = vmatprep.subr.mxu0 %v840
    %2035 = vmatpush1.msra.mxu0 %v839
    %2036 = vmatprep.subr.mxu0 %v844
    %2037 = vmatpush1.msra.mxu0 %v843
    %2038 = vmatprep.subr.mxu0 %v848
    %2039 = vmatpush1.msra.mxu0 %v847
    %2040 = vmatprep.subr.mxu0 %v852
    %2041 = vmatpush1.msra.mxu0 %v851
    %2042 = vmatprep.subr.mxu0 %v856
    %2043 = vmatpush1.msra.mxu0 %v855
    %2044 = vmatprep.subr.mxu0 0.0
    %2045 = vmatpush1.msra.mxu0 0.0
    %2046 = vmatprep.subr.mxu0 0.0
    %2047 = vmatpush1.msra.mxu0 0.0
    %2048 = vmatprep.subr.mxu0 0.0
    %2049 = vmatpush1.msra.mxu0 0.0
    %2050 = vmatprep.subr.mxu0 0.0
    %2051 = vmatpush1.msra.mxu0 0.0
    %2052 = vmatprep.subr.mxu0 0.0
    %2053 = vmatpush1.msra.mxu0 0.0
    %2054 = vmatprep.subr.mxu0 0.0
    %2055 = vmatpush1.msra.mxu0 0.0
    %2056 = vmatprep.subr.mxu0 0.0
    %2057 = vmatpush1.msra.mxu0 0.0
    %2058 = vmatprep.subr.mxu0 0.0
    %2059 = vmatpush1.msra.mxu0 0.0
    %2060 = vmatprep.subr.mxu0 0.0
    %2061 = vmatpush1.msra.mxu0 0.0
    %2062 = vmatprep.subr.mxu0 0.0
    %2063 = vmatpush1.msra.mxu0 0.0
    %2064 = vmatprep.subr.mxu0 0.0
    %2065 = vmatpush1.msra.mxu0 0.0
    %2066 = vmatprep.subr.mxu0 0.0
    %2067 = vmatpush1.msra.mxu0 0.0
    %2068 = vmatprep.subr.mxu0 0.0
    %2069 = vmatpush1.msra.mxu0 0.0
    %2070 = vmatprep.subr.mxu0 0.0
    %2071 = vmatpush1.msra.mxu0 0.0
    %2072 = vmatprep.subr.mxu0 0.0
    %2073 = vmatpush1.msra.mxu0 0.0
    %2074 = vmatprep.subr.mxu0 0.0
    %2075 = vmatpush1.msra.mxu0 0.0
    %2076 = vmatprep.mubr.f32.mxu0 0.0
    %2077 = vmatmul.mubr.f32.gmra.mrb[0].mxu0 %v1770
    %v2078 = vpop.f32.mrb[0].mxu0
    %v2079 = vadd.f32 0.0, %v2078
    %v2080 = vpop.f32.mrb[0].mxu0
    %v2081 = vadd.f32 0.0, %v2080
    %2082 = vdwg.mxu0
    %v2083 = vadd.f32 %v426, %v2008
    %v2084 = vadd.f32 %v428, %v2010
    %v2085 = vadd.f32 %v539, %v2079
    %v2086 = vadd.f32 %v541, %v2081
    %v2087 = vxor.u32 %v2083, 2147483648
    %v2088 = vmul.f32 %v2087, 1.442695
    %v2089 = vpow.pop %v2088
    %v2090 = vadd.f32 %v2089, 1.0
    %v2091 = vrcp.pop %v2090
    %v2092 = vmul.f32 1.0, %v2091
    %v2093 = vxor.u32 %v2084, 2147483648
    %v2094 = vmul.f32 %v2093, 1.442695
    %v2095 = vpow.pop %v2094
    %v2096 = vadd.f32 %v2095, 1.0
    %v2097 = vrcp.pop %v2096
    %v2098 = vmul.f32 1.0, %v2097
    %v2099 = vtanh.pop %v2085
    %v2100 = vxor.u32 %v2086, 2147483648
    %v2101 = vmul.f32 %v2100, 1.442695
    %v2102 = vpow.pop %v2101
    %v2103 = vadd.f32 %v2102, 1.0
    %v2104 = vrcp.pop %v2103
    %v2105 = vmul.f32 1.0, %v2104
    %v2106 = vmul.f32 %v2098, %v1768
    %v2107 = vmul.f32 %v2092, %v2099
    %v2108 = vadd.f32 %v2106, %v2107
    %v2109 = vtanh.pop %v2108
    %v2110 = vmul.f32 %v2105, %v2109
    %2111 = vmatprep.subr.mxu0 %v858
    %2112 = vmatpush1.msra.mxu0 %v857
    %2113 = vmatprep.subr.mxu0 %v862
    %2114 = vmatpush1.msra.mxu0 %v861
    %2115 = vmatprep.subr.mxu0 %v866
    %2116 = vmatpush1.msra.mxu0 %v865
    %2117 = vmatprep.subr.mxu0 %v870
    %2118 = vmatpush1.msra.mxu0 %v869
    %2119 = vmatprep.subr.mxu0 %v874
    %2120 = vmatpush1.msra.mxu0 %v873
    %2121 = vmatprep.subr.mxu0 %v878
    %2122 = vmatpush1.msra.mxu0 %v877
    %2123 = vmatprep.subr.mxu0 %v882
    %2124 = vmatpush1.msra.mxu0 %v881
    %2125 = vmatprep.subr.mxu0 %v886
    %2126 = vmatpush1.msra.mxu0 %v885
    %2127 = vmatprep.subr.mxu0 %v890
    %2128 = vmatpush1.msra.mxu0 %v889
    %2129 = vmatprep.subr.mxu0 %v894
    %2130 = vmatpush1.msra.mxu0 %v893
    %2131 = vmatprep.subr.mxu0 %v898
    %2132 = vmatpush1.msra.mxu0 %v897
    %2133 = vmatprep.subr.mxu0 %v902
    %2134 = vmatpush1.msra.mxu0 %v901
    %2135 = vmatprep.subr.mxu0 %v906
    %2136 = vmatpush1.msra.mxu0 %v905
    %2137 = vmatprep.subr.mxu0 %v910
    %2138 = vmatpush1.msra.mxu0 %v909
    %2139 = vmatprep.subr.mxu0 %v914
    %2140 = vmatpush1.msra.mxu0 %v913
    %2141 = vmatprep.subr.mxu0 %v918
    %2142 = vmatpush1.msra.mxu0 %v917
    %2143 = vmatprep.subr.mxu0 0.0
    %2144 = vmatpush1.msra.mxu0 0.0
    %2145 = vmatprep.subr.mxu0 0.0
    %2146 = vmatpush1.msra.mxu0 0.0
    %2147 = vmatprep.subr.mxu0 0.0
    %2148 = vmatpush1.msra.mxu0 0.0
    %2149 = vmatprep.subr.mxu0 0.0
    %2150 = vmatpush1.msra.mxu0 0.0
    %2151 = vmatprep.subr.mxu0 0.0
    %2152 = vmatpush1.msra.mxu0 0.0
    %2153 = vmatprep.subr.mxu0 0.0
    %2154 = vmatpush1.msra.mxu0 0.0
    %2155 = vmatprep.subr.mxu0 0.0
    %2156 = vmatpush1.msra.mxu0 0.0
    %2157 = vmatprep.subr.mxu0 0.0
    %2158 = vmatpush1.msra.mxu0 0.0
    %2159 = vmatprep.subr.mxu0 0.0
    %2160 = vmatpush1.msra.mxu0 0.0
    %2161 = vmatprep.subr.mxu0 0.0
    %2162 = vmatpush1.msra.mxu0 0.0
    %2163 = vmatprep.subr.mxu0 0.0
    %2164 = vmatpush1.msra.mxu0 0.0
    %2165 = vmatprep.subr.mxu0 0.0
    %2166 = vmatpush1.msra.mxu0 0.0
    %2167 = vmatprep.subr.mxu0 0.0
    %2168 = vmatpush1.msra.mxu0 0.0
    %2169 = vmatprep.subr.mxu0 0.0
    %2170 = vmatpush1.msra.mxu0 0.0
    %2171 = vmatprep.subr.mxu0 0.0
    %2172 = vmatpush1.msra.mxu0 0.0
    %2173 = vmatprep.subr.mxu0 0.0
    %2174 = vmatpush1.msra.mxu0 0.0
    %2175 = vmatprep.mubr.f32.mxu0 0.0
    %2176 = vmatmul.mubr.f32.gmra.mrb[0].mxu0 %v1940
    %v2177 = vpop.f32.mrb[0].mxu0
    %v2178 = vadd.f32 0.0, %v2177
    %v2179 = vpop.f32.mrb[0].mxu0
    %v2180 = vadd.f32 0.0, %v2179
    %2181 = vdwg.mxu0
    %2182 = vmatprep.subr.mxu0 %v860
    %2183 = vmatpush1.msra.mxu0 %v859
    %2184 = vmatprep.subr.mxu0 %v864
    %2185 = vmatpush1.msra.mxu0 %v863
    %2186 = vmatprep.subr.mxu0 %v868
    %2187 = vmatpush1.msra.mxu0 %v867
    %2188 = vmatprep.subr.mxu0 %v872
    %2189 = vmatpush1.msra.mxu0 %v871
    %2190 = vmatprep.subr.mxu0 %v876
    %2191 = vmatpush1.msra.mxu0 %v875
    %2192 = vmatprep.subr.mxu0 %v880
    %2193 = vmatpush1.msra.mxu0 %v879
    %2194 = vmatprep.subr.mxu0 %v884
    %2195 = vmatpush1.msra.mxu0 %v883
    %2196 = vmatprep.subr.mxu0 %v888
    %2197 = vmatpush1.msra.mxu0 %v887
    %2198 = vmatprep.subr.mxu0 %v892
    %2199 = vmatpush1.msra.mxu0 %v891
    %2200 = vmatprep.subr.mxu0 %v896
    %2201 = vmatpush1.msra.mxu0 %v895
    %2202 = vmatprep.subr.mxu0 %v900
    %2203 = vmatpush1.msra.mxu0 %v899
    %2204 = vmatprep.subr.mxu0 %v904
    %2205 = vmatpush1.msra.mxu0 %v903
    %2206 = vmatprep.subr.mxu0 %v908
    %2207 = vmatpush1.msra.mxu0 %v907
    %2208 = vmatprep.subr.mxu0 %v912
    %2209 = vmatpush1.msra.mxu0 %v911
    %2210 = vmatprep.subr.mxu0 %v916
    %2211 = vmatpush1.msra.mxu0 %v915
    %2212 = vmatprep.subr.mxu0 %v920
    %2213 = vmatpush1.msra.mxu0 %v919
    %2214 = vmatprep.subr.mxu0 0.0
    %2215 = vmatpush1.msra.mxu0 0.0
    %2216 = vmatprep.subr.mxu0 0.0
    %2217 = vmatpush1.msra.mxu0 0.0
    %2218 = vmatprep.subr.mxu0 0.0
    %2219 = vmatpush1.msra.mxu0 0.0
    %2220 = vmatprep.subr.mxu0 0.0
    %2221 = vmatpush1.msra.mxu0 0.0
    %2222 = vmatprep.subr.mxu0 0.0
    %2223 = vmatpush1.msra.mxu0 0.0
    %2224 = vmatprep.subr.mxu0 0.0
    %2225 = vmatpush1.msra.mxu0 0.0
    %2226 = vmatprep.subr.mxu0 0.0
    %2227 = vmatpush1.msra.mxu0 0.0
    %2228 = vmatprep.subr.mxu0 0.0
    %2229 = vmatpush1.msra.mxu0 0.0
    %2230 = vmatprep.subr.mxu0 0.0
    %2231 = vmatpush1.msra.mxu0 0.0
    %2232 = vmatprep.subr.mxu0 0.0
    %2233 = vmatpush1.msra.mxu0 0.0
    %2234 = vmatprep.subr.mxu0 0.0
    %2235 = vmatpush1.msra.mxu0 0.0
    %2236 = vmatprep.subr.mxu0 0.0
    %2237 = vmatpush1.msra.mxu0 0.0
    %2238 = vmatprep.subr.mxu0 0.0
    %2239 = vmatpush1.msra.mxu0 0.0
    %2240 = vmatprep.subr.mxu0 0.0
    %2241 = vmatpush1.msra.mxu0 0.0
    %2242 = vmatprep.subr.mxu0 0.0
    %2243 = vmatpush1.msra.mxu0 0.0
    %2244 = vmatprep.subr.mxu0 0.0
    %2245 = vmatpush1.msra.mxu0 0.0
    %2246 = vmatprep.mubr.f32.mxu0 0.0
    %2247 = vmatmul.mubr.f32.gmra.mrb[0].mxu0 %v1940
    %v2248 = vpop.f32.mrb[0].mxu0
    %v2249 = vadd.f32 0.0, %v2248
    %v2250 = vpop.f32.mrb[0].mxu0
    %v2251 = vadd.f32 0.0, %v2250
    %2252 = vdwg.mxu0
    %v2253 = vadd.f32 %v658, %v2178
    %v2254 = vadd.f32 %v660, %v2180
    %v2255 = vadd.f32 %v771, %v2249
    %v2256 = vadd.f32 %v773, %v2251
    %v2257 = vxor.u32 %v2253, 2147483648
    %v2258 = vmul.f32 %v2257, 1.442695
    %v2259 = vpow.pop %v2258
    %v2260 = vadd.f32 %v2259, 1.0
    %v2261 = vrcp.pop %v2260
    %v2262 = vmul.f32 1.0, %v2261
    %v2263 = vxor.u32 %v2254, 2147483648
    %v2264 = vmul.f32 %v2263, 1.442695
    %v2265 = vpow.pop %v2264
    %v2266 = vadd.f32 %v2265, 1.0
    %v2267 = vrcp.pop %v2266
    %v2268 = vmul.f32 1.0, %v2267
    %v2269 = vtanh.pop %v2255
    %v2270 = vxor.u32 %v2256, 2147483648
    %v2271 = vmul.f32 %v2270, 1.442695
    %v2272 = vpow.pop %v2271
    %v2273 = vadd.f32 %v2272, 1.0
    %v2274 = vrcp.pop %v2273
    %v2275 = vmul.f32 1.0, %v2274
    %v2276 = vmul.f32 %v2268, %v1938
    %v2277 = vmul.f32 %v2262, %v2269
    %v2278 = vadd.f32 %v2276, %v2277
    %v2279 = vtanh.pop %v2278
    %v2280 = vmul.f32 %v2275, %v2279
    %2281 = vmatprep.subr.mxu0 %v794
    %2282 = vmatpush1.msra.mxu0 %v793
    %2283 = vmatprep.subr.mxu0 %v798
    %2284 = vmatpush1.msra.mxu0 %v797
    %2285 = vmatprep.subr.mxu0 %v802
    %2286 = vmatpush1.msra.mxu0 %v801
    %2287 = vmatprep.subr.mxu0 %v806
    %2288 = vmatpush1.msra.mxu0 %v805
    %2289 = vmatprep.subr.mxu0 %v810
    %2290 = vmatpush1.msra.mxu0 %v809
    %2291 = vmatprep.subr.mxu0 %v814
    %2292 = vmatpush1.msra.mxu0 %v813
    %2293 = vmatprep.subr.mxu0 %v818
    %2294 = vmatpush1.msra.mxu0 %v817
    %2295 = vmatprep.subr.mxu0 %v822
    %2296 = vmatpush1.msra.mxu0 %v821
    %2297 = vmatprep.subr.mxu0 %v826
    %2298 = vmatpush1.msra.mxu0 %v825
    %2299 = vmatprep.subr.mxu0 %v830
    %2300 = vmatpush1.msra.mxu0 %v829
    %2301 = vmatprep.subr.mxu0 %v834
    %2302 = vmatpush1.msra.mxu0 %v833
    %2303 = vmatprep.subr.mxu0 %v838
    %2304 = vmatpush1.msra.mxu0 %v837
    %2305 = vmatprep.subr.mxu0 %v842
    %2306 = vmatpush1.msra.mxu0 %v841
    %2307 = vmatprep.subr.mxu0 %v846
    %2308 = vmatpush1.msra.mxu0 %v845
    %2309 = vmatprep.subr.mxu0 %v850
    %2310 = vmatpush1.msra.mxu0 %v849
    %2311 = vmatprep.subr.mxu0 %v854
    %2312 = vmatpush1.msra.mxu0 %v853
    %2313 = vmatprep.subr.mxu0 0.0
    %2314 = vmatpush1.msra.mxu0 0.0
    %2315 = vmatprep.subr.mxu0 0.0
    %2316 = vmatpush1.msra.mxu0 0.0
    %2317 = vmatprep.subr.mxu0 0.0
    %2318 = vmatpush1.msra.mxu0 0.0
    %2319 = vmatprep.subr.mxu0 0.0
    %2320 = vmatpush1.msra.mxu0 0.0
    %2321 = vmatprep.subr.mxu0 0.0
    %2322 = vmatpush1.msra.mxu0 0.0
    %2323 = vmatprep.subr.mxu0 0.0
    %2324 = vmatpush1.msra.mxu0 0.0
    %2325 = vmatprep.subr.mxu0 0.0
    %2326 = vmatpush1.msra.mxu0 0.0
    %2327 = vmatprep.subr.mxu0 0.0
    %2328 = vmatpush1.msra.mxu0 0.0
    %2329 = vmatprep.subr.mxu0 0.0
    %2330 = vmatpush1.msra.mxu0 0.0
    %2331 = vmatprep.subr.mxu0 0.0
    %2332 = vmatpush1.msra.mxu0 0.0
    %2333 = vmatprep.subr.mxu0 0.0
    %2334 = vmatpush1.msra.mxu0 0.0
    %2335 = vmatprep.subr.mxu0 0.0
    %2336 = vmatpush1.msra.mxu0 0.0
    %2337 = vmatprep.subr.mxu0 0.0
    %2338 = vmatpush1.msra.mxu0 0.0
    %2339 = vmatprep.subr.mxu0 0.0
    %2340 = vmatpush1.msra.mxu0 0.0
    %2341 = vmatprep.subr.mxu0 0.0
    %2342 = vmatpush1.msra.mxu0 0.0
    %2343 = vmatprep.subr.mxu0 0.0
    %2344 = vmatpush1.msra.mxu0 0.0
    %2345 = vmatprep.mubr.f32.mxu0 0.0
    %2346 = vmatmul.mubr.f32.gmra.mrb[0].mxu0 %v2110
    %v2347 = vpop.f32.mrb[0].mxu0
    %v2348 = vadd.f32 0.0, %v2347
    %v2349 = vpop.f32.mrb[0].mxu0
    %v2350 = vadd.f32 0.0, %v2349
    %2351 = vdwg.mxu0
    %2352 = vmatprep.subr.mxu0 %v796
    %2353 = vmatpush1.msra.mxu0 %v795
    %2354 = vmatprep.subr.mxu0 %v800
    %2355 = vmatpush1.msra.mxu0 %v799
    %2356 = vmatprep.subr.mxu0 %v804
    %2357 = vmatpush1.msra.mxu0 %v803
    %2358 = vmatprep.subr.mxu0 %v808
    %2359 = vmatpush1.msra.mxu0 %v807
    %2360 = vmatprep.subr.mxu0 %v812
    %2361 = vmatpush1.msra.mxu0 %v811
    %2362 = vmatprep.subr.mxu0 %v816
    %2363 = vmatpush1.msra.mxu0 %v815
    %2364 = vmatprep.subr.mxu0 %v820
    %2365 = vmatpush1.msra.mxu0 %v819
    %2366 = vmatprep.subr.mxu0 %v824
    %2367 = vmatpush1.msra.mxu0 %v823
    %2368 = vmatprep.subr.mxu0 %v828
    %2369 = vmatpush1.msra.mxu0 %v827
    %2370 = vmatprep.subr.mxu0 %v832
    %2371 = vmatpush1.msra.mxu0 %v831
    %2372 = vmatprep.subr.mxu0 %v836
    %2373 = vmatpush1.msra.mxu0 %v835
    %2374 = vmatprep.subr.mxu0 %v840
    %2375 = vmatpush1.msra.mxu0 %v839
    %2376 = vmatprep.subr.mxu0 %v844
    %2377 = vmatpush1.msra.mxu0 %v843
    %2378 = vmatprep.subr.mxu0 %v848
    %2379 = vmatpush1.msra.mxu0 %v847
    %2380 = vmatprep.subr.mxu0 %v852
    %2381 = vmatpush1.msra.mxu0 %v851
    %2382 = vmatprep.subr.mxu0 %v856
    %2383 = vmatpush1.msra.mxu0 %v855
    %2384 = vmatprep.subr.mxu0 0.0
    %2385 = vmatpush1.msra.mxu0 0.0
    %2386 = vmatprep.subr.mxu0 0.0
    %2387 = vmatpush1.msra.mxu0 0.0
    %2388 = vmatprep.subr.mxu0 0.0
    %2389 = vmatpush1.msra.mxu0 0.0
    %2390 = vmatprep.subr.mxu0 0.0
    %2391 = vmatpush1.msra.mxu0 0.0
    %2392 = vmatprep.subr.mxu0 0.0
    %2393 = vmatpush1.msra.mxu0 0.0
    %2394 = vmatprep.subr.mxu0 0.0
    %2395 = vmatpush1.msra.mxu0 0.0
    %2396 = vmatprep.subr.mxu0 0.0
    %2397 = vmatpush1.msra.mxu0 0.0
    %2398 = vmatprep.subr.mxu0 0.0
    %2399 = vmatpush1.msra.mxu0 0.0
    %2400 = vmatprep.subr.mxu0 0.0
    %2401 = vmatpush1.msra.mxu0 0.0
    %2402 = vmatprep.subr.mxu0 0.0
    %2403 = vmatpush1.msra.mxu0 0.0
    %2404 = vmatprep.subr.mxu0 0.0
    %2405 = vmatpush1.msra.mxu0 0.0
    %2406 = vmatprep.subr.mxu0 0.0
    %2407 = vmatpush1.msra.mxu0 0.0
    %2408 = vmatprep.subr.mxu0 0.0
    %2409 = vmatpush1.msra.mxu0 0.0
    %2410 = vmatprep.subr.mxu0 0.0
    %2411 = vmatpush1.msra.mxu0 0.0
    %2412 = vmatprep.subr.mxu0 0.0
    %2413 = vmatpush1.msra.mxu0 0.0
    %2414 = vmatprep.subr.mxu0 0.0
    %2415 = vmatpush1.msra.mxu0 0.0
    %2416 = vmatprep.mubr.f32.mxu0 0.0
    %2417 = vmatmul.mubr.f32.gmra.mrb[0].mxu0 %v2110
    %v2418 = vpop.f32.mrb[0].mxu0
    %v2419 = vadd.f32 0.0, %v2418
    %v2420 = vpop.f32.mrb[0].mxu0
    %v2421 = vadd.f32 0.0, %v2420
    %2422 = vdwg.mxu0
    %v2423 = vadd.f32 %v432, %v2348
    %v2424 = vadd.f32 %v434, %v2350
    %v2425 = vadd.f32 %v545, %v2419
    %v2426 = vadd.f32 %v547, %v2421
    %v2427 = vxor.u32 %v2423, 2147483648
    %v2428 = vmul.f32 %v2427, 1.442695
    %v2429 = vpow.pop %v2428
    %v2430 = vadd.f32 %v2429, 1.0
    %v2431 = vrcp.pop %v2430
    %v2432 = vmul.f32 1.0, %v2431
    %v2433 = vxor.u32 %v2424, 2147483648
    %v2434 = vmul.f32 %v2433, 1.442695
    %v2435 = vpow.pop %v2434
    %v2436 = vadd.f32 %v2435, 1.0
    %v2437 = vrcp.pop %v2436
    %v2438 = vmul.f32 1.0, %v2437
    %v2439 = vtanh.pop %v2425
    %v2440 = vxor.u32 %v2426, 2147483648
    %v2441 = vmul.f32 %v2440, 1.442695
    %v2442 = vpow.pop %v2441
    %v2443 = vadd.f32 %v2442, 1.0
    %v2444 = vrcp.pop %v2443
    %v2445 = vmul.f32 1.0, %v2444
    %v2446 = vmul.f32 %v2438, %v2108
    %v2447 = vmul.f32 %v2432, %v2439
    %v2448 = vadd.f32 %v2446, %v2447
    %v2449 = vtanh.pop %v2448
    %v2450 = vmul.f32 %v2445, %v2449
    %2451 = vmatprep.subr.mxu0 %v858
    %2452 = vmatpush1.msra.mxu0 %v857
    %2453 = vmatprep.subr.mxu0 %v862
    %2454 = vmatpush1.msra.mxu0 %v861
    %2455 = vmatprep.subr.mxu0 %v866
    %2456 = vmatpush1.msra.mxu0 %v865
    %2457 = vmatprep.subr.mxu0 %v870
    %2458 = vmatpush1.msra.mxu0 %v869
    %2459 = vmatprep.subr.mxu0 %v874
    %2460 = vmatpush1.msra.mxu0 %v873
    %2461 = vmatprep.subr.mxu0 %v878
    %2462 = vmatpush1.msra.mxu0 %v877
    %2463 = vmatprep.subr.mxu0 %v882
    %2464 = vmatpush1.msra.mxu0 %v881
    %2465 = vmatprep.subr.mxu0 %v886
    %2466 = vmatpush1.msra.mxu0 %v885
    %2467 = vmatprep.subr.mxu0 %v890
    %2468 = vmatpush1.msra.mxu0 %v889
    %2469 = vmatprep.subr.mxu0 %v894
    %2470 = vmatpush1.msra.mxu0 %v893
    %2471 = vmatprep.subr.mxu0 %v898
    %2472 = vmatpush1.msra.mxu0 %v897
    %2473 = vmatprep.subr.mxu0 %v902
    %2474 = vmatpush1.msra.mxu0 %v901
    %2475 = vmatprep.subr.mxu0 %v906
    %2476 = vmatpush1.msra.mxu0 %v905
    %2477 = vmatprep.subr.mxu0 %v910
    %2478 = vmatpush1.msra.mxu0 %v909
    %2479 = vmatprep.subr.mxu0 %v914
    %2480 = vmatpush1.msra.mxu0 %v913
    %2481 = vmatprep.subr.mxu0 %v918
    %2482 = vmatpush1.msra.mxu0 %v917
    %2483 = vmatprep.subr.mxu0 0.0
    %2484 = vmatpush1.msra.mxu0 0.0
    %2485 = vmatprep.subr.mxu0 0.0
    %2486 = vmatpush1.msra.mxu0 0.0
    %2487 = vmatprep.subr.mxu0 0.0
    %2488 = vmatpush1.msra.mxu0 0.0
    %2489 = vmatprep.subr.mxu0 0.0
    %2490 = vmatpush1.msra.mxu0 0.0
    %2491 = vmatprep.subr.mxu0 0.0
    %2492 = vmatpush1.msra.mxu0 0.0
    %2493 = vmatprep.subr.mxu0 0.0
    %2494 = vmatpush1.msra.mxu0 0.0
    %2495 = vmatprep.subr.mxu0 0.0
    %2496 = vmatpush1.msra.mxu0 0.0
    %2497 = vmatprep.subr.mxu0 0.0
    %2498 = vmatpush1.msra.mxu0 0.0
    %2499 = vmatprep.subr.mxu0 0.0
    %2500 = vmatpush1.msra.mxu0 0.0
    %2501 = vmatprep.subr.mxu0 0.0
    %2502 = vmatpush1.msra.mxu0 0.0
    %2503 = vmatprep.subr.mxu0 0.0
    %2504 = vmatpush1.msra.mxu0 0.0
    %2505 = vmatprep.subr.mxu0 0.0
    %2506 = vmatpush1.msra.mxu0 0.0
    %2507 = vmatprep.subr.mxu0 0.0
    %2508 = vmatpush1.msra.mxu0 0.0
    %2509 = vmatprep.subr.mxu0 0.0
    %2510 = vmatpush1.msra.mxu0 0.0
    %2511 = vmatprep.subr.mxu0 0.0
    %2512 = vmatpush1.msra.mxu0 0.0
    %2513 = vmatprep.subr.mxu0 0.0
    %2514 = vmatpush1.msra.mxu0 0.0
    %2515 = vmatprep.mubr.f32.mxu0 0.0
    %2516 = vmatmul.mubr.f32.gmra.mrb[0].mxu0 %v2280
    %v2517 = vpop.f32.mrb[0].mxu0
    %v2518 = vadd.f32 0.0, %v2517
    %v2519 = vpop.f32.mrb[0].mxu0
    %v2520 = vadd.f32 0.0, %v2519
    %2521 = vdwg.mxu0
    %2522 = vmatprep.subr.mxu0 %v860
    %2523 = vmatpush1.msra.mxu0 %v859
    %2524 = vmatprep.subr.mxu0 %v864
    %2525 = vmatpush1.msra.mxu0 %v863
    %2526 = vmatprep.subr.mxu0 %v868
    %2527 = vmatpush1.msra.mxu0 %v867
    %2528 = vmatprep.subr.mxu0 %v872
    %2529 = vmatpush1.msra.mxu0 %v871
    %2530 = vmatprep.subr.mxu0 %v876
    %2531 = vmatpush1.msra.mxu0 %v875
    %2532 = vmatprep.subr.mxu0 %v880
    %2533 = vmatpush1.msra.mxu0 %v879
    %2534 = vmatprep.subr.mxu0 %v884
    %2535 = vmatpush1.msra.mxu0 %v883
    %2536 = vmatprep.subr.mxu0 %v888
    %2537 = vmatpush1.msra.mxu0 %v887
    %2538 = vmatprep.subr.mxu0 %v892
    %2539 = vmatpush1.msra.mxu0 %v891
    %2540 = vmatprep.subr.mxu0 %v896
    %2541 = vmatpush1.msra.mxu0 %v895
    %2542 = vmatprep.subr.mxu0 %v900
    %2543 = vmatpush1.msra.mxu0 %v899
    %2544 = vmatprep.subr.mxu0 %v904
    %2545 = vmatpush1.msra.mxu0 %v903
    %2546 = vmatprep.subr.mxu0 %v908
    %2547 = vmatpush1.msra.mxu0 %v907
    %2548 = vmatprep.subr.mxu0 %v912
    %2549 = vmatpush1.msra.mxu0 %v911
    %2550 = vmatprep.subr.mxu0 %v916
    %2551 = vmatpush1.msra.mxu0 %v915
    %2552 = vmatprep.subr.mxu0 %v920
    %2553 = vmatpush1.msra.mxu0 %v919
    %2554 = vmatprep.subr.mxu0 0.0
    %2555 = vmatpush1.msra.mxu0 0.0
    %2556 = vmatprep.subr.mxu0 0.0
    %2557 = vmatpush1.msra.mxu0 0.0
    %2558 = vmatprep.subr.mxu0 0.0
    %2559 = vmatpush1.msra.mxu0 0.0
    %2560 = vmatprep.subr.mxu0 0.0
    %2561 = vmatpush1.msra.mxu0 0.0
    %2562 = vmatprep.subr.mxu0 0.0
    %2563 = vmatpush1.msra.mxu0 0.0
    %2564 = vmatprep.subr.mxu0 0.0
    %2565 = vmatpush1.msra.mxu0 0.0
    %2566 = vmatprep.subr.mxu0 0.0
    %2567 = vmatpush1.msra.mxu0 0.0
    %2568 = vmatprep.subr.mxu0 0.0
    %2569 = vmatpush1.msra.mxu0 0.0
    %2570 = vmatprep.subr.mxu0 0.0
    %2571 = vmatpush1.msra.mxu0 0.0
    %2572 = vmatprep.subr.mxu0 0.0
    %2573 = vmatpush1.msra.mxu0 0.0
    %2574 = vmatprep.subr.mxu0 0.0
    %2575 = vmatpush1.msra.mxu0 0.0
    %2576 = vmatprep.subr.mxu0 0.0
    %2577 = vmatpush1.msra.mxu0 0.0
    %2578 = vmatprep.subr.mxu0 0.0
    %2579 = vmatpush1.msra.mxu0 0.0
    %2580 = vmatprep.subr.mxu0 0.0
    %2581 = vmatpush1.msra.mxu0 0.0
    %2582 = vmatprep.subr.mxu0 0.0
    %2583 = vmatpush1.msra.mxu0 0.0
    %2584 = vmatprep.subr.mxu0 0.0
    %2585 = vmatpush1.msra.mxu0 0.0
    %2586 = vmatprep.mubr.f32.mxu0 0.0
    %2587 = vmatmul.mubr.f32.gmra.mrb[0].mxu0 %v2280
    %v2588 = vpop.f32.mrb[0].mxu0
    %v2589 = vadd.f32 0.0, %v2588
    %v2590 = vpop.f32.mrb[0].mxu0
    %v2591 = vadd.f32 0.0, %v2590
    %2592 = vdwg.mxu0
    %v2593 = vadd.f32 %v652, %v2518
    %v2594 = vadd.f32 %v654, %v2520
    %v2595 = vadd.f32 %v765, %v2589
    %v2596 = vadd.f32 %v767, %v2591
    %v2597 = vxor.u32 %v2593, 2147483648
    %v2598 = vmul.f32 %v2597, 1.442695
    %v2599 = vpow.pop %v2598
    %v2600 = vadd.f32 %v2599, 1.0
    %v2601 = vrcp.pop %v2600
    %v2602 = vmul.f32 1.0, %v2601
    %v2603 = vxor.u32 %v2594, 2147483648
    %v2604 = vmul.f32 %v2603, 1.442695
    %v2605 = vpow.pop %v2604
    %v2606 = vadd.f32 %v2605, 1.0
    %v2607 = vrcp.pop %v2606
    %v2608 = vmul.f32 1.0, %v2607
    %v2609 = vtanh.pop %v2595
    %v2610 = vxor.u32 %v2596, 2147483648
    %v2611 = vmul.f32 %v2610, 1.442695
    %v2612 = vpow.pop %v2611
    %v2613 = vadd.f32 %v2612, 1.0
    %v2614 = vrcp.pop %v2613
    %v2615 = vmul.f32 1.0, %v2614
    %v2616 = vmul.f32 %v2608, %v2278
    %v2617 = vmul.f32 %v2602, %v2609
    %v2618 = vadd.f32 %v2616, %v2617
    %v2619 = vtanh.pop %v2618
    %v2620 = vmul.f32 %v2615, %v2619
    %2621 = vmatprep.subr.mxu0 %v794
    %2622 = vmatpush1.msra.mxu0 %v793
    %2623 = vmatprep.subr.mxu0 %v798
    %2624 = vmatpush1.msra.mxu0 %v797
    %2625 = vmatprep.subr.mxu0 %v802
    %2626 = vmatpush1.msra.mxu0 %v801
    %2627 = vmatprep.subr.mxu0 %v806
    %2628 = vmatpush1.msra.mxu0 %v805
    %2629 = vmatprep.subr.mxu0 %v810
    %2630 = vmatpush1.msra.mxu0 %v809
    %2631 = vmatprep.subr.mxu0 %v814
    %2632 = vmatpush1.msra.mxu0 %v813
    %2633 = vmatprep.subr.mxu0 %v818
    %2634 = vmatpush1.msra.mxu0 %v817
    %2635 = vmatprep.subr.mxu0 %v822
    %2636 = vmatpush1.msra.mxu0 %v821
    %2637 = vmatprep.subr.mxu0 %v826
    %2638 = vmatpush1.msra.mxu0 %v825
    %2639 = vmatprep.subr.mxu0 %v830
    %2640 = vmatpush1.msra.mxu0 %v829
    %2641 = vmatprep.subr.mxu0 %v834
    %2642 = vmatpush1.msra.mxu0 %v833
    %2643 = vmatprep.subr.mxu0 %v838
    %2644 = vmatpush1.msra.mxu0 %v837
    %2645 = vmatprep.subr.mxu0 %v842
    %2646 = vmatpush1.msra.mxu0 %v841
    %2647 = vmatprep.subr.mxu0 %v846
    %2648 = vmatpush1.msra.mxu0 %v845
    %2649 = vmatprep.subr.mxu0 %v850
    %2650 = vmatpush1.msra.mxu0 %v849
    %2651 = vmatprep.subr.mxu0 %v854
    %2652 = vmatpush1.msra.mxu0 %v853
    %2653 = vmatprep.subr.mxu0 0.0
    %2654 = vmatpush1.msra.mxu0 0.0
    %2655 = vmatprep.subr.mxu0 0.0
    %2656 = vmatpush1.msra.mxu0 0.0
    %2657 = vmatprep.subr.mxu0 0.0
    %2658 = vmatpush1.msra.mxu0 0.0
    %2659 = vmatprep.subr.mxu0 0.0
    %2660 = vmatpush1.msra.mxu0 0.0
    %2661 = vmatprep.subr.mxu0 0.0
    %2662 = vmatpush1.msra.mxu0 0.0
    %2663 = vmatprep.subr.mxu0 0.0
    %2664 = vmatpush1.msra.mxu0 0.0
    %2665 = vmatprep.subr.mxu0 0.0
    %2666 = vmatpush1.msra.mxu0 0.0
    %2667 = vmatprep.subr.mxu0 0.0
    %2668 = vmatpush1.msra.mxu0 0.0
    %2669 = vmatprep.subr.mxu0 0.0
    %2670 = vmatpush1.msra.mxu0 0.0
    %2671 = vmatprep.subr.mxu0 0.0
    %2672 = vmatpush1.msra.mxu0 0.0
    %2673 = vmatprep.subr.mxu0 0.0
    %2674 = vmatpush1.msra.mxu0 0.0
    %2675 = vmatprep.subr.mxu0 0.0
    %2676 = vmatpush1.msra.mxu0 0.0
    %2677 = vmatprep.subr.mxu0 0.0
    %2678 = vmatpush1.msra.mxu0 0.0
    %2679 = vmatprep.subr.mxu0 0.0
    %2680 = vmatpush1.msra.mxu0 0.0
    %2681 = vmatprep.subr.mxu0 0.0
    %2682 = vmatpush1.msra.mxu0 0.0
    %2683 = vmatprep.subr.mxu0 0.0
    %2684 = vmatpush1.msra.mxu0 0.0
    %2685 = vmatprep.mubr.f32.mxu0 0.0
    %2686 = vmatmul.mubr.f32.gmra.mrb[0].mxu0 %v2450
    %v2687 = vpop.f32.mrb[0].mxu0
    %v2688 = vadd.f32 0.0, %v2687
    %v2689 = vpop.f32.mrb[0].mxu0
    %v2690 = vadd.f32 0.0, %v2689
    %2691 = vdwg.mxu0
    %2692 = vmatprep.subr.mxu0 %v796
    %2693 = vmatpush1.msra.mxu0 %v795
    %2694 = vmatprep.subr.mxu0 %v800
    %2695 = vmatpush1.msra.mxu0 %v799
    %2696 = vmatprep.subr.mxu0 %v804
    %2697 = vmatpush1.msra.mxu0 %v803
    %2698 = vmatprep.subr.mxu0 %v808
    %2699 = vmatpush1.msra.mxu0 %v807
    %2700 = vmatprep.subr.mxu0 %v812
    %2701 = vmatpush1.msra.mxu0 %v811
    %2702 = vmatprep.subr.mxu0 %v816
    %2703 = vmatpush1.msra.mxu0 %v815
    %2704 = vmatprep.subr.mxu0 %v820
    %2705 = vmatpush1.msra.mxu0 %v819
    %2706 = vmatprep.subr.mxu0 %v824
    %2707 = vmatpush1.msra.mxu0 %v823
    %2708 = vmatprep.subr.mxu0 %v828
    %2709 = vmatpush1.msra.mxu0 %v827
    %2710 = vmatprep.subr.mxu0 %v832
    %2711 = vmatpush1.msra.mxu0 %v831
    %2712 = vmatprep.subr.mxu0 %v836
    %2713 = vmatpush1.msra.mxu0 %v835
    %2714 = vmatprep.subr.mxu0 %v840
    %2715 = vmatpush1.msra.mxu0 %v839
    %2716 = vmatprep.subr.mxu0 %v844
    %2717 = vmatpush1.msra.mxu0 %v843
    %2718 = vmatprep.subr.mxu0 %v848
    %2719 = vmatpush1.msra.mxu0 %v847
    %2720 = vmatprep.subr.mxu0 %v852
    %2721 = vmatpush1.msra.mxu0 %v851
    %2722 = vmatprep.subr.mxu0 %v856
    %2723 = vmatpush1.msra.mxu0 %v855
    %2724 = vmatprep.subr.mxu0 0.0
    %2725 = vmatpush1.msra.mxu0 0.0
    %2726 = vmatprep.subr.mxu0 0.0
    %2727 = vmatpush1.msra.mxu0 0.0
    %2728 = vmatprep.subr.mxu0 0.0
    %2729 = vmatpush1.msra.mxu0 0.0
    %2730 = vmatprep.subr.mxu0 0.0
    %2731 = vmatpush1.msra.mxu0 0.0
    %2732 = vmatprep.subr.mxu0 0.0
    %2733 = vmatpush1.msra.mxu0 0.0
    %2734 = vmatprep.subr.mxu0 0.0
    %2735 = vmatpush1.msra.mxu0 0.0
    %2736 = vmatprep.subr.mxu0 0.0
    %2737 = vmatpush1.msra.mxu0 0.0
    %2738 = vmatprep.subr.mxu0 0.0
    %2739 = vmatpush1.msra.mxu0 0.0
    %2740 = vmatprep.subr.mxu0 0.0
    %2741 = vmatpush1.msra.mxu0 0.0
    %2742 = vmatprep.subr.mxu0 0.0
    %2743 = vmatpush1.msra.mxu0 0.0
    %2744 = vmatprep.subr.mxu0 0.0
    %2745 = vmatpush1.msra.mxu0 0.0
    %2746 = vmatprep.subr.mxu0 0.0
    %2747 = vmatpush1.msra.mxu0 0.0
    %2748 = vmatprep.subr.mxu0 0.0
    %2749 = vmatpush1.msra.mxu0 0.0
    %2750 = vmatprep.subr.mxu0 0.0
    %2751 = vmatpush1.msra.mxu0 0.0
    %2752 = vmatprep.subr.mxu0 0.0
    %2753 = vmatpush1.msra.mxu0 0.0
    %2754 = vmatprep.subr.mxu0 0.0
    %2755 = vmatpush1.msra.mxu0 0.0
    %2756 = vmatprep.mubr.f32.mxu0 0.0
    %2757 = vmatmul.mubr.f32.gmra.mrb[0].mxu0 %v2450
    %v2758 = vpop.f32.mrb[0].mxu0
    %v2759 = vadd.f32 0.0, %v2758
    %v2760 = vpop.f32.mrb[0].mxu0
    %v2761 = vadd.f32 0.0, %v2760
    %2762 = vdwg.mxu0
    %v2763 = vadd.f32 %v438, %v2688
    %v2764 = vadd.f32 %v440, %v2690
    %v2765 = vadd.f32 %v551, %v2759
    %v2766 = vadd.f32 %v553, %v2761
    %v2767 = vxor.u32 %v2763, 2147483648
    %v2768 = vmul.f32 %v2767, 1.442695
    %v2769 = vpow.pop %v2768
    %v2770 = vadd.f32 %v2769, 1.0
    %v2771 = vrcp.pop %v2770
    %v2772 = vmul.f32 1.0, %v2771
    %v2773 = vxor.u32 %v2764, 2147483648
    %v2774 = vmul.f32 %v2773, 1.442695
    %v2775 = vpow.pop %v2774
    %v2776 = vadd.f32 %v2775, 1.0
    %v2777 = vrcp.pop %v2776
    %v2778 = vmul.f32 1.0, %v2777
    %v2779 = vtanh.pop %v2765
    %v2780 = vxor.u32 %v2766, 2147483648
    %v2781 = vmul.f32 %v2780, 1.442695
    %v2782 = vpow.pop %v2781
    %v2783 = vadd.f32 %v2782, 1.0
    %v2784 = vrcp.pop %v2783
    %v2785 = vmul.f32 1.0, %v2784
    %v2786 = vmul.f32 %v2778, %v2448
    %v2787 = vmul.f32 %v2772, %v2779
    %v2788 = vadd.f32 %v2786, %v2787
    %v2789 = vtanh.pop %v2788
    %v2790 = vmul.f32 %v2785, %v2789
    %2791 = vmatprep.subr.mxu0 %v858
    %2792 = vmatpush1.msra.mxu0 %v857
    %2793 = vmatprep.subr.mxu0 %v862
    %2794 = vmatpush1.msra.mxu0 %v861
    %2795 = vmatprep.subr.mxu0 %v866
    %2796 = vmatpush1.msra.mxu0 %v865
    %2797 = vmatprep.subr.mxu0 %v870
    %2798 = vmatpush1.msra.mxu0 %v869
    %2799 = vmatprep.subr.mxu0 %v874
    %2800 = vmatpush1.msra.mxu0 %v873
    %2801 = vmatprep.subr.mxu0 %v878
    %2802 = vmatpush1.msra.mxu0 %v877
    %2803 = vmatprep.subr.mxu0 %v882
    %2804 = vmatpush1.msra.mxu0 %v881
    %2805 = vmatprep.subr.mxu0 %v886
    %2806 = vmatpush1.msra.mxu0 %v885
    %2807 = vmatprep.subr.mxu0 %v890
    %2808 = vmatpush1.msra.mxu0 %v889
    %2809 = vmatprep.subr.mxu0 %v894
    %2810 = vmatpush1.msra.mxu0 %v893
    %2811 = vmatprep.subr.mxu0 %v898
    %2812 = vmatpush1.msra.mxu0 %v897
    %2813 = vmatprep.subr.mxu0 %v902
    %2814 = vmatpush1.msra.mxu0 %v901
    %2815 = vmatprep.subr.mxu0 %v906
    %2816 = vmatpush1.msra.mxu0 %v905
    %2817 = vmatprep.subr.mxu0 %v910
    %2818 = vmatpush1.msra.mxu0 %v909
    %2819 = vmatprep.subr.mxu0 %v914
    %2820 = vmatpush1.msra.mxu0 %v913
    %2821 = vmatprep.subr.mxu0 %v918
    %2822 = vmatpush1.msra.mxu0 %v917
    %2823 = vmatprep.subr.mxu0 0.0
    %2824 = vmatpush1.msra.mxu0 0.0
    %2825 = vmatprep.subr.mxu0 0.0
    %2826 = vmatpush1.msra.mxu0 0.0
    %2827 = vmatprep.subr.mxu0 0.0
    %2828 = vmatpush1.msra.mxu0 0.0
    %2829 = vmatprep.subr.mxu0 0.0
    %2830 = vmatpush1.msra.mxu0 0.0
    %2831 = vmatprep.subr.mxu0 0.0
    %2832 = vmatpush1.msra.mxu0 0.0
    %2833 = vmatprep.subr.mxu0 0.0
    %2834 = vmatpush1.msra.mxu0 0.0
    %2835 = vmatprep.subr.mxu0 0.0
    %2836 = vmatpush1.msra.mxu0 0.0
    %2837 = vmatprep.subr.mxu0 0.0
    %2838 = vmatpush1.msra.mxu0 0.0
    %2839 = vmatprep.subr.mxu0 0.0
    %2840 = vmatpush1.msra.mxu0 0.0
    %2841 = vmatprep.subr.mxu0 0.0
    %2842 = vmatpush1.msra.mxu0 0.0
    %2843 = vmatprep.subr.mxu0 0.0
    %2844 = vmatpush1.msra.mxu0 0.0
    %2845 = vmatprep.subr.mxu0 0.0
    %2846 = vmatpush1.msra.mxu0 0.0
    %2847 = vmatprep.subr.mxu0 0.0
    %2848 = vmatpush1.msra.mxu0 0.0
    %2849 = vmatprep.subr.mxu0 0.0
    %2850 = vmatpush1.msra.mxu0 0.0
    %2851 = vmatprep.subr.mxu0 0.0
    %2852 = vmatpush1.msra.mxu0 0.0
    %2853 = vmatprep.subr.mxu0 0.0
    %2854 = vmatpush1.msra.mxu0 0.0
    %2855 = vmatprep.mubr.f32.mxu0 0.0
    %2856 = vmatmul.mubr.f32.gmra.mrb[0].mxu0 %v2620
    %v2857 = vpop.f32.mrb[0].mxu0
    %v2858 = vadd.f32 0.0, %v2857
    %v2859 = vpop.f32.mrb[0].mxu0
    %v2860 = vadd.f32 0.0, %v2859
    %2861 = vdwg.mxu0
    %2862 = vmatprep.subr.mxu0 %v860
    %2863 = vmatpush1.msra.mxu0 %v859
    %2864 = vmatprep.subr.mxu0 %v864
    %2865 = vmatpush1.msra.mxu0 %v863
    %2866 = vmatprep.subr.mxu0 %v868
    %2867 = vmatpush1.msra.mxu0 %v867
    %2868 = vmatprep.subr.mxu0 %v872
    %2869 = vmatpush1.msra.mxu0 %v871
    %2870 = vmatprep.subr.mxu0 %v876
    %2871 = vmatpush1.msra.mxu0 %v875
    %2872 = vmatprep.subr.mxu0 %v880
    %2873 = vmatpush1.msra.mxu0 %v879
    %2874 = vmatprep.subr.mxu0 %v884
    %2875 = vmatpush1.msra.mxu0 %v883
    %2876 = vmatprep.subr.mxu0 %v888
    %2877 = vmatpush1.msra.mxu0 %v887
    %2878 = vmatprep.subr.mxu0 %v892
    %2879 = vmatpush1.msra.mxu0 %v891
    %2880 = vmatprep.subr.mxu0 %v896
    %2881 = vmatpush1.msra.mxu0 %v895
    %2882 = vmatprep.subr.mxu0 %v900
    %2883 = vmatpush1.msra.mxu0 %v899
    %2884 = vmatprep.subr.mxu0 %v904
    %2885 = vmatpush1.msra.mxu0 %v903
    %2886 = vmatprep.subr.mxu0 %v908
    %2887 = vmatpush1.msra.mxu0 %v907
    %2888 = vmatprep.subr.mxu0 %v912
    %2889 = vmatpush1.msra.mxu0 %v911
    %2890 = vmatprep.subr.mxu0 %v916
    %2891 = vmatpush1.msra.mxu0 %v915
    %2892 = vmatprep.subr.mxu0 %v920
    %2893 = vmatpush1.msra.mxu0 %v919
    %2894 = vmatprep.subr.mxu0 0.0
    %2895 = vmatpush1.msra.mxu0 0.0
    %2896 = vmatprep.subr.mxu0 0.0
    %2897 = vmatpush1.msra.mxu0 0.0
    %2898 = vmatprep.subr.mxu0 0.0
    %2899 = vmatpush1.msra.mxu0 0.0
    %2900 = vmatprep.subr.mxu0 0.0
    %2901 = vmatpush1.msra.mxu0 0.0
    %2902 = vmatprep.subr.mxu0 0.0
    %2903 = vmatpush1.msra.mxu0 0.0
    %2904 = vmatprep.subr.mxu0 0.0
    %2905 = vmatpush1.msra.mxu0 0.0
    %2906 = vmatprep.subr.mxu0 0.0
    %2907 = vmatpush1.msra.mxu0 0.0
    %2908 = vmatprep.subr.mxu0 0.0
    %2909 = vmatpush1.msra.mxu0 0.0
    %2910 = vmatprep.subr.mxu0 0.0
    %2911 = vmatpush1.msra.mxu0 0.0
    %2912 = vmatprep.subr.mxu0 0.0
    %2913 = vmatpush1.msra.mxu0 0.0
    %2914 = vmatprep.subr.mxu0 0.0
    %2915 = vmatpush1.msra.mxu0 0.0
    %2916 = vmatprep.subr.mxu0 0.0
    %2917 = vmatpush1.msra.mxu0 0.0
    %2918 = vmatprep.subr.mxu0 0.0
    %2919 = vmatpush1.msra.mxu0 0.0
    %2920 = vmatprep.subr.mxu0 0.0
    %2921 = vmatpush1.msra.mxu0 0.0
    %2922 = vmatprep.subr.mxu0 0.0
    %2923 = vmatpush1.msra.mxu0 0.0
    %2924 = vmatprep.subr.mxu0 0.0
    %2925 = vmatpush1.msra.mxu0 0.0
    %2926 = vmatprep.mubr.f32.mxu0 0.0
    %2927 = vmatmul.mubr.f32.gmra.mrb[0].mxu0 %v2620
    %v2928 = vpop.f32.mrb[0].mxu0
    %v2929 = vadd.f32 0.0, %v2928
    %v2930 = vpop.f32.mrb[0].mxu0
    %v2931 = vadd.f32 0.0, %v2930
    %2932 = vdwg.mxu0
    %v2933 = vadd.f32 %v646, %v2858
    %v2934 = vadd.f32 %v648, %v2860
    %v2935 = vadd.f32 %v759, %v2929
    %v2936 = vadd.f32 %v761, %v2931
    %v2937 = vxor.u32 %v2933, 2147483648
    %v2938 = vmul.f32 %v2937, 1.442695
    %v2939 = vpow.pop %v2938
    %v2940 = vadd.f32 %v2939, 1.0
    %v2941 = vrcp.pop %v2940
    %v2942 = vmul.f32 1.0, %v2941
    %v2943 = vxor.u32 %v2934, 2147483648
    %v2944 = vmul.f32 %v2943, 1.442695
    %v2945 = vpow.pop %v2944
    %v2946 = vadd.f32 %v2945, 1.0
    %v2947 = vrcp.pop %v2946
    %v2948 = vmul.f32 1.0, %v2947
    %v2949 = vtanh.pop %v2935
    %v2950 = vxor.u32 %v2936, 2147483648
    %v2951 = vmul.f32 %v2950, 1.442695
    %v2952 = vpow.pop %v2951
    %v2953 = vadd.f32 %v2952, 1.0
    %v2954 = vrcp.pop %v2953
    %v2955 = vmul.f32 1.0, %v2954
    %v2956 = vmul.f32 %v2948, %v2618
    %v2957 = vmul.f32 %v2942, %v2949
    %v2958 = vadd.f32 %v2956, %v2957
    %v2959 = vtanh.pop %v2958
    %v2960 = vmul.f32 %v2955, %v2959
    %2961 = vmatprep.subr.mxu0 %v794
    %2962 = vmatpush1.msra.mxu0 %v793
    %2963 = vmatprep.subr.mxu0 %v798
    %2964 = vmatpush1.msra.mxu0 %v797
    %2965 = vmatprep.subr.mxu0 %v802
    %2966 = vmatpush1.msra.mxu0 %v801
    %2967 = vmatprep.subr.mxu0 %v806
    %2968 = vmatpush1.msra.mxu0 %v805
    %2969 = vmatprep.subr.mxu0 %v810
    %2970 = vmatpush1.msra.mxu0 %v809
    %2971 = vmatprep.subr.mxu0 %v814
    %2972 = vmatpush1.msra.mxu0 %v813
    %2973 = vmatprep.subr.mxu0 %v818
    %2974 = vmatpush1.msra.mxu0 %v817
    %2975 = vmatprep.subr.mxu0 %v822
    %2976 = vmatpush1.msra.mxu0 %v821
    %2977 = vmatprep.subr.mxu0 %v826
    %2978 = vmatpush1.msra.mxu0 %v825
    %2979 = vmatprep.subr.mxu0 %v830
    %2980 = vmatpush1.msra.mxu0 %v829
    %2981 = vmatprep.subr.mxu0 %v834
    %2982 = vmatpush1.msra.mxu0 %v833
    %2983 = vmatprep.subr.mxu0 %v838
    %2984 = vmatpush1.msra.mxu0 %v837
    %2985 = vmatprep.subr.mxu0 %v842
    %2986 = vmatpush1.msra.mxu0 %v841
    %2987 = vmatprep.subr.mxu0 %v846
    %2988 = vmatpush1.msra.mxu0 %v845
    %2989 = vmatprep.subr.mxu0 %v850
    %2990 = vmatpush1.msra.mxu0 %v849
    %2991 = vmatprep.subr.mxu0 %v854
    %2992 = vmatpush1.msra.mxu0 %v853
    %2993 = vmatprep.subr.mxu0 0.0
    %2994 = vmatpush1.msra.mxu0 0.0
    %2995 = vmatprep.subr.mxu0 0.0
    %2996 = vmatpush1.msra.mxu0 0.0
    %2997 = vmatprep.subr.mxu0 0.0
    %2998 = vmatpush1.msra.mxu0 0.0
    %2999 = vmatprep.subr.mxu0 0.0
    %3000 = vmatpush1.msra.mxu0 0.0
    %3001 = vmatprep.subr.mxu0 0.0
    %3002 = vmatpush1.msra.mxu0 0.0
    %3003 = vmatprep.subr.mxu0 0.0
    %3004 = vmatpush1.msra.mxu0 0.0
    %3005 = vmatprep.subr.mxu0 0.0
    %3006 = vmatpush1.msra.mxu0 0.0
    %3007 = vmatprep.subr.mxu0 0.0
    %3008 = vmatpush1.msra.mxu0 0.0
    %3009 = vmatprep.subr.mxu0 0.0
    %3010 = vmatpush1.msra.mxu0 0.0
    %3011 = vmatprep.subr.mxu0 0.0
    %3012 = vmatpush1.msra.mxu0 0.0
    %3013 = vmatprep.subr.mxu0 0.0
    %3014 = vmatpush1.msra.mxu0 0.0
    %3015 = vmatprep.subr.mxu0 0.0
    %3016 = vmatpush1.msra.mxu0 0.0
    %3017 = vmatprep.subr.mxu0 0.0
    %3018 = vmatpush1.msra.mxu0 0.0
    %3019 = vmatprep.subr.mxu0 0.0
    %3020 = vmatpush1.msra.mxu0 0.0
    %3021 = vmatprep.subr.mxu0 0.0
    %3022 = vmatpush1.msra.mxu0 0.0
    %3023 = vmatprep.subr.mxu0 0.0
    %3024 = vmatpush1.msra.mxu0 0.0
    %3025 = vmatprep.mubr.f32.mxu0 0.0
    %3026 = vmatmul.mubr.f32.gmra.mrb[0].mxu0 %v2790
    %v3027 = vpop.f32.mrb[0].mxu0
    %v3028 = vadd.f32 0.0, %v3027
    %v3029 = vpop.f32.mrb[0].mxu0
    %v3030 = vadd.f32 0.0, %v3029
    %3031 = vdwg.mxu0
    %3032 = vmatprep.subr.mxu0 %v796
    %3033 = vmatpush1.msra.mxu0 %v795
    %3034 = vmatprep.subr.mxu0 %v800
    %3035 = vmatpush1.msra.mxu0 %v799
    %3036 = vmatprep.subr.mxu0 %v804
    %3037 = vmatpush1.msra.mxu0 %v803
    %3038 = vmatprep.subr.mxu0 %v808
    %3039 = vmatpush1.msra.mxu0 %v807
    %3040 = vmatprep.subr.mxu0 %v812
    %3041 = vmatpush1.msra.mxu0 %v811
    %3042 = vmatprep.subr.mxu0 %v816
    %3043 = vmatpush1.msra.mxu0 %v815
    %3044 = vmatprep.subr.mxu0 %v820
    %3045 = vmatpush1.msra.mxu0 %v819
    %3046 = vmatprep.subr.mxu0 %v824
    %3047 = vmatpush1.msra.mxu0 %v823
    %3048 = vmatprep.subr.mxu0 %v828
    %3049 = vmatpush1.msra.mxu0 %v827
    %3050 = vmatprep.subr.mxu0 %v832
    %3051 = vmatpush1.msra.mxu0 %v831
    %3052 = vmatprep.subr.mxu0 %v836
    %3053 = vmatpush1.msra.mxu0 %v835
    %3054 = vmatprep.subr.mxu0 %v840
    %3055 = vmatpush1.msra.mxu0 %v839
    %3056 = vmatprep.subr.mxu0 %v844
    %3057 = vmatpush1.msra.mxu0 %v843
    %3058 = vmatprep.subr.mxu0 %v848
    %3059 = vmatpush1.msra.mxu0 %v847
    %3060 = vmatprep.subr.mxu0 %v852
    %3061 = vmatpush1.msra.mxu0 %v851
    %3062 = vmatprep.subr.mxu0 %v856
    %3063 = vmatpush1.msra.mxu0 %v855
    %3064 = vmatprep.subr.mxu0 0.0
    %3065 = vmatpush1.msra.mxu0 0.0
    %3066 = vmatprep.subr.mxu0 0.0
    %3067 = vmatpush1.msra.mxu0 0.0
    %3068 = vmatprep.subr.mxu0 0.0
    %3069 = vmatpush1.msra.mxu0 0.0
    %3070 = vmatprep.subr.mxu0 0.0
    %3071 = vmatpush1.msra.mxu0 0.0
    %3072 = vmatprep.subr.mxu0 0.0
    %3073 = vmatpush1.msra.mxu0 0.0
    %3074 = vmatprep.subr.mxu0 0.0
    %3075 = vmatpush1.msra.mxu0 0.0
    %3076 = vmatprep.subr.mxu0 0.0
    %3077 = vmatpush1.msra.mxu0 0.0
    %3078 = vmatprep.subr.mxu0 0.0
    %3079 = vmatpush1.msra.mxu0 0.0
    %3080 = vmatprep.subr.mxu0 0.0
    %3081 = vmatpush1.msra.mxu0 0.0
    %3082 = vmatprep.subr.mxu0 0.0
    %3083 = vmatpush1.msra.mxu0 0.0
    %3084 = vmatprep.subr.mxu0 0.0
    %3085 = vmatpush1.msra.mxu0 0.0
    %3086 = vmatprep.subr.mxu0 0.0
    %3087 = vmatpush1.msra.mxu0 0.0
    %3088 = vmatprep.subr.mxu0 0.0
    %3089 = vmatpush1.msra.mxu0 0.0
    %3090 = vmatprep.subr.mxu0 0.0
    %3091 = vmatpush1.msra.mxu0 0.0
    %3092 = vmatprep.subr.mxu0 0.0
    %3093 = vmatpush1.msra.mxu0 0.0
    %3094 = vmatprep.subr.mxu0 0.0
    %3095 = vmatpush1.msra.mxu0 0.0
    %3096 = vmatprep.mubr.f32.mxu0 0.0
    %3097 = vmatmul.mubr.f32.gmra.mrb[0].mxu0 %v2790
    %v3098 = vpop.f32.mrb[0].mxu0
    %v3099 = vadd.f32 0.0, %v3098
    %v3100 = vpop.f32.mrb[0].mxu0
    %v3101 = vadd.f32 0.0, %v3100
    %3102 = vdwg.mxu0
    %v3103 = vadd.f32 %v444, %v3028
    %v3104 = vadd.f32 %v446, %v3030
    %v3105 = vadd.f32 %v557, %v3099
    %v3106 = vadd.f32 %v559, %v3101
    %v3107 = vxor.u32 %v3103, 2147483648
    %v3108 = vmul.f32 %v3107, 1.442695
    %v3109 = vpow.pop %v3108
    %v3110 = vadd.f32 %v3109, 1.0
    %v3111 = vrcp.pop %v3110
    %v3112 = vmul.f32 1.0, %v3111
    %v3113 = vxor.u32 %v3104, 2147483648
    %v3114 = vmul.f32 %v3113, 1.442695
    %v3115 = vpow.pop %v3114
    %v3116 = vadd.f32 %v3115, 1.0
    %v3117 = vrcp.pop %v3116
    %v3118 = vmul.f32 1.0, %v3117
    %v3119 = vtanh.pop %v3105
    %v3120 = vxor.u32 %v3106, 2147483648
    %v3121 = vmul.f32 %v3120, 1.442695
    %v3122 = vpow.pop %v3121
    %v3123 = vadd.f32 %v3122, 1.0
    %v3124 = vrcp.pop %v3123
    %v3125 = vmul.f32 1.0, %v3124
    %v3126 = vmul.f32 %v3118, %v2788
    %v3127 = vmul.f32 %v3112, %v3119
    %v3128 = vadd.f32 %v3126, %v3127
    %v3129 = vtanh.pop %v3128
    %v3130 = vmul.f32 %v3125, %v3129
    %3131 = vmatprep.subr.mxu0 %v858
    %3132 = vmatpush1.msra.mxu0 %v857
    %3133 = vmatprep.subr.mxu0 %v862
    %3134 = vmatpush1.msra.mxu0 %v861
    %3135 = vmatprep.subr.mxu0 %v866
    %3136 = vmatpush1.msra.mxu0 %v865
    %3137 = vmatprep.subr.mxu0 %v870
    %3138 = vmatpush1.msra.mxu0 %v869
    %3139 = vmatprep.subr.mxu0 %v874
    %3140 = vmatpush1.msra.mxu0 %v873
    %3141 = vmatprep.subr.mxu0 %v878
    %3142 = vmatpush1.msra.mxu0 %v877
    %3143 = vmatprep.subr.mxu0 %v882
    %3144 = vmatpush1.msra.mxu0 %v881
    %3145 = vmatprep.subr.mxu0 %v886
    %3146 = vmatpush1.msra.mxu0 %v885
    %3147 = vmatprep.subr.mxu0 %v890
    %3148 = vmatpush1.msra.mxu0 %v889
    %3149 = vmatprep.subr.mxu0 %v894
    %3150 = vmatpush1.msra.mxu0 %v893
    %3151 = vmatprep.subr.mxu0 %v898
    %3152 = vmatpush1.msra.mxu0 %v897
    %3153 = vmatprep.subr.mxu0 %v902
    %3154 = vmatpush1.msra.mxu0 %v901
    %3155 = vmatprep.subr.mxu0 %v906
    %3156 = vmatpush1.msra.mxu0 %v905
    %3157 = vmatprep.subr.mxu0 %v910
    %3158 = vmatpush1.msra.mxu0 %v909
    %3159 = vmatprep.subr.mxu0 %v914
    %3160 = vmatpush1.msra.mxu0 %v913
    %3161 = vmatprep.subr.mxu0 %v918
    %3162 = vmatpush1.msra.mxu0 %v917
    %3163 = vmatprep.subr.mxu0 0.0
    %3164 = vmatpush1.msra.mxu0 0.0
    %3165 = vmatprep.subr.mxu0 0.0
    %3166 = vmatpush1.msra.mxu0 0.0
    %3167 = vmatprep.subr.mxu0 0.0
    %3168 = vmatpush1.msra.mxu0 0.0
    %3169 = vmatprep.subr.mxu0 0.0
    %3170 = vmatpush1.msra.mxu0 0.0
    %3171 = vmatprep.subr.mxu0 0.0
    %3172 = vmatpush1.msra.mxu0 0.0
    %3173 = vmatprep.subr.mxu0 0.0
    %3174 = vmatpush1.msra.mxu0 0.0
    %3175 = vmatprep.subr.mxu0 0.0
    %3176 = vmatpush1.msra.mxu0 0.0
    %3177 = vmatprep.subr.mxu0 0.0
    %3178 = vmatpush1.msra.mxu0 0.0
    %3179 = vmatprep.subr.mxu0 0.0
    %3180 = vmatpush1.msra.mxu0 0.0
    %3181 = vmatprep.subr.mxu0 0.0
    %3182 = vmatpush1.msra.mxu0 0.0
    %3183 = vmatprep.subr.mxu0 0.0
    %3184 = vmatpush1.msra.mxu0 0.0
    %3185 = vmatprep.subr.mxu0 0.0
    %3186 = vmatpush1.msra.mxu0 0.0
    %3187 = vmatprep.subr.mxu0 0.0
    %3188 = vmatpush1.msra.mxu0 0.0
    %3189 = vmatprep.subr.mxu0 0.0
    %3190 = vmatpush1.msra.mxu0 0.0
    %3191 = vmatprep.subr.mxu0 0.0
    %3192 = vmatpush1.msra.mxu0 0.0
    %3193 = vmatprep.subr.mxu0 0.0
    %3194 = vmatpush1.msra.mxu0 0.0
    %3195 = vmatprep.mubr.f32.mxu0 0.0
    %3196 = vmatmul.mubr.f32.gmra.mrb[0].mxu0 %v2960
    %v3197 = vpop.f32.mrb[0].mxu0
    %v3198 = vadd.f32 0.0, %v3197
    %v3199 = vpop.f32.mrb[0].mxu0
    %v3200 = vadd.f32 0.0, %v3199
    %3201 = vdwg.mxu0
    %3202 = vmatprep.subr.mxu0 %v860
    %3203 = vmatpush1.msra.mxu0 %v859
    %3204 = vmatprep.subr.mxu0 %v864
    %3205 = vmatpush1.msra.mxu0 %v863
    %3206 = vmatprep.subr.mxu0 %v868
    %3207 = vmatpush1.msra.mxu0 %v867
    %3208 = vmatprep.subr.mxu0 %v872
    %3209 = vmatpush1.msra.mxu0 %v871
    %3210 = vmatprep.subr.mxu0 %v876
    %3211 = vmatpush1.msra.mxu0 %v875
    %3212 = vmatprep.subr.mxu0 %v880
    %3213 = vmatpush1.msra.mxu0 %v879
    %3214 = vmatprep.subr.mxu0 %v884
    %3215 = vmatpush1.msra.mxu0 %v883
    %3216 = vmatprep.subr.mxu0 %v888
    %3217 = vmatpush1.msra.mxu0 %v887
    %3218 = vmatprep.subr.mxu0 %v892
    %3219 = vmatpush1.msra.mxu0 %v891
    %3220 = vmatprep.subr.mxu0 %v896
    %3221 = vmatpush1.msra.mxu0 %v895
    %3222 = vmatprep.subr.mxu0 %v900
    %3223 = vmatpush1.msra.mxu0 %v899
    %3224 = vmatprep.subr.mxu0 %v904
    %3225 = vmatpush1.msra.mxu0 %v903
    %3226 = vmatprep.subr.mxu0 %v908
    %3227 = vmatpush1.msra.mxu0 %v907
    %3228 = vmatprep.subr.mxu0 %v912
    %3229 = vmatpush1.msra.mxu0 %v911
    %3230 = vmatprep.subr.mxu0 %v916
    %3231 = vmatpush1.msra.mxu0 %v915
    %3232 = vmatprep.subr.mxu0 %v920
    %3233 = vmatpush1.msra.mxu0 %v919
    %3234 = vmatprep.subr.mxu0 0.0
    %3235 = vmatpush1.msra.mxu0 0.0
    %3236 = vmatprep.subr.mxu0 0.0
    %3237 = vmatpush1.msra.mxu0 0.0
    %3238 = vmatprep.subr.mxu0 0.0
    %3239 = vmatpush1.msra.mxu0 0.0
    %3240 = vmatprep.subr.mxu0 0.0
    %3241 = vmatpush1.msra.mxu0 0.0
    %3242 = vmatprep.subr.mxu0 0.0
    %3243 = vmatpush1.msra.mxu0 0.0
    %3244 = vmatprep.subr.mxu0 0.0
    %3245 = vmatpush1.msra.mxu0 0.0
    %3246 = vmatprep.subr.mxu0 0.0
    %3247 = vmatpush1.msra.mxu0 0.0
    %3248 = vmatprep.subr.mxu0 0.0
    %3249 = vmatpush1.msra.mxu0 0.0
    %3250 = vmatprep.subr.mxu0 0.0
    %3251 = vmatpush1.msra.mxu0 0.0
    %3252 = vmatprep.subr.mxu0 0.0
    %3253 = vmatpush1.msra.mxu0 0.0
    %3254 = vmatprep.subr.mxu0 0.0
    %3255 = vmatpush1.msra.mxu0 0.0
    %3256 = vmatprep.subr.mxu0 0.0
    %3257 = vmatpush1.msra.mxu0 0.0
    %3258 = vmatprep.subr.mxu0 0.0
    %3259 = vmatpush1.msra.mxu0 0.0
    %3260 = vmatprep.subr.mxu0 0.0
    %3261 = vmatpush1.msra.mxu0 0.0
    %3262 = vmatprep.subr.mxu0 0.0
    %3263 = vmatpush1.msra.mxu0 0.0
    %3264 = vmatprep.subr.mxu0 0.0
    %3265 = vmatpush1.msra.mxu0 0.0
    %3266 = vmatprep.mubr.f32.mxu0 0.0
    %3267 = vmatmul.mubr.f32.gmra.mrb[0].mxu0 %v2960
    %v3268 = vpop.f32.mrb[0].mxu0
    %v3269 = vadd.f32 0.0, %v3268
    %v3270 = vpop.f32.mrb[0].mxu0
    %v3271 = vadd.f32 0.0, %v3270
    %3272 = vdwg.mxu0
    %v3273 = vadd.f32 %v640, %v3198
    %v3274 = vadd.f32 %v642, %v3200
    %v3275 = vadd.f32 %v753, %v3269
    %v3276 = vadd.f32 %v755, %v3271
    %v3277 = vxor.u32 %v3273, 2147483648
    %v3278 = vmul.f32 %v3277, 1.442695
    %v3279 = vpow.pop %v3278
    %v3280 = vadd.f32 %v3279, 1.0
    %v3281 = vrcp.pop %v3280
    %v3282 = vmul.f32 1.0, %v3281
    %v3283 = vxor.u32 %v3274, 2147483648
    %v3284 = vmul.f32 %v3283, 1.442695
    %v3285 = vpow.pop %v3284
    %v3286 = vadd.f32 %v3285, 1.0
    %v3287 = vrcp.pop %v3286
    %v3288 = vmul.f32 1.0, %v3287
    %v3289 = vtanh.pop %v3275
    %v3290 = vxor.u32 %v3276, 2147483648
    %v3291 = vmul.f32 %v3290, 1.442695
    %v3292 = vpow.pop %v3291
    %v3293 = vadd.f32 %v3292, 1.0
    %v3294 = vrcp.pop %v3293
    %v3295 = vmul.f32 1.0, %v3294
    %v3296 = vmul.f32 %v3288, %v2958
    %v3297 = vmul.f32 %v3282, %v3289
    %v3298 = vadd.f32 %v3296, %v3297
    %v3299 = vtanh.pop %v3298
    %v3300 = vmul.f32 %v3295, %v3299
    %3301 = vmatprep.subr.mxu0 %v794
    %3302 = vmatpush1.msra.mxu0 %v793
    %3303 = vmatprep.subr.mxu0 %v798
    %3304 = vmatpush1.msra.mxu0 %v797
    %3305 = vmatprep.subr.mxu0 %v802
    %3306 = vmatpush1.msra.mxu0 %v801
    %3307 = vmatprep.subr.mxu0 %v806
    %3308 = vmatpush1.msra.mxu0 %v805
    %3309 = vmatprep.subr.mxu0 %v810
    %3310 = vmatpush1.msra.mxu0 %v809
    %3311 = vmatprep.subr.mxu0 %v814
    %3312 = vmatpush1.msra.mxu0 %v813
    %3313 = vmatprep.subr.mxu0 %v818
    %3314 = vmatpush1.msra.mxu0 %v817
    %3315 = vmatprep.subr.mxu0 %v822
    %3316 = vmatpush1.msra.mxu0 %v821
    %3317 = vmatprep.subr.mxu0 %v826
    %3318 = vmatpush1.msra.mxu0 %v825
    %3319 = vmatprep.subr.mxu0 %v830
    %3320 = vmatpush1.msra.mxu0 %v829
    %3321 = vmatprep.subr.mxu0 %v834
    %3322 = vmatpush1.msra.mxu0 %v833
    %3323 = vmatprep.subr.mxu0 %v838
    %3324 = vmatpush1.msra.mxu0 %v837
    %3325 = vmatprep.subr.mxu0 %v842
    %3326 = vmatpush1.msra.mxu0 %v841
    %3327 = vmatprep.subr.mxu0 %v846
    %3328 = vmatpush1.msra.mxu0 %v845
    %3329 = vmatprep.subr.mxu0 %v850
    %3330 = vmatpush1.msra.mxu0 %v849
    %3331 = vmatprep.subr.mxu0 %v854
    %3332 = vmatpush1.msra.mxu0 %v853
    %3333 = vmatprep.subr.mxu0 0.0
    %3334 = vmatpush1.msra.mxu0 0.0
    %3335 = vmatprep.subr.mxu0 0.0
    %3336 = vmatpush1.msra.mxu0 0.0
    %3337 = vmatprep.subr.mxu0 0.0
    %3338 = vmatpush1.msra.mxu0 0.0
    %3339 = vmatprep.subr.mxu0 0.0
    %3340 = vmatpush1.msra.mxu0 0.0
    %3341 = vmatprep.subr.mxu0 0.0
    %3342 = vmatpush1.msra.mxu0 0.0
    %3343 = vmatprep.subr.mxu0 0.0
    %3344 = vmatpush1.msra.mxu0 0.0
    %3345 = vmatprep.subr.mxu0 0.0
    %3346 = vmatpush1.msra.mxu0 0.0
    %3347 = vmatprep.subr.mxu0 0.0
    %3348 = vmatpush1.msra.mxu0 0.0
    %3349 = vmatprep.subr.mxu0 0.0
    %3350 = vmatpush1.msra.mxu0 0.0
    %3351 = vmatprep.subr.mxu0 0.0
    %3352 = vmatpush1.msra.mxu0 0.0
    %3353 = vmatprep.subr.mxu0 0.0
    %3354 = vmatpush1.msra.mxu0 0.0
    %3355 = vmatprep.subr.mxu0 0.0
    %3356 = vmatpush1.msra.mxu0 0.0
    %3357 = vmatprep.subr.mxu0 0.0
    %3358 = vmatpush1.msra.mxu0 0.0
    %3359 = vmatprep.subr.mxu0 0.0
    %3360 = vmatpush1.msra.mxu0 0.0
    %3361 = vmatprep.subr.mxu0 0.0
    %3362 = vmatpush1.msra.mxu0 0.0
    %3363 = vmatprep.subr.mxu0 0.0
    %3364 = vmatpush1.msra.mxu0 0.0
    %3365 = vmatprep.mubr.f32.mxu0 0.0
    %3366 = vmatmul.mubr.f32.gmra.mrb[0].mxu0 %v3130
    %v3367 = vpop.f32.mrb[0].mxu0
    %v3368 = vadd.f32 0.0, %v3367
    %v3369 = vpop.f32.mrb[0].mxu0
    %v3370 = vadd.f32 0.0, %v3369
    %3371 = vdwg.mxu0
    %3372 = vmatprep.subr.mxu0 %v796
    %3373 = vmatpush1.msra.mxu0 %v795
    %3374 = vmatprep.subr.mxu0 %v800
    %3375 = vmatpush1.msra.mxu0 %v799
    %3376 = vmatprep.subr.mxu0 %v804
    %3377 = vmatpush1.msra.mxu0 %v803
    %3378 = vmatprep.subr.mxu0 %v808
    %3379 = vmatpush1.msra.mxu0 %v807
    %3380 = vmatprep.subr.mxu0 %v812
    %3381 = vmatpush1.msra.mxu0 %v811
    %3382 = vmatprep.subr.mxu0 %v816
    %3383 = vmatpush1.msra.mxu0 %v815
    %3384 = vmatprep.subr.mxu0 %v820
    %3385 = vmatpush1.msra.mxu0 %v819
    %3386 = vmatprep.subr.mxu0 %v824
    %3387 = vmatpush1.msra.mxu0 %v823
    %3388 = vmatprep.subr.mxu0 %v828
    %3389 = vmatpush1.msra.mxu0 %v827
    %3390 = vmatprep.subr.mxu0 %v832
    %3391 = vmatpush1.msra.mxu0 %v831
    %3392 = vmatprep.subr.mxu0 %v836
    %3393 = vmatpush1.msra.mxu0 %v835
    %3394 = vmatprep.subr.mxu0 %v840
    %3395 = vmatpush1.msra.mxu0 %v839
    %3396 = vmatprep.subr.mxu0 %v844
    %3397 = vmatpush1.msra.mxu0 %v843
    %3398 = vmatprep.subr.mxu0 %v848
    %3399 = vmatpush1.msra.mxu0 %v847
    %3400 = vmatprep.subr.mxu0 %v852
    %3401 = vmatpush1.msra.mxu0 %v851
    %3402 = vmatprep.subr.mxu0 %v856
    %3403 = vmatpush1.msra.mxu0 %v855
    %3404 = vmatprep.subr.mxu0 0.0
    %3405 = vmatpush1.msra.mxu0 0.0
    %3406 = vmatprep.subr.mxu0 0.0
    %3407 = vmatpush1.msra.mxu0 0.0
    %3408 = vmatprep.subr.mxu0 0.0
    %3409 = vmatpush1.msra.mxu0 0.0
    %3410 = vmatprep.subr.mxu0 0.0
    %3411 = vmatpush1.msra.mxu0 0.0
    %3412 = vmatprep.subr.mxu0 0.0
    %3413 = vmatpush1.msra.mxu0 0.0
    %3414 = vmatprep.subr.mxu0 0.0
    %3415 = vmatpush1.msra.mxu0 0.0
    %3416 = vmatprep.subr.mxu0 0.0
    %3417 = vmatpush1.msra.mxu0 0.0
    %3418 = vmatprep.subr.mxu0 0.0
    %3419 = vmatpush1.msra.mxu0 0.0
    %3420 = vmatprep.subr.mxu0 0.0
    %3421 = vmatpush1.msra.mxu0 0.0
    %3422 = vmatprep.subr.mxu0 0.0
    %3423 = vmatpush1.msra.mxu0 0.0
    %3424 = vmatprep.subr.mxu0 0.0
    %3425 = vmatpush1.msra.mxu0 0.0
    %3426 = vmatprep.subr.mxu0 0.0
    %3427 = vmatpush1.msra.mxu0 0.0
    %3428 = vmatprep.subr.mxu0 0.0
    %3429 = vmatpush1.msra.mxu0 0.0
    %3430 = vmatprep.subr.mxu0 0.0
    %3431 = vmatpush1.msra.mxu0 0.0
    %3432 = vmatprep.subr.mxu0 0.0
    %3433 = vmatpush1.msra.mxu0 0.0
    %3434 = vmatprep.subr.mxu0 0.0
    %3435 = vmatpush1.msra.mxu0 0.0
    %3436 = vmatprep.mubr.f32.mxu0 0.0
    %3437 = vmatmul.mubr.f32.gmra.mrb[0].mxu0 %v3130
    %v3438 = vpop.f32.mrb[0].mxu0
    %v3439 = vadd.f32 0.0, %v3438
    %v3440 = vpop.f32.mrb[0].mxu0
    %v3441 = vadd.f32 0.0, %v3440
    %3442 = vdwg.mxu0
    %v3443 = vadd.f32 %v450, %v3368
    %v3444 = vadd.f32 %v452, %v3370
    %v3445 = vadd.f32 %v563, %v3439
    %v3446 = vadd.f32 %v565, %v3441
    %v3447 = vxor.u32 %v3443, 2147483648
    %v3448 = vmul.f32 %v3447, 1.442695
    %v3449 = vpow.pop %v3448
    %v3450 = vadd.f32 %v3449, 1.0
    %v3451 = vrcp.pop %v3450
    %v3452 = vmul.f32 1.0, %v3451
    %v3453 = vxor.u32 %v3444, 2147483648
    %v3454 = vmul.f32 %v3453, 1.442695
    %v3455 = vpow.pop %v3454
    %v3456 = vadd.f32 %v3455, 1.0
    %v3457 = vrcp.pop %v3456
    %v3458 = vmul.f32 1.0, %v3457
    %v3459 = vtanh.pop %v3445
    %v3460 = vxor.u32 %v3446, 2147483648
    %v3461 = vmul.f32 %v3460, 1.442695
    %v3462 = vpow.pop %v3461
    %v3463 = vadd.f32 %v3462, 1.0
    %v3464 = vrcp.pop %v3463
    %v3465 = vmul.f32 1.0, %v3464
    %v3466 = vmul.f32 %v3458, %v3128
    %v3467 = vmul.f32 %v3452, %v3459
    %v3468 = vadd.f32 %v3466, %v3467
    %v3469 = vtanh.pop %v3468
    %v3470 = vmul.f32 %v3465, %v3469
    %3471 = vmatprep.subr.mxu0 %v858
    %3472 = vmatpush1.msra.mxu0 %v857
    %3473 = vmatprep.subr.mxu0 %v862
    %3474 = vmatpush1.msra.mxu0 %v861
    %3475 = vmatprep.subr.mxu0 %v866
    %3476 = vmatpush1.msra.mxu0 %v865
    %3477 = vmatprep.subr.mxu0 %v870
    %3478 = vmatpush1.msra.mxu0 %v869
    %3479 = vmatprep.subr.mxu0 %v874
    %3480 = vmatpush1.msra.mxu0 %v873
    %3481 = vmatprep.subr.mxu0 %v878
    %3482 = vmatpush1.msra.mxu0 %v877
    %3483 = vmatprep.subr.mxu0 %v882
    %3484 = vmatpush1.msra.mxu0 %v881
    %3485 = vmatprep.subr.mxu0 %v886
    %3486 = vmatpush1.msra.mxu0 %v885
    %3487 = vmatprep.subr.mxu0 %v890
    %3488 = vmatpush1.msra.mxu0 %v889
    %3489 = vmatprep.subr.mxu0 %v894
    %3490 = vmatpush1.msra.mxu0 %v893
    %3491 = vmatprep.subr.mxu0 %v898
    %3492 = vmatpush1.msra.mxu0 %v897
    %3493 = vmatprep.subr.mxu0 %v902
    %3494 = vmatpush1.msra.mxu0 %v901
    %3495 = vmatprep.subr.mxu0 %v906
    %3496 = vmatpush1.msra.mxu0 %v905
    %3497 = vmatprep.subr.mxu0 %v910
    %3498 = vmatpush1.msra.mxu0 %v909
    %3499 = vmatprep.subr.mxu0 %v914
    %3500 = vmatpush1.msra.mxu0 %v913
    %3501 = vmatprep.subr.mxu0 %v918
    %3502 = vmatpush1.msra.mxu0 %v917
    %3503 = vmatprep.subr.mxu0 0.0
    %3504 = vmatpush1.msra.mxu0 0.0
    %3505 = vmatprep.subr.mxu0 0.0
    %3506 = vmatpush1.msra.mxu0 0.0
    %3507 = vmatprep.subr.mxu0 0.0
    %3508 = vmatpush1.msra.mxu0 0.0
    %3509 = vmatprep.subr.mxu0 0.0
    %3510 = vmatpush1.msra.mxu0 0.0
    %3511 = vmatprep.subr.mxu0 0.0
    %3512 = vmatpush1.msra.mxu0 0.0
    %3513 = vmatprep.subr.mxu0 0.0
    %3514 = vmatpush1.msra.mxu0 0.0
    %3515 = vmatprep.subr.mxu0 0.0
    %3516 = vmatpush1.msra.mxu0 0.0
    %3517 = vmatprep.subr.mxu0 0.0
    %3518 = vmatpush1.msra.mxu0 0.0
    %3519 = vmatprep.subr.mxu0 0.0
    %3520 = vmatpush1.msra.mxu0 0.0
    %3521 = vmatprep.subr.mxu0 0.0
    %3522 = vmatpush1.msra.mxu0 0.0
    %3523 = vmatprep.subr.mxu0 0.0
    %3524 = vmatpush1.msra.mxu0 0.0
    %3525 = vmatprep.subr.mxu0 0.0
    %3526 = vmatpush1.msra.mxu0 0.0
    %3527 = vmatprep.subr.mxu0 0.0
    %3528 = vmatpush1.msra.mxu0 0.0
    %3529 = vmatprep.subr.mxu0 0.0
    %3530 = vmatpush1.msra.mxu0 0.0
    %3531 = vmatprep.subr.mxu0 0.0
    %3532 = vmatpush1.msra.mxu0 0.0
    %3533 = vmatprep.subr.mxu0 0.0
    %3534 = vmatpush1.msra.mxu0 0.0
    %3535 = vmatprep.mubr.f32.mxu0 0.0
    %3536 = vmatmul.mubr.f32.gmra.mrb[0].mxu0 %v3300
    %v3537 = vpop.f32.mrb[0].mxu0
    %v3538 = vadd.f32 0.0, %v3537
    %v3539 = vpop.f32.mrb[0].mxu0
    %v3540 = vadd.f32 0.0, %v3539
    %3541 = vdwg.mxu0
    %3542 = vmatprep.subr.mxu0 %v860
    %3543 = vmatpush1.msra.mxu0 %v859
    %3544 = vmatprep.subr.mxu0 %v864
    %3545 = vmatpush1.msra.mxu0 %v863
    %3546 = vmatprep.subr.mxu0 %v868
    %3547 = vmatpush1.msra.mxu0 %v867
    %3548 = vmatprep.subr.mxu0 %v872
    %3549 = vmatpush1.msra.mxu0 %v871
    %3550 = vmatprep.subr.mxu0 %v876
    %3551 = vmatpush1.msra.mxu0 %v875
    %3552 = vmatprep.subr.mxu0 %v880
    %3553 = vmatpush1.msra.mxu0 %v879
    %3554 = vmatprep.subr.mxu0 %v884
    %3555 = vmatpush1.msra.mxu0 %v883
    %3556 = vmatprep.subr.mxu0 %v888
    %3557 = vmatpush1.msra.mxu0 %v887
    %3558 = vmatprep.subr.mxu0 %v892
    %3559 = vmatpush1.msra.mxu0 %v891
    %3560 = vmatprep.subr.mxu0 %v896
    %3561 = vmatpush1.msra.mxu0 %v895
    %3562 = vmatprep.subr.mxu0 %v900
    %3563 = vmatpush1.msra.mxu0 %v899
    %3564 = vmatprep.subr.mxu0 %v904
    %3565 = vmatpush1.msra.mxu0 %v903
    %3566 = vmatprep.subr.mxu0 %v908
    %3567 = vmatpush1.msra.mxu0 %v907
    %3568 = vmatprep.subr.mxu0 %v912
    %3569 = vmatpush1.msra.mxu0 %v911
    %3570 = vmatprep.subr.mxu0 %v916
    %3571 = vmatpush1.msra.mxu0 %v915
    %3572 = vmatprep.subr.mxu0 %v920
    %3573 = vmatpush1.msra.mxu0 %v919
    %3574 = vmatprep.subr.mxu0 0.0
    %3575 = vmatpush1.msra.mxu0 0.0
    %3576 = vmatprep.subr.mxu0 0.0
    %3577 = vmatpush1.msra.mxu0 0.0
    %3578 = vmatprep.subr.mxu0 0.0
    %3579 = vmatpush1.msra.mxu0 0.0
    %3580 = vmatprep.subr.mxu0 0.0
    %3581 = vmatpush1.msra.mxu0 0.0
    %3582 = vmatprep.subr.mxu0 0.0
    %3583 = vmatpush1.msra.mxu0 0.0
    %3584 = vmatprep.subr.mxu0 0.0
    %3585 = vmatpush1.msra.mxu0 0.0
    %3586 = vmatprep.subr.mxu0 0.0
    %3587 = vmatpush1.msra.mxu0 0.0
    %3588 = vmatprep.subr.mxu0 0.0
    %3589 = vmatpush1.msra.mxu0 0.0
    %3590 = vmatprep.subr.mxu0 0.0
    %3591 = vmatpush1.msra.mxu0 0.0
    %3592 = vmatprep.subr.mxu0 0.0
    %3593 = vmatpush1.msra.mxu0 0.0
    %3594 = vmatprep.subr.mxu0 0.0
    %3595 = vmatpush1.msra.mxu0 0.0
    %3596 = vmatprep.subr.mxu0 0.0
    %3597 = vmatpush1.msra.mxu0 0.0
    %3598 = vmatprep.subr.mxu0 0.0
    %3599 = vmatpush1.msra.mxu0 0.0
    %3600 = vmatprep.subr.mxu0 0.0
    %3601 = vmatpush1.msra.mxu0 0.0
    %3602 = vmatprep.subr.mxu0 0.0
    %3603 = vmatpush1.msra.mxu0 0.0
    %3604 = vmatprep.subr.mxu0 0.0
    %3605 = vmatpush1.msra.mxu0 0.0
    %3606 = vmatprep.mubr.f32.mxu0 0.0
    %3607 = vmatmul.mubr.f32.gmra.mrb[0].mxu0 %v3300
    %v3608 = vpop.f32.mrb[0].mxu0
    %v3609 = vadd.f32 0.0, %v3608
    %v3610 = vpop.f32.mrb[0].mxu0
    %v3611 = vadd.f32 0.0, %v3610
    %3612 = vdwg.mxu0
    %v3613 = vadd.f32 %v634, %v3538
    %v3614 = vadd.f32 %v636, %v3540
    %v3615 = vadd.f32 %v747, %v3609
    %v3616 = vadd.f32 %v749, %v3611
    %v3617 = vxor.u32 %v3613, 2147483648
    %v3618 = vmul.f32 %v3617, 1.442695
    %v3619 = vpow.pop %v3618
    %v3620 = vadd.f32 %v3619, 1.0
    %v3621 = vrcp.pop %v3620
    %v3622 = vmul.f32 1.0, %v3621
    %v3623 = vxor.u32 %v3614, 2147483648
    %v3624 = vmul.f32 %v3623, 1.442695
    %v3625 = vpow.pop %v3624
    %v3626 = vadd.f32 %v3625, 1.0
    %v3627 = vrcp.pop %v3626
    %v3628 = vmul.f32 1.0, %v3627
    %v3629 = vtanh.pop %v3615
    %v3630 = vxor.u32 %v3616, 2147483648
    %v3631 = vmul.f32 %v3630, 1.442695
    %v3632 = vpow.pop %v3631
    %v3633 = vadd.f32 %v3632, 1.0
    %v3634 = vrcp.pop %v3633
    %v3635 = vmul.f32 1.0, %v3634
    %v3636 = vmul.f32 %v3628, %v3298
    %v3637 = vmul.f32 %v3622, %v3629
    %v3638 = vadd.f32 %v3636, %v3637
    %v3639 = vtanh.pop %v3638
    %v3640 = vmul.f32 %v3635, %v3639
    %v3642 = vrot.slane %v3470, 1
    %v3645 = vrot.slane %v3640, 1
    %v3646 = vrot.slane %v3640, 7
    %v3647 = vrot.slane %v3645, 7
    %vm3650 = vcmask 1040384
    %v3651 = vsel %vm3650, %v3470, %v3646
    %v3652 = vsel %vm3650, %v3642, %v3647
    %vm3653 = vcmask 1041408
    %v3654 = vsel %vm3653, %v3651, 0.0
    %v3655 = vsel %vm3653, %v3652, 0.0
    %v3656 = vld [vmem:[%s4] sm:$0xff]
    %v3657 = vld [vmem:[%s4 + $0x8] sm:$0xff]
    %v3658 = vld [vmem:[%s4 + $0x10] sm:$0xff]
    %v3659 = vld [vmem:[%s4 + $0x18] sm:$0xff]
    %v3660 = vld [vmem:[%s4 + $0x20] sm:$0xff]
    %v3661 = vld [vmem:[%s4 + $0x28] sm:$0xff]
    %v3662 = vld [vmem:[%s4 + $0x30] sm:$0xff]
    %v3663 = vld [vmem:[%s4 + $0x38] sm:$0xff]
    %v3664 = vld [vmem:[%s4 + $0x40] sm:$0xff]
    %v3665 = vld [vmem:[%s4 + $0x48] sm:$0xff]
    %v3666 = vld [vmem:[%s4 + $0x50] sm:$0xff]
    %v3667 = vld [vmem:[%s4 + $0x58] sm:$0xff]
    %v3668 = vld [vmem:[%s4 + $0x60] sm:$0xff]
    %v3669 = vld [vmem:[%s4 + $0x68] sm:$0xff]
    %v3670 = vld [vmem:[%s4 + $0x70] sm:$0xff]
    %v3671 = vld [vmem:[%s4 + $0x78] sm:$0xff]
    %v3672 = vld [vmem:[%s4 + $0x80] sm:$0xff]
    %v3673 = vld [vmem:[%s4 + $0x88] sm:$0xff]
    %v3674 = vld [vmem:[%s4 + $0x90] sm:$0xff]
    %v3675 = vld [vmem:[%s4 + $0x98] sm:$0xff]
    %v3676 = vld [vmem:[%s4 + $0xa0] sm:$0xff]
    %v3677 = vld [vmem:[%s4 + $0xa8] sm:$0xff]
    %v3678 = vld [vmem:[%s4 + $0xb0] sm:$0xff]
    %v3679 = vld [vmem:[%s4 + $0xb8] sm:$0xff]
    %v3680 = vld [vmem:[%s4 + $0xc0] sm:$0xff]
    %v3681 = vld [vmem:[%s4 + $0xc8] sm:$0xff]
    %v3682 = vld [vmem:[%s4 + $0xd0] sm:$0xff]
    %v3683 = vld [vmem:[%s4 + $0xd8] sm:$0xff]
    %v3684 = vld [vmem:[%s4 + $0xe0] sm:$0xff]
    %v3685 = vld [vmem:[%s4 + $0xe8] sm:$0xff]
    %v3686 = vld [vmem:[%s4 + $0xf0] sm:$0xff]
    %v3687 = vld [vmem:[%s4 + $0xf8] sm:$0xff]
    %v3688 = vld [vmem:[%s4 + $0x100] sm:$0x1]
    %v3689 = vlaneseq
    %v3690 = vshrl.u32 %v3689, 7
    %v3691 = vsub.s32 0, %v3690
    %v3692 = vrot.slane %v3688, %v3691
    %3693 = vmatprep.subr.mxu0 0.0
    %3694 = vmatpush1.msra.mxu0 %v3656
    %3695 = vmatprep.subr.mxu0 0.0
    %3696 = vmatpush1.msra.mxu0 %v3657
    %3697 = vmatprep.subr.mxu0 0.0
    %3698 = vmatpush1.msra.mxu0 %v3658
    %3699 = vmatprep.subr.mxu0 0.0
    %3700 = vmatpush1.msra.mxu0 %v3659
    %3701 = vmatprep.subr.mxu0 0.0
    %3702 = vmatpush1.msra.mxu0 %v3660
    %3703 = vmatprep.subr.mxu0 0.0
    %3704 = vmatpush1.msra.mxu0 %v3661
    %3705 = vmatprep.subr.mxu0 0.0
    %3706 = vmatpush1.msra.mxu0 %v3662
    %3707 = vmatprep.subr.mxu0 0.0
    %3708 = vmatpush1.msra.mxu0 %v3663
    %3709 = vmatprep.subr.mxu0 0.0
    %3710 = vmatpush1.msra.mxu0 %v3664
    %3711 = vmatprep.subr.mxu0 0.0
    %3712 = vmatpush1.msra.mxu0 %v3665
    %3713 = vmatprep.subr.mxu0 0.0
    %3714 = vmatpush1.msra.mxu0 %v3666
    %3715 = vmatprep.subr.mxu0 0.0
    %3716 = vmatpush1.msra.mxu0 %v3667
    %3717 = vmatprep.subr.mxu0 0.0
    %3718 = vmatpush1.msra.mxu0 %v3668
    %3719 = vmatprep.subr.mxu0 0.0
    %3720 = vmatpush1.msra.mxu0 %v3669
    %3721 = vmatprep.subr.mxu0 0.0
    %3722 = vmatpush1.msra.mxu0 %v3670
    %3723 = vmatprep.subr.mxu0 0.0
    %3724 = vmatpush1.msra.mxu0 %v3671
    %3725 = vmatprep.subr.mxu0 0.0
    %3726 = vmatpush1.msra.mxu0 %v3672
    %3727 = vmatprep.subr.mxu0 0.0
    %3728 = vmatpush1.msra.mxu0 %v3673
    %3729 = vmatprep.subr.mxu0 0.0
    %3730 = vmatpush1.msra.mxu0 %v3674
    %3731 = vmatprep.subr.mxu0 0.0
    %3732 = vmatpush1.msra.mxu0 %v3675
    %3733 = vmatprep.subr.mxu0 0.0
    %3734 = vmatpush1.msra.mxu0 %v3676
    %3735 = vmatprep.subr.mxu0 0.0
    %3736 = vmatpush1.msra.mxu0 %v3677
    %3737 = vmatprep.subr.mxu0 0.0
    %3738 = vmatpush1.msra.mxu0 %v3678
    %3739 = vmatprep.subr.mxu0 0.0
    %3740 = vmatpush1.msra.mxu0 %v3679
    %3741 = vmatprep.subr.mxu0 0.0
    %3742 = vmatpush1.msra.mxu0 %v3680
    %3743 = vmatprep.subr.mxu0 0.0
    %3744 = vmatpush1.msra.mxu0 %v3681
    %3745 = vmatprep.subr.mxu0 0.0
    %3746 = vmatpush1.msra.mxu0 %v3682
    %3747 = vmatprep.subr.mxu0 0.0
    %3748 = vmatpush1.msra.mxu0 %v3683
    %3749 = vmatprep.subr.mxu0 0.0
    %3750 = vmatpush1.msra.mxu0 %v3684
    %3751 = vmatprep.subr.mxu0 0.0
    %3752 = vmatpush1.msra.mxu0 %v3685
    %3753 = vmatprep.subr.mxu0 0.0
    %3754 = vmatpush1.msra.mxu0 %v3686
    %3755 = vmatprep.subr.mxu0 0.0
    %3756 = vmatpush1.msra.mxu0 %v3687
    %3757 = vmatprep.mubr.f32.mxu0 %v3655
    %3758 = vmatmul.mubr.f32.gmra.mrb[0].mxu0 %v3654
    %v3759 = vpop.f32.mrb[0].mxu0
    %v3760 = vadd.f32 %v3692, %v3759
    %v3761 = vpop.f32.mrb[0].mxu0
    %3762 = vdwg.mxu0
    %3763 = vst [vmem:[%s5] sm:$0xff] %v3760
    // Predicated region
    $region26: #{_lambda_.1} parent=1 // pred_check
      _
    $region27: #{_lambda_.1} parent=1 // pred_check_branch
      %3765 = sbr.rel (0) target = $region29
    $region28: #{_lambda_.1} parent=1 // pred_region
      _
    $region29: #{_lambda_.1} parent=1 // pred_fallthru
      _
    // Predicated region
    $region30: #{_lambda_.1} parent=1 // pred_check
      _
    $region31: #{_lambda_.1} parent=1 // pred_check_branch
      %3767 = sbr.rel (0) target = $region33
    $region32: #{_lambda_.1} parent=1 // pred_region
      _
    $region33: #{_lambda_.1} parent=1 // pred_fallthru
      _
    %3768 = vsyncpa [#allocation3], 1

</llo_original>
